<compile_context>
chip_gen: v7x
topology: tpu7x:2x2x1
jax: 0.10.0
libtpu: 0.0.40
codegen_flags: <defaults>
</compile_context>

<pallas_src>
import functools

import jax
import jax.numpy as jnp
from jax.experimental import pallas as pl
from jax.experimental.pallas import tpu as pltpu


# ----------------------------------------------------------------------------
# Generation-aware sizing helpers
# ----------------------------------------------------------------------------

def _tile_targets():
    """(target_tile_bytes, vmem_limit_bytes), sized per TPU generation."""
    try:
        cap = int(pltpu.get_tpu_info().vmem_capacity_bytes)
    except Exception:
        # Info query unavailable: assume the smallest (v7x-class) VMEM.
        cap = 64 * 1024 * 1024
    if cap >= 100 * 1024 * 1024:
        # v5e / v6e: 128 MiB physical VMEM -> big tiles, raise the scoped limit
        # (v5e's 16 MiB default would not even fit the double-buffered tiles).
        return 8 * 1024 * 1024, 64 * 1024 * 1024
    # v7x-class: 64 MiB per TensorCore -> smaller tiles, leave headroom.
    return 4 * 1024 * 1024, min(48 * 1024 * 1024, (cap * 3) // 4)


def _choose_tile_nodes(num_nodes, feat_dim, itemsize, *,
                       target_tile_bytes, vmem_limit_bytes, sublane=32):
    """Node-tile size for the streaming kernel.

    Multiple of 32 sublanes (valid for f32 / bf16 / int8 packing), sized from
    target_tile_bytes and checked against the double-buffered VMEM budget
    INCLUDING the lane-padded (tile, 1) int8 mask tile (tile*128 bytes).
    Prefers >= 2 grid steps so v7x can shard the parallel axis across both
    TensorCores.
    """
    def _round_up(v):
        return max(sublane, ((v + sublane - 1) // sublane) * sublane)

    row_bytes = feat_dim * itemsize
    # double-buffered: x tile + out tile + lane-padded int8 mask tile, per row
    vmem_per_row = 2 * (2 * row_bytes + 128)
    rows_target = max(sublane,
                      (target_tile_bytes // max(row_bytes, 1)) // sublane * sublane)
    rows_vmem = max(sublane,
                    (((vmem_limit_bytes * 3) // 4) // vmem_per_row) // sublane * sublane)
    rows_cap = _round_up(num_nodes)
    tile = min(rows_target, rows_vmem, rows_cap)
    if num_nodes > sublane:  # prefer >= 2 tiles (v7x megacore); cheap elsewhere
        tile = min(tile, _round_up((num_nodes + 1) // 2))
    return int(max(sublane, tile))


# ----------------------------------------------------------------------------
# Path 1: scatter path — write zeros only to the dropped rows (output aliases x)
# ----------------------------------------------------------------------------

_ROWS_PER_STEP = 64          # dropped rows zeroed per grid step
_DMA_GROUP = 8               # zero-row DMAs kept in flight at once
_SCATTER_WRITE_PENALTY = 4   # assumed HBM-efficiency penalty of row-sized scattered writes
_MAX_SCATTER_ROWS = 32768    # keep the SMEM row-index list comfortably small


def _zero_rows_kernel(idx_ref, x_hbm, out_hbm, zrow_ref, sems, *,
                      rows_per_step, dma_group):
    """Zero `rows_per_step` rows of the (aliased) output per grid step."""
    del x_hbm  # same HBM buffer as out_hbm (input_output_aliases); never read
    step = pl.program_id(0)
    zrow_ref[...] = jnp.zeros_like(zrow_ref)      # (1, D) source of zeros
    base = step * rows_per_step
    for g in range(rows_per_step // dma_group):   # static unroll
        copies = []
        for j in range(dma_group):                # keep dma_group DMAs in flight
            row = idx_ref[base + g * dma_group + j]
            cp = pltpu.make_async_copy(
                zrow_ref, out_hbm.at[pl.ds(row, 1), :], sems.at[j])
            cp.start()
            copies.append(cp)
        for cp in copies:
            cp.wait()


def node_drop_zero_rows(x, drop_rows, *, vmem_limit_bytes=None):
    """Return x with the rows listed in drop_rows set to 0 (duplicates allowed).

    drop_rows: (M,) int32, M a positive multiple of _ROWS_PER_STEP; every
    entry must be a valid row index that is allowed to be zeroed.
    """
    N, D = x.shape
    M = int(drop_rows.shape[0])
    assert M > 0 and M % _ROWS_PER_STEP == 0
    if vmem_limit_bytes is None:
        _, vmem_limit_bytes = _tile_targets()
    itemsize = jnp.dtype(x.dtype).itemsize
    kernel = functools.partial(_zero_rows_kernel,
                               rows_per_step=_ROWS_PER_STEP,
                               dma_group=_DMA_GROUP)
    return pl.pallas_call(
        kernel,
        out_shape=jax.ShapeDtypeStruct((N, D), x.dtype),
        grid=(M // _ROWS_PER_STEP,),
        in_specs=[
            pl.BlockSpec(memory_space=pltpu.MemorySpace.SMEM),  # dropped-row indices
            pl.BlockSpec(memory_space=pl.ANY),                  # x (aliased to output)
        ],
        out_specs=pl.BlockSpec(memory_space=pl.ANY),
        scratch_shapes=[
            pltpu.VMEM((1, D), x.dtype),             # zero row (DMA source)
            pltpu.SemaphoreType.DMA((_DMA_GROUP,)),
        ],
        input_output_aliases={1: 0},                 # output aliases x
        compiler_params=pltpu.CompilerParams(
            dimension_semantics=("arbitrary",),
            vmem_limit_bytes=int(vmem_limit_bytes),
        ),
        cost_estimate=pl.CostEstimate(
            flops=0, transcendentals=0,
            bytes_accessed=M * D * itemsize + M * 4),
    )(drop_rows, x)


# ----------------------------------------------------------------------------
# Path 2: streaming path — masked select over every row
# ----------------------------------------------------------------------------

def _node_drop_kernel(x_ref, mask_ref, o_ref):
    # x_ref: (TN, D); mask_ref: (TN, 1) int8 (1 = keep, 0 = drop); o_ref: (TN, D)
    # Select (not multiply) so NaN/Inf in dropped rows become exact zeros.
    o_ref[...] = jnp.where(mask_ref[...] != 0, x_ref[...],
                           jnp.zeros((), dtype=o_ref.dtype))


def node_drop_apply_mask(x, keep_mask):
    """Streaming path: out[i] = x[i] if keep_mask[i] else 0."""
    N, D = x.shape
    itemsize = jnp.dtype(x.dtype).itemsize
    target_tile_bytes, vmem_limit_bytes = _tile_targets()
    tile = _choose_tile_nodes(N, D, itemsize,
                              target_tile_bytes=target_tile_bytes,
                              vmem_limit_bytes=vmem_limit_bytes)
    mask2d = keep_mask.astype(jnp.int8).reshape(N, 1)
    return pl.pallas_call(
        _node_drop_kernel,
        out_shape=jax.ShapeDtypeStruct((N, D), x.dtype),
        grid=(pl.cdiv(N, tile),),
        in_specs=[
            pl.BlockSpec((tile, D), lambda i: (i, 0)),
            pl.BlockSpec((tile, 1), lambda i: (i, 0)),
        ],
        out_specs=pl.BlockSpec((tile, D), lambda i: (i, 0)),
        compiler_params=pltpu.CompilerParams(
            dimension_semantics=("parallel",),
            vmem_limit_bytes=int(vmem_limit_bytes),
        ),
        cost_estimate=pl.CostEstimate(
            flops=N * D, transcendentals=0,
            bytes_accessed=2 * N * D * itemsize + N),
    )(x, mask2d)


# ----------------------------------------------------------------------------
# JAX glue (randperm / index plumbing) + top-level forward
# ----------------------------------------------------------------------------

def _keep_mask_from_perm(perm, num_nodes, keep_num):
    keep_idx = perm[:keep_num]
    keep_mask = jnp.zeros((num_nodes,), dtype=bool).at[keep_idx].set(True)
    return keep_mask.at[0].set(True)          # node 0 always kept


def _dropped_rows_from_perm(perm, keep_num, drop_num, *,
                            rows_per_step=_ROWS_PER_STEP):
    """Static-length list of rows to zero (duplicates are harmless).

    randperm drops perm[keep_num:]; node 0 is always kept, so a possible 0
    entry is replaced with another already-dropped row (requires drop_num>=2).
    Padded to a multiple of rows_per_step with a repeat of a dropped row.
    """
    tail = perm[keep_num:].astype(jnp.int32)        # (drop_num,)
    cand = tail[jnp.argmax(tail != 0)]              # some dropped row != 0
    rows = jnp.where(tail == 0, cand, tail)
    pad = (-drop_num) % rows_per_step
    if pad:
        rows = jnp.concatenate([rows, jnp.broadcast_to(rows[0], (pad,))])
    return rows


def node_drop(x, edge_index, aug_ratio, key, *, method="auto"):
    """Full NodeDrop forward (functional: returns a new x; edge_index unchanged).

    method: "auto" | "scatter" | "stream".  The scatter path only writes the
    dropped rows (output aliases x); donate x under jit to make it truly
    in-place like the PyTorch module.
    """
    num_nodes = x.shape[0]
    drop_num = int(num_nodes * aug_ratio)     # static shapes -> Python int
    keep_num = num_nodes - drop_num
    if drop_num == 0:
        return x, edge_index
    perm = jax.random.permutation(key, num_nodes)
    use_scatter = (
        drop_num >= 2
        and method in ("auto", "scatter")
        and (method == "scatter"
             or (drop_num <= _MAX_SCATTER_ROWS
                 and drop_num * _SCATTER_WRITE_PENALTY < 2 * num_nodes)))
    if use_scatter:
        rows = _dropped_rows_from_perm(perm, keep_num, drop_num)
        x_out = node_drop_zero_rows(x, rows)
    else:
        keep_mask = _keep_mask_from_perm(perm, num_nodes, keep_num)
        x_out = node_drop_apply_mask(x, keep_mask)
    return x_out, edge_index


if __name__ == "__main__":
    key = jax.random.PRNGKey(0)
    k_x, k_e, k_perm, k_x2, k_perm2 = jax.random.split(key, 5)

    num_nodes, feat_dim, num_edges = 256, 128, 512
    aug_ratio = 0.25
    drop_num = int(num_nodes * aug_ratio)
    keep_num = num_nodes - drop_num

    x = jax.random.normal(k_x, (num_nodes, feat_dim), dtype=jnp.float32)
    edge_index = jax.random.randint(
        k_e, (2, num_edges), minval=0, maxval=num_nodes, dtype=jnp.int32)

    perm = jax.random.permutation(k_perm, num_nodes)
    keep_mask = _keep_mask_from_perm(perm, num_nodes, keep_num)
    x_ref = jnp.where(keep_mask[:, None], x, 0.0)

    # --- scatter (write-only, aliased) path: chosen automatically at 0.25 ---
    x_aug, edge_out = node_drop(x, edge_index, aug_ratio, k_perm)
    x_aug = jax.block_until_ready(x_aug)
    assert x_aug.shape == x.shape and x_aug.dtype == x.dtype
    assert jnp.array_equal(x_aug, x_ref)
    assert jnp.array_equal(edge_out, edge_index)
    assert jnp.array_equal(x_aug[0], x[0])            # node 0 always kept

    # --- streaming path, incl. NaN in a dropped row (select, not x*0) ---
    drop_row = int(jnp.argmin(keep_mask))             # some dropped row
    x_nan = x.at[drop_row, :].set(jnp.nan)
    x_aug_s = jax.block_until_ready(node_drop_apply_mask(x_nan, keep_mask))
    assert jnp.array_equal(x_aug_s, x_ref)            # dropped NaN row -> exact zeros

    # --- bf16 through both paths ---
    x_bf = x.astype(jnp.bfloat16)
    ref_bf = jnp.where(keep_mask[:, None], x_bf, jnp.bfloat16(0))
    out_bf_s = jax.block_until_ready(node_drop_apply_mask(x_bf, keep_mask))
    out_bf_z, _ = node_drop(x_bf, edge_index, aug_ratio, k_perm, method="scatter")
    out_bf_z = jax.block_until_ready(out_bf_z)
    assert jnp.array_equal(out_bf_s, ref_bf)
    assert jnp.array_equal(out_bf_z, ref_bf)

    # --- ragged node count + narrow feature dim (partial tail block) ---
    n2, d2 = 200, 32
    x2 = jax.random.normal(k_x2, (n2, d2), dtype=jnp.float32)
    keep_mask2 = _keep_mask_from_perm(
        jax.random.permutation(k_perm2, n2), n2, n2 - int(n2 * aug_ratio))
    ref2 = jnp.where(keep_mask2[:, None], x2, 0.0)
    out2_auto, _ = node_drop(x2, edge_index, aug_ratio, k_perm2)   # scatter path
    out2_stream = node_drop_apply_mask(x2, keep_mask2)             # streaming path
    out2_auto, out2_stream = jax.block_until_ready((out2_auto, out2_stream))
    assert jnp.array_equal(out2_auto, ref2)
    assert jnp.array_equal(out2_stream, ref2)

    print("KERNEL_OK")
</pallas_src>

<mosaic_0001>
module attributes {stable_mosaic.version = 11 : i64} {
  func.func @_zero_rows_kernel(%arg0: i32, %arg1: memref<64xi32, #tpu.memory_space<smem>>, %arg2: memref<256x128xf32, #tpu.memory_space<any>>, %arg3: memref<256x128xf32, #tpu.memory_space<any>>, %arg4: memref<1x128xf32, #tpu.memory_space<vmem>>, %arg5: memref<8x!tpu.dma_semaphore, #tpu.memory_space<semaphore_mem>>) attributes {dimension_semantics = [#tpu.dimension_semantics<arbitrary>], iteration_bounds = array<i64: 1>, scalar_prefetch = 0 : i64, scratch_operands = 2 : i64, tpu.core_type = #tpu.core_type<tc>, window_params = [{transform_indices = @transform_0, window_bounds = array<i64: 64>}, {}, {}]} {
    %cst = arith.constant 0.000000e+00 : f32
    %0 = vector.broadcast %cst : f32 to vector<1x128xf32>
    %c0 = arith.constant 0 : index
    %c0_0 = arith.constant 0 : index
    %1 = vector.load %arg4[%c0, %c0_0] : memref<1x128xf32, #tpu.memory_space<vmem>>, vector<1x128xf32>
    tpu.vector_store %arg4[%c0, %c0_0], %0 {strides = array<i32>} : memref<1x128xf32, #tpu.memory_space<vmem>>, vector<1x128xf32>,
    %c64_i32 = arith.constant 64 : i32
    %2 = arith.muli %arg0, %c64_i32 : i32
    %c0_i32 = arith.constant 0 : i32
    %3 = arith.addi %2, %c0_i32 : i32
    %c0_i32_1 = arith.constant 0 : i32
    %4 = arith.addi %3, %c0_i32_1 : i32
    %5 = arith.index_cast %4 : i32 to index
    %6 = memref.load %arg1[%5] : memref<64xi32, #tpu.memory_space<smem>>
    %c0_i32_2 = arith.constant 0 : i32
    %c0_i32_3 = arith.constant 0 : i32
    %7 = tpu.memref_slice %arg3[%6, %c0_i32_3] : memref<256x128xf32, #tpu.memory_space<any>> -> memref<1x128xf32, #tpu.memory_space<any>>
    %8 = tpu.memref_slice %arg5[%c0_i32_2] : memref<8x!tpu.dma_semaphore, #tpu.memory_space<semaphore_mem>> -> memref<1x!tpu.dma_semaphore, #tpu.memory_space<semaphore_mem>>
    %9 = tpu.memref_squeeze %8 : memref<1x!tpu.dma_semaphore, #tpu.memory_space<semaphore_mem>> -> memref<!tpu.dma_semaphore, #tpu.memory_space<semaphore_mem>>
    tpu.enqueue_dma source(%arg4 : memref<1x128xf32, #tpu.memory_space<vmem>>) target(%7 : memref<1x128xf32, #tpu.memory_space<any>>) target_semaphore(%9 : memref<!tpu.dma_semaphore, #tpu.memory_space<semaphore_mem>>)
    %c0_i32_4 = arith.constant 0 : i32
    %10 = arith.addi %2, %c0_i32_4 : i32
    %c1_i32 = arith.constant 1 : i32
    %11 = arith.addi %10, %c1_i32 : i32
    %12 = arith.index_cast %11 : i32 to index
    %13 = memref.load %arg1[%12] : memref<64xi32, #tpu.memory_space<smem>>
    %c1_i32_5 = arith.constant 1 : i32
    %c0_i32_6 = arith.constant 0 : i32
    %14 = tpu.memref_slice %arg3[%13, %c0_i32_6] : memref<256x128xf32, #tpu.memory_space<any>> -> memref<1x128xf32, #tpu.memory_space<any>>
    %15 = tpu.memref_slice %arg5[%c1_i32_5] : memref<8x!tpu.dma_semaphore, #tpu.memory_space<semaphore_mem>> -> memref<1x!tpu.dma_semaphore, #tpu.memory_space<semaphore_mem>>
    %16 = tpu.memref_squeeze %15 : memref<1x!tpu.dma_semaphore, #tpu.memory_space<semaphore_mem>> -> memref<!tpu.dma_semaphore, #tpu.memory_space<semaphore_mem>>
    tpu.enqueue_dma source(%arg4 : memref<1x128xf32, #tpu.memory_space<vmem>>) target(%14 : memref<1x128xf32, #tpu.memory_space<any>>) target_semaphore(%16 : memref<!tpu.dma_semaphore, #tpu.memory_space<semaphore_mem>>)
    %c0_i32_7 = arith.constant 0 : i32
    %17 = arith.addi %2, %c0_i32_7 : i32
    %c2_i32 = arith.constant 2 : i32
    %18 = arith.addi %17, %c2_i32 : i32
    %19 = arith.index_cast %18 : i32 to index
    %20 = memref.load %arg1[%19] : memref<64xi32, #tpu.memory_space<smem>>
    %c2_i32_8 = arith.constant 2 : i32
    %c0_i32_9 = arith.constant 0 : i32
    %21 = tpu.memref_slice %arg3[%20, %c0_i32_9] : memref<256x128xf32, #tpu.memory_space<any>> -> memref<1x128xf32, #tpu.memory_space<any>>
    %22 = tpu.memref_slice %arg5[%c2_i32_8] : memref<8x!tpu.dma_semaphore, #tpu.memory_space<semaphore_mem>> -> memref<1x!tpu.dma_semaphore, #tpu.memory_space<semaphore_mem>>
    %23 = tpu.memref_squeeze %22 : memref<1x!tpu.dma_semaphore, #tpu.memory_space<semaphore_mem>> -> memref<!tpu.dma_semaphore, #tpu.memory_space<semaphore_mem>>
    tpu.enqueue_dma source(%arg4 : memref<1x128xf32, #tpu.memory_space<vmem>>) target(%21 : memref<1x128xf32, #tpu.memory_space<any>>) target_semaphore(%23 : memref<!tpu.dma_semaphore, #tpu.memory_space<semaphore_mem>>)
    %c0_i32_10 = arith.constant 0 : i32
    %24 = arith.addi %2, %c0_i32_10 : i32
    %c3_i32 = arith.constant 3 : i32
    %25 = arith.addi %24, %c3_i32 : i32
    %26 = arith.index_cast %25 : i32 to index
    %27 = memref.load %arg1[%26] : memref<64xi32, #tpu.memory_space<smem>>
    %c3_i32_11 = arith.constant 3 : i32
    %c0_i32_12 = arith.constant 0 : i32
    %28 = tpu.memref_slice %arg3[%27, %c0_i32_12] : memref<256x128xf32, #tpu.memory_space<any>> -> memref<1x128xf32, #tpu.memory_space<any>>
    %29 = tpu.memref_slice %arg5[%c3_i32_11] : memref<8x!tpu.dma_semaphore, #tpu.memory_space<semaphore_mem>> -> memref<1x!tpu.dma_semaphore, #tpu.memory_space<semaphore_mem>>
    %30 = tpu.memref_squeeze %29 : memref<1x!tpu.dma_semaphore, #tpu.memory_space<semaphore_mem>> -> memref<!tpu.dma_semaphore, #tpu.memory_space<semaphore_mem>>
    tpu.enqueue_dma source(%arg4 : memref<1x128xf32, #tpu.memory_space<vmem>>) target(%28 : memref<1x128xf32, #tpu.memory_space<any>>) target_semaphore(%30 : memref<!tpu.dma_semaphore, #tpu.memory_space<semaphore_mem>>)
    %c0_i32_13 = arith.constant 0 : i32
    %31 = arith.addi %2, %c0_i32_13 : i32
    %c4_i32 = arith.constant 4 : i32
    %32 = arith.addi %31, %c4_i32 : i32
    %33 = arith.index_cast %32 : i32 to index
    %34 = memref.load %arg1[%33] : memref<64xi32, #tpu.memory_space<smem>>
    %c4_i32_14 = arith.constant 4 : i32
    %c0_i32_15 = arith.constant 0 : i32
    %35 = tpu.memref_slice %arg3[%34, %c0_i32_15] : memref<256x128xf32, #tpu.memory_space<any>> -> memref<1x128xf32, #tpu.memory_space<any>>
    %36 = tpu.memref_slice %arg5[%c4_i32_14] : memref<8x!tpu.dma_semaphore, #tpu.memory_space<semaphore_mem>> -> memref<1x!tpu.dma_semaphore, #tpu.memory_space<semaphore_mem>>
    %37 = tpu.memref_squeeze %36 : memref<1x!tpu.dma_semaphore, #tpu.memory_space<semaphore_mem>> -> memref<!tpu.dma_semaphore, #tpu.memory_space<semaphore_mem>>
    tpu.enqueue_dma source(%arg4 : memref<1x128xf32, #tpu.memory_space<vmem>>) target(%35 : memref<1x128xf32, #tpu.memory_space<any>>) target_semaphore(%37 : memref<!tpu.dma_semaphore, #tpu.memory_space<semaphore_mem>>)
    %c0_i32_16 = arith.constant 0 : i32
    %38 = arith.addi %2, %c0_i32_16 : i32
    %c5_i32 = arith.constant 5 : i32
    %39 = arith.addi %38, %c5_i32 : i32
    %40 = arith.index_cast %39 : i32 to index
    %41 = memref.load %arg1[%40] : memref<64xi32, #tpu.memory_space<smem>>
    %c5_i32_17 = arith.constant 5 : i32
    %c0_i32_18 = arith.constant 0 : i32
    %42 = tpu.memref_slice %arg3[%41, %c0_i32_18] : memref<256x128xf32, #tpu.memory_space<any>> -> memref<1x128xf32, #tpu.memory_space<any>>
    %43 = tpu.memref_slice %arg5[%c5_i32_17] : memref<8x!tpu.dma_semaphore, #tpu.memory_space<semaphore_mem>> -> memref<1x!tpu.dma_semaphore, #tpu.memory_space<semaphore_mem>>
    %44 = tpu.memref_squeeze %43 : memref<1x!tpu.dma_semaphore, #tpu.memory_space<semaphore_mem>> -> memref<!tpu.dma_semaphore, #tpu.memory_space<semaphore_mem>>
    tpu.enqueue_dma source(%arg4 : memref<1x128xf32, #tpu.memory_space<vmem>>) target(%42 : memref<1x128xf32, #tpu.memory_space<any>>) target_semaphore(%44 : memref<!tpu.dma_semaphore, #tpu.memory_space<semaphore_mem>>)
    %c0_i32_19 = arith.constant 0 : i32
    %45 = arith.addi %2, %c0_i32_19 : i32
    %c6_i32 = arith.constant 6 : i32
    %46 = arith.addi %45, %c6_i32 : i32
    %47 = arith.index_cast %46 : i32 to index
    %48 = memref.load %arg1[%47] : memref<64xi32, #tpu.memory_space<smem>>
    %c6_i32_20 = arith.constant 6 : i32
    %c0_i32_21 = arith.constant 0 : i32
    %49 = tpu.memref_slice %arg3[%48, %c0_i32_21] : memref<256x128xf32, #tpu.memory_space<any>> -> memref<1x128xf32, #tpu.memory_space<any>>
    %50 = tpu.memref_slice %arg5[%c6_i32_20] : memref<8x!tpu.dma_semaphore, #tpu.memory_space<semaphore_mem>> -> memref<1x!tpu.dma_semaphore, #tpu.memory_space<semaphore_mem>>
    %51 = tpu.memref_squeeze %50 : memref<1x!tpu.dma_semaphore, #tpu.memory_space<semaphore_mem>> -> memref<!tpu.dma_semaphore, #tpu.memory_space<semaphore_mem>>
    tpu.enqueue_dma source(%arg4 : memref<1x128xf32, #tpu.memory_space<vmem>>) target(%49 : memref<1x128xf32, #tpu.memory_space<any>>) target_semaphore(%51 : memref<!tpu.dma_semaphore, #tpu.memory_space<semaphore_mem>>)
    %c0_i32_22 = arith.constant 0 : i32
    %52 = arith.addi %2, %c0_i32_22 : i32
    %c7_i32 = arith.constant 7 : i32
    %53 = arith.addi %52, %c7_i32 : i32
    %54 = arith.index_cast %53 : i32 to index
    %55 = memref.load %arg1[%54] : memref<64xi32, #tpu.memory_space<smem>>
    %c7_i32_23 = arith.constant 7 : i32
    %c0_i32_24 = arith.constant 0 : i32
    %56 = tpu.memref_slice %arg3[%55, %c0_i32_24] : memref<256x128xf32, #tpu.memory_space<any>> -> memref<1x128xf32, #tpu.memory_space<any>>
    %57 = tpu.memref_slice %arg5[%c7_i32_23] : memref<8x!tpu.dma_semaphore, #tpu.memory_space<semaphore_mem>> -> memref<1x!tpu.dma_semaphore, #tpu.memory_space<semaphore_mem>>
    %58 = tpu.memref_squeeze %57 : memref<1x!tpu.dma_semaphore, #tpu.memory_space<semaphore_mem>> -> memref<!tpu.dma_semaphore, #tpu.memory_space<semaphore_mem>>
    tpu.enqueue_dma source(%arg4 : memref<1x128xf32, #tpu.memory_space<vmem>>) target(%56 : memref<1x128xf32, #tpu.memory_space<any>>) target_semaphore(%58 : memref<!tpu.dma_semaphore, #tpu.memory_space<semaphore_mem>>)
    %c0_i32_25 = arith.constant 0 : i32
    %c0_i32_26 = arith.constant 0 : i32
    %59 = tpu.memref_slice %arg3[%6, %c0_i32_26] : memref<256x128xf32, #tpu.memory_space<any>> -> memref<1x128xf32, #tpu.memory_space<any>>
    %60 = tpu.memref_slice %arg5[%c0_i32_25] : memref<8x!tpu.dma_semaphore, #tpu.memory_space<semaphore_mem>> -> memref<1x!tpu.dma_semaphore, #tpu.memory_space<semaphore_mem>>
    %61 = tpu.memref_squeeze %60 : memref<1x!tpu.dma_semaphore, #tpu.memory_space<semaphore_mem>> -> memref<!tpu.dma_semaphore, #tpu.memory_space<semaphore_mem>>
    tpu.wait_dma2 semaphore(%61 : memref<!tpu.dma_semaphore, #tpu.memory_space<semaphore_mem>>) src(%arg4 : memref<1x128xf32, #tpu.memory_space<vmem>>) dst(%59 : memref<1x128xf32, #tpu.memory_space<any>>)
    %c1_i32_27 = arith.constant 1 : i32
    %c0_i32_28 = arith.constant 0 : i32
    %62 = tpu.memref_slice %arg3[%13, %c0_i32_28] : memref<256x128xf32, #tpu.memory_space<any>> -> memref<1x128xf32, #tpu.memory_space<any>>
    %63 = tpu.memref_slice %arg5[%c1_i32_27] : memref<8x!tpu.dma_semaphore, #tpu.memory_space<semaphore_mem>> -> memref<1x!tpu.dma_semaphore, #tpu.memory_space<semaphore_mem>>
    %64 = tpu.memref_squeeze %63 : memref<1x!tpu.dma_semaphore, #tpu.memory_space<semaphore_mem>> -> memref<!tpu.dma_semaphore, #tpu.memory_space<semaphore_mem>>
    tpu.wait_dma2 semaphore(%64 : memref<!tpu.dma_semaphore, #tpu.memory_space<semaphore_mem>>) src(%arg4 : memref<1x128xf32, #tpu.memory_space<vmem>>) dst(%62 : memref<1x128xf32, #tpu.memory_space<any>>)
    %c2_i32_29 = arith.constant 2 : i32
    %c0_i32_30 = arith.constant 0 : i32
    %65 = tpu.memref_slice %arg3[%20, %c0_i32_30] : memref<256x128xf32, #tpu.memory_space<any>> -> memref<1x128xf32, #tpu.memory_space<any>>
    %66 = tpu.memref_slice %arg5[%c2_i32_29] : memref<8x!tpu.dma_semaphore, #tpu.memory_space<semaphore_mem>> -> memref<1x!tpu.dma_semaphore, #tpu.memory_space<semaphore_mem>>
    %67 = tpu.memref_squeeze %66 : memref<1x!tpu.dma_semaphore, #tpu.memory_space<semaphore_mem>> -> memref<!tpu.dma_semaphore, #tpu.memory_space<semaphore_mem>>
    tpu.wait_dma2 semaphore(%67 : memref<!tpu.dma_semaphore, #tpu.memory_space<semaphore_mem>>) src(%arg4 : memref<1x128xf32, #tpu.memory_space<vmem>>) dst(%65 : memref<1x128xf32, #tpu.memory_space<any>>)
    %c3_i32_31 = arith.constant 3 : i32
    %c0_i32_32 = arith.constant 0 : i32
    %68 = tpu.memref_slice %arg3[%27, %c0_i32_32] : memref<256x128xf32, #tpu.memory_space<any>> -> memref<1x128xf32, #tpu.memory_space<any>>
    %69 = tpu.memref_slice %arg5[%c3_i32_31] : memref<8x!tpu.dma_semaphore, #tpu.memory_space<semaphore_mem>> -> memref<1x!tpu.dma_semaphore, #tpu.memory_space<semaphore_mem>>
    %70 = tpu.memref_squeeze %69 : memref<1x!tpu.dma_semaphore, #tpu.memory_space<semaphore_mem>> -> memref<!tpu.dma_semaphore, #tpu.memory_space<semaphore_mem>>
    tpu.wait_dma2 semaphore(%70 : memref<!tpu.dma_semaphore, #tpu.memory_space<semaphore_mem>>) src(%arg4 : memref<1x128xf32, #tpu.memory_space<vmem>>) dst(%68 : memref<1x128xf32, #tpu.memory_space<any>>)
    %c4_i32_33 = arith.constant 4 : i32
    %c0_i32_34 = arith.constant 0 : i32
    %71 = tpu.memref_slice %arg3[%34, %c0_i32_34] : memref<256x128xf32, #tpu.memory_space<any>> -> memref<1x128xf32, #tpu.memory_space<any>>
    %72 = tpu.memref_slice %arg5[%c4_i32_33] : memref<8x!tpu.dma_semaphore, #tpu.memory_space<semaphore_mem>> -> memref<1x!tpu.dma_semaphore, #tpu.memory_space<semaphore_mem>>
    %73 = tpu.memref_squeeze %72 : memref<1x!tpu.dma_semaphore, #tpu.memory_space<semaphore_mem>> -> memref<!tpu.dma_semaphore, #tpu.memory_space<semaphore_mem>>
    tpu.wait_dma2 semaphore(%73 : memref<!tpu.dma_semaphore, #tpu.memory_space<semaphore_mem>>) src(%arg4 : memref<1x128xf32, #tpu.memory_space<vmem>>) dst(%71 : memref<1x128xf32, #tpu.memory_space<any>>)
    %c5_i32_35 = arith.constant 5 : i32
    %c0_i32_36 = arith.constant 0 : i32
    %74 = tpu.memref_slice %arg3[%41, %c0_i32_36] : memref<256x128xf32, #tpu.memory_space<any>> -> memref<1x128xf32, #tpu.memory_space<any>>
    %75 = tpu.memref_slice %arg5[%c5_i32_35] : memref<8x!tpu.dma_semaphore, #tpu.memory_space<semaphore_mem>> -> memref<1x!tpu.dma_semaphore, #tpu.memory_space<semaphore_mem>>
    %76 = tpu.memref_squeeze %75 : memref<1x!tpu.dma_semaphore, #tpu.memory_space<semaphore_mem>> -> memref<!tpu.dma_semaphore, #tpu.memory_space<semaphore_mem>>
    tpu.wait_dma2 semaphore(%76 : memref<!tpu.dma_semaphore, #tpu.memory_space<semaphore_mem>>) src(%arg4 : memref<1x128xf32, #tpu.memory_space<vmem>>) dst(%74 : memref<1x128xf32, #tpu.memory_space<any>>)
    %c6_i32_37 = arith.constant 6 : i32
    %c0_i32_38 = arith.constant 0 : i32
    %77 = tpu.memref_slice %arg3[%48, %c0_i32_38] : memref<256x128xf32, #tpu.memory_space<any>> -> memref<1x128xf32, #tpu.memory_space<any>>
    %78 = tpu.memref_slice %arg5[%c6_i32_37] : memref<8x!tpu.dma_semaphore, #tpu.memory_space<semaphore_mem>> -> memref<1x!tpu.dma_semaphore, #tpu.memory_space<semaphore_mem>>
    %79 = tpu.memref_squeeze %78 : memref<1x!tpu.dma_semaphore, #tpu.memory_space<semaphore_mem>> -> memref<!tpu.dma_semaphore, #tpu.memory_space<semaphore_mem>>
    tpu.wait_dma2 semaphore(%79 : memref<!tpu.dma_semaphore, #tpu.memory_space<semaphore_mem>>) src(%arg4 : memref<1x128xf32, #tpu.memory_space<vmem>>) dst(%77 : memref<1x128xf32, #tpu.memory_space<any>>)
    %c7_i32_39 = arith.constant 7 : i32
    %c0_i32_40 = arith.constant 0 : i32
    %80 = tpu.memref_slice %arg3[%55, %c0_i32_40] : memref<256x128xf32, #tpu.memory_space<any>> -> memref<1x128xf32, #tpu.memory_space<any>>
    %81 = tpu.memref_slice %arg5[%c7_i32_39] : memref<8x!tpu.dma_semaphore, #tpu.memory_space<semaphore_mem>> -> memref<1x!tpu.dma_semaphore, #tpu.memory_space<semaphore_mem>>
    %82 = tpu.memref_squeeze %81 : memref<1x!tpu.dma_semaphore, #tpu.memory_space<semaphore_mem>> -> memref<!tpu.dma_semaphore, #tpu.memory_space<semaphore_mem>>
    tpu.wait_dma2 semaphore(%82 : memref<!tpu.dma_semaphore, #tpu.memory_space<semaphore_mem>>) src(%arg4 : memref<1x128xf32, #tpu.memory_space<vmem>>) dst(%80 : memref<1x128xf32, #tpu.memory_space<any>>)
    %c8_i32 = arith.constant 8 : i32
    %83 = arith.addi %2, %c8_i32 : i32
    %c0_i32_41 = arith.constant 0 : i32
    %84 = arith.addi %83, %c0_i32_41 : i32
    %85 = arith.index_cast %84 : i32 to index
    %86 = memref.load %arg1[%85] : memref<64xi32, #tpu.memory_space<smem>>
    %c0_i32_42 = arith.constant 0 : i32
    %c0_i32_43 = arith.constant 0 : i32
    %87 = tpu.memref_slice %arg3[%86, %c0_i32_43] : memref<256x128xf32, #tpu.memory_space<any>> -> memref<1x128xf32, #tpu.memory_space<any>>
    %88 = tpu.memref_slice %arg5[%c0_i32_42] : memref<8x!tpu.dma_semaphore, #tpu.memory_space<semaphore_mem>> -> memref<1x!tpu.dma_semaphore, #tpu.memory_space<semaphore_mem>>
    %89 = tpu.memref_squeeze %88 : memref<1x!tpu.dma_semaphore, #tpu.memory_space<semaphore_mem>> -> memref<!tpu.dma_semaphore, #tpu.memory_space<semaphore_mem>>
    tpu.enqueue_dma source(%arg4 : memref<1x128xf32, #tpu.memory_space<vmem>>) target(%87 : memref<1x128xf32, #tpu.memory_space<any>>) target_semaphore(%89 : memref<!tpu.dma_semaphore, #tpu.memory_space<semaphore_mem>>)
    %c8_i32_44 = arith.constant 8 : i32
    %90 = arith.addi %2, %c8_i32_44 : i32
    %c1_i32_45 = arith.constant 1 : i32
    %91 = arith.addi %90, %c1_i32_45 : i32
    %92 = arith.index_cast %91 : i32 to index
    %93 = memref.load %arg1[%92] : memref<64xi32, #tpu.memory_space<smem>>
    %c1_i32_46 = arith.constant 1 : i32
    %c0_i32_47 = arith.constant 0 : i32
    %94 = tpu.memref_slice %arg3[%93, %c0_i32_47] : memref<256x128xf32, #tpu.memory_space<any>> -> memref<1x128xf32, #tpu.memory_space<any>>
    %95 = tpu.memref_slice %arg5[%c1_i32_46] : memref<8x!tpu.dma_semaphore, #tpu.memory_space<semaphore_mem>> -> memref<1x!tpu.dma_semaphore, #tpu.memory_space<semaphore_mem>>
    %96 = tpu.memref_squeeze %95 : memref<1x!tpu.dma_semaphore, #tpu.memory_space<semaphore_mem>> -> memref<!tpu.dma_semaphore, #tpu.memory_space<semaphore_mem>>
    tpu.enqueue_dma source(%arg4 : memref<1x128xf32, #tpu.memory_space<vmem>>) target(%94 : memref<1x128xf32, #tpu.memory_space<any>>) target_semaphore(%96 : memref<!tpu.dma_semaphore, #tpu.memory_space<semaphore_mem>>)
    %c8_i32_48 = arith.constant 8 : i32
    %97 = arith.addi %2, %c8_i32_48 : i32
    %c2_i32_49 = arith.constant 2 : i32
    %98 = arith.addi %97, %c2_i32_49 : i32
    %99 = arith.index_cast %98 : i32 to index
    %100 = memref.load %arg1[%99] : memref<64xi32, #tpu.memory_space<smem>>
    %c2_i32_50 = arith.constant 2 : i32
    %c0_i32_51 = arith.constant 0 : i32
    %101 = tpu.memref_slice %arg3[%100, %c0_i32_51] : memref<256x128xf32, #tpu.memory_space<any>> -> memref<1x128xf32, #tpu.memory_space<any>>
    %102 = tpu.memref_slice %arg5[%c2_i32_50] : memref<8x!tpu.dma_semaphore, #tpu.memory_space<semaphore_mem>> -> memref<1x!tpu.dma_semaphore, #tpu.memory_space<semaphore_mem>>
    %103 = tpu.memref_squeeze %102 : memref<1x!tpu.dma_semaphore, #tpu.memory_space<semaphore_mem>> -> memref<!tpu.dma_semaphore, #tpu.memory_space<semaphore_mem>>
    tpu.enqueue_dma source(%arg4 : memref<1x128xf32, #tpu.memory_space<vmem>>) target(%101 : memref<1x128xf32, #tpu.memory_space<any>>) target_semaphore(%103 : memref<!tpu.dma_semaphore, #tpu.memory_space<semaphore_mem>>)
    %c8_i32_52 = arith.constant 8 : i32
    %104 = arith.addi %2, %c8_i32_52 : i32
    %c3_i32_53 = arith.constant 3 : i32
    %105 = arith.addi %104, %c3_i32_53 : i32
    %106 = arith.index_cast %105 : i32 to index
    %107 = memref.load %arg1[%106] : memref<64xi32, #tpu.memory_space<smem>>
    %c3_i32_54 = arith.constant 3 : i32
    %c0_i32_55 = arith.constant 0 : i32
    %108 = tpu.memref_slice %arg3[%107, %c0_i32_55] : memref<256x128xf32, #tpu.memory_space<any>> -> memref<1x128xf32, #tpu.memory_space<any>>
    %109 = tpu.memref_slice %arg5[%c3_i32_54] : memref<8x!tpu.dma_semaphore, #tpu.memory_space<semaphore_mem>> -> memref<1x!tpu.dma_semaphore, #tpu.memory_space<semaphore_mem>>
    %110 = tpu.memref_squeeze %109 : memref<1x!tpu.dma_semaphore, #tpu.memory_space<semaphore_mem>> -> memref<!tpu.dma_semaphore, #tpu.memory_space<semaphore_mem>>
    tpu.enqueue_dma source(%arg4 : memref<1x128xf32, #tpu.memory_space<vmem>>) target(%108 : memref<1x128xf32, #tpu.memory_space<any>>) target_semaphore(%110 : memref<!tpu.dma_semaphore, #tpu.memory_space<semaphore_mem>>)
    %c8_i32_56 = arith.constant 8 : i32
    %111 = arith.addi %2, %c8_i32_56 : i32
    %c4_i32_57 = arith.constant 4 : i32
    %112 = arith.addi %111, %c4_i32_57 : i32
    %113 = arith.index_cast %112 : i32 to index
    %114 = memref.load %arg1[%113] : memref<64xi32, #tpu.memory_space<smem>>
    %c4_i32_58 = arith.constant 4 : i32
    %c0_i32_59 = arith.constant 0 : i32
    %115 = tpu.memref_slice %arg3[%114, %c0_i32_59] : memref<256x128xf32, #tpu.memory_space<any>> -> memref<1x128xf32, #tpu.memory_space<any>>
    %116 = tpu.memref_slice %arg5[%c4_i32_58] : memref<8x!tpu.dma_semaphore, #tpu.memory_space<semaphore_mem>> -> memref<1x!tpu.dma_semaphore, #tpu.memory_space<semaphore_mem>>
    %117 = tpu.memref_squeeze %116 : memref<1x!tpu.dma_semaphore, #tpu.memory_space<semaphore_mem>> -> memref<!tpu.dma_semaphore, #tpu.memory_space<semaphore_mem>>
    tpu.enqueue_dma source(%arg4 : memref<1x128xf32, #tpu.memory_space<vmem>>) target(%115 : memref<1x128xf32, #tpu.memory_space<any>>) target_semaphore(%117 : memref<!tpu.dma_semaphore, #tpu.memory_space<semaphore_mem>>)
    %c8_i32_60 = arith.constant 8 : i32
    %118 = arith.addi %2, %c8_i32_60 : i32
    %c5_i32_61 = arith.constant 5 : i32
    %119 = arith.addi %118, %c5_i32_61 : i32
    %120 = arith.index_cast %119 : i32 to index
    %121 = memref.load %arg1[%120] : memref<64xi32, #tpu.memory_space<smem>>
    %c5_i32_62 = arith.constant 5 : i32
    %c0_i32_63 = arith.constant 0 : i32
    %122 = tpu.memref_slice %arg3[%121, %c0_i32_63] : memref<256x128xf32, #tpu.memory_space<any>> -> memref<1x128xf32, #tpu.memory_space<any>>
    %123 = tpu.memref_slice %arg5[%c5_i32_62] : memref<8x!tpu.dma_semaphore, #tpu.memory_space<semaphore_mem>> -> memref<1x!tpu.dma_semaphore, #tpu.memory_space<semaphore_mem>>
    %124 = tpu.memref_squeeze %123 : memref<1x!tpu.dma_semaphore, #tpu.memory_space<semaphore_mem>> -> memref<!tpu.dma_semaphore, #tpu.memory_space<semaphore_mem>>
    tpu.enqueue_dma source(%arg4 : memref<1x128xf32, #tpu.memory_space<vmem>>) target(%122 : memref<1x128xf32, #tpu.memory_space<any>>) target_semaphore(%124 : memref<!tpu.dma_semaphore, #tpu.memory_space<semaphore_mem>>)
    %c8_i32_64 = arith.constant 8 : i32
    %125 = arith.addi %2, %c8_i32_64 : i32
    %c6_i32_65 = arith.constant 6 : i32
    %126 = arith.addi %125, %c6_i32_65 : i32
    %127 = arith.index_cast %126 : i32 to index
    %128 = memref.load %arg1[%127] : memref<64xi32, #tpu.memory_space<smem>>
    %c6_i32_66 = arith.constant 6 : i32
    %c0_i32_67 = arith.constant 0 : i32
    %129 = tpu.memref_slice %arg3[%128, %c0_i32_67] : memref<256x128xf32, #tpu.memory_space<any>> -> memref<1x128xf32, #tpu.memory_space<any>>
    %130 = tpu.memref_slice %arg5[%c6_i32_66] : memref<8x!tpu.dma_semaphore, #tpu.memory_space<semaphore_mem>> -> memref<1x!tpu.dma_semaphore, #tpu.memory_space<semaphore_mem>>
    %131 = tpu.memref_squeeze %130 : memref<1x!tpu.dma_semaphore, #tpu.memory_space<semaphore_mem>> -> memref<!tpu.dma_semaphore, #tpu.memory_space<semaphore_mem>>
    tpu.enqueue_dma source(%arg4 : memref<1x128xf32, #tpu.memory_space<vmem>>) target(%129 : memref<1x128xf32, #tpu.memory_space<any>>) target_semaphore(%131 : memref<!tpu.dma_semaphore, #tpu.memory_space<semaphore_mem>>)
    %c8_i32_68 = arith.constant 8 : i32
    %132 = arith.addi %2, %c8_i32_68 : i32
    %c7_i32_69 = arith.constant 7 : i32
    %133 = arith.addi %132, %c7_i32_69 : i32
    %134 = arith.index_cast %133 : i32 to index
    %135 = memref.load %arg1[%134] : memref<64xi32, #tpu.memory_space<smem>>
    %c7_i32_70 = arith.constant 7 : i32
    %c0_i32_71 = arith.constant 0 : i32
    %136 = tpu.memref_slice %arg3[%135, %c0_i32_71] : memref<256x128xf32, #tpu.memory_space<any>> -> memref<1x128xf32, #tpu.memory_space<any>>
    %137 = tpu.memref_slice %arg5[%c7_i32_70] : memref<8x!tpu.dma_semaphore, #tpu.memory_space<semaphore_mem>> -> memref<1x!tpu.dma_semaphore, #tpu.memory_space<semaphore_mem>>
    %138 = tpu.memref_squeeze %137 : memref<1x!tpu.dma_semaphore, #tpu.memory_space<semaphore_mem>> -> memref<!tpu.dma_semaphore, #tpu.memory_space<semaphore_mem>>
    tpu.enqueue_dma source(%arg4 : memref<1x128xf32, #tpu.memory_space<vmem>>) target(%136 : memref<1x128xf32, #tpu.memory_space<any>>) target_semaphore(%138 : memref<!tpu.dma_semaphore, #tpu.memory_space<semaphore_mem>>)
    %c0_i32_72 = arith.constant 0 : i32
    %c0_i32_73 = arith.constant 0 : i32
    %139 = tpu.memref_slice %arg3[%86, %c0_i32_73] : memref<256x128xf32, #tpu.memory_space<any>> -> memref<1x128xf32, #tpu.memory_space<any>>
    %140 = tpu.memref_slice %arg5[%c0_i32_72] : memref<8x!tpu.dma_semaphore, #tpu.memory_space<semaphore_mem>> -> memref<1x!tpu.dma_semaphore, #tpu.memory_space<semaphore_mem>>
    %141 = tpu.memref_squeeze %140 : memref<1x!tpu.dma_semaphore, #tpu.memory_space<semaphore_mem>> -> memref<!tpu.dma_semaphore, #tpu.memory_space<semaphore_mem>>
    tpu.wait_dma2 semaphore(%141 : memref<!tpu.dma_semaphore, #tpu.memory_space<semaphore_mem>>) src(%arg4 : memref<1x128xf32, #tpu.memory_space<vmem>>) dst(%139 : memref<1x128xf32, #tpu.memory_space<any>>)
    %c1_i32_74 = arith.constant 1 : i32
    %c0_i32_75 = arith.constant 0 : i32
    %142 = tpu.memref_slice %arg3[%93, %c0_i32_75] : memref<256x128xf32, #tpu.memory_space<any>> -> memref<1x128xf32, #tpu.memory_space<any>>
    %143 = tpu.memref_slice %arg5[%c1_i32_74] : memref<8x!tpu.dma_semaphore, #tpu.memory_space<semaphore_mem>> -> memref<1x!tpu.dma_semaphore, #tpu.memory_space<semaphore_mem>>
    %144 = tpu.memref_squeeze %143 : memref<1x!tpu.dma_semaphore, #tpu.memory_space<semaphore_mem>> -> memref<!tpu.dma_semaphore, #tpu.memory_space<semaphore_mem>>
    tpu.wait_dma2 semaphore(%144 : memref<!tpu.dma_semaphore, #tpu.memory_space<semaphore_mem>>) src(%arg4 : memref<1x128xf32, #tpu.memory_space<vmem>>) dst(%142 : memref<1x128xf32, #tpu.memory_space<any>>)
    %c2_i32_76 = arith.constant 2 : i32
    %c0_i32_77 = arith.constant 0 : i32
    %145 = tpu.memref_slice %arg3[%100, %c0_i32_77] : memref<256x128xf32, #tpu.memory_space<any>> -> memref<1x128xf32, #tpu.memory_space<any>>
    %146 = tpu.memref_slice %arg5[%c2_i32_76] : memref<8x!tpu.dma_semaphore, #tpu.memory_space<semaphore_mem>> -> memref<1x!tpu.dma_semaphore, #tpu.memory_space<semaphore_mem>>
    %147 = tpu.memref_squeeze %146 : memref<1x!tpu.dma_semaphore, #tpu.memory_space<semaphore_mem>> -> memref<!tpu.dma_semaphore, #tpu.memory_space<semaphore_mem>>
    tpu.wait_dma2 semaphore(%147 : memref<!tpu.dma_semaphore, #tpu.memory_space<semaphore_mem>>) src(%arg4 : memref<1x128xf32, #tpu.memory_space<vmem>>) dst(%145 : memref<1x128xf32, #tpu.memory_space<any>>)
    %c3_i32_78 = arith.constant 3 : i32
    %c0_i32_79 = arith.constant 0 : i32
    %148 = tpu.memref_slice %arg3[%107, %c0_i32_79] : memref<256x128xf32, #tpu.memory_space<any>> -> memref<1x128xf32, #tpu.memory_space<any>>
    %149 = tpu.memref_slice %arg5[%c3_i32_78] : memref<8x!tpu.dma_semaphore, #tpu.memory_space<semaphore_mem>> -> memref<1x!tpu.dma_semaphore, #tpu.memory_space<semaphore_mem>>
    %150 = tpu.memref_squeeze %149 : memref<1x!tpu.dma_semaphore, #tpu.memory_space<semaphore_mem>> -> memref<!tpu.dma_semaphore, #tpu.memory_space<semaphore_mem>>
    tpu.wait_dma2 semaphore(%150 : memref<!tpu.dma_semaphore, #tpu.memory_space<semaphore_mem>>) src(%arg4 : memref<1x128xf32, #tpu.memory_space<vmem>>) dst(%148 : memref<1x128xf32, #tpu.memory_space<any>>)
    %c4_i32_80 = arith.constant 4 : i32
    %c0_i32_81 = arith.constant 0 : i32
    %151 = tpu.memref_slice %arg3[%114, %c0_i32_81] : memref<256x128xf32, #tpu.memory_space<any>> -> memref<1x128xf32, #tpu.memory_space<any>>
    %152 = tpu.memref_slice %arg5[%c4_i32_80] : memref<8x!tpu.dma_semaphore, #tpu.memory_space<semaphore_mem>> -> memref<1x!tpu.dma_semaphore, #tpu.memory_space<semaphore_mem>>
    %153 = tpu.memref_squeeze %152 : memref<1x!tpu.dma_semaphore, #tpu.memory_space<semaphore_mem>> -> memref<!tpu.dma_semaphore, #tpu.memory_space<semaphore_mem>>
    tpu.wait_dma2 semaphore(%153 : memref<!tpu.dma_semaphore, #tpu.memory_space<semaphore_mem>>) src(%arg4 : memref<1x128xf32, #tpu.memory_space<vmem>>) dst(%151 : memref<1x128xf32, #tpu.memory_space<any>>)
    %c5_i32_82 = arith.constant 5 : i32
    %c0_i32_83 = arith.constant 0 : i32
    %154 = tpu.memref_slice %arg3[%121, %c0_i32_83] : memref<256x128xf32, #tpu.memory_space<any>> -> memref<1x128xf32, #tpu.memory_space<any>>
    %155 = tpu.memref_slice %arg5[%c5_i32_82] : memref<8x!tpu.dma_semaphore, #tpu.memory_space<semaphore_mem>> -> memref<1x!tpu.dma_semaphore, #tpu.memory_space<semaphore_mem>>
    %156 = tpu.memref_squeeze %155 : memref<1x!tpu.dma_semaphore, #tpu.memory_space<semaphore_mem>> -> memref<!tpu.dma_semaphore, #tpu.memory_space<semaphore_mem>>
    tpu.wait_dma2 semaphore(%156 : memref<!tpu.dma_semaphore, #tpu.memory_space<semaphore_mem>>) src(%arg4 : memref<1x128xf32, #tpu.memory_space<vmem>>) dst(%154 : memref<1x128xf32, #tpu.memory_space<any>>)
    %c6_i32_84 = arith.constant 6 : i32
    %c0_i32_85 = arith.constant 0 : i32
    %157 = tpu.memref_slice %arg3[%128, %c0_i32_85] : memref<256x128xf32, #tpu.memory_space<any>> -> memref<1x128xf32, #tpu.memory_space<any>>
    %158 = tpu.memref_slice %arg5[%c6_i32_84] : memref<8x!tpu.dma_semaphore, #tpu.memory_space<semaphore_mem>> -> memref<1x!tpu.dma_semaphore, #tpu.memory_space<semaphore_mem>>
    %159 = tpu.memref_squeeze %158 : memref<1x!tpu.dma_semaphore, #tpu.memory_space<semaphore_mem>> -> memref<!tpu.dma_semaphore, #tpu.memory_space<semaphore_mem>>
    tpu.wait_dma2 semaphore(%159 : memref<!tpu.dma_semaphore, #tpu.memory_space<semaphore_mem>>) src(%arg4 : memref<1x128xf32, #tpu.memory_space<vmem>>) dst(%157 : memref<1x128xf32, #tpu.memory_space<any>>)
    %c7_i32_86 = arith.constant 7 : i32
    %c0_i32_87 = arith.constant 0 : i32
    %160 = tpu.memref_slice %arg3[%135, %c0_i32_87] : memref<256x128xf32, #tpu.memory_space<any>> -> memref<1x128xf32, #tpu.memory_space<any>>
    %161 = tpu.memref_slice %arg5[%c7_i32_86] : memref<8x!tpu.dma_semaphore, #tpu.memory_space<semaphore_mem>> -> memref<1x!tpu.dma_semaphore, #tpu.memory_space<semaphore_mem>>
    %162 = tpu.memref_squeeze %161 : memref<1x!tpu.dma_semaphore, #tpu.memory_space<semaphore_mem>> -> memref<!tpu.dma_semaphore, #tpu.memory_space<semaphore_mem>>
    tpu.wait_dma2 semaphore(%162 : memref<!tpu.dma_semaphore, #tpu.memory_space<semaphore_mem>>) src(%arg4 : memref<1x128xf32, #tpu.memory_space<vmem>>) dst(%160 : memref<1x128xf32, #tpu.memory_space<any>>)
    %c16_i32 = arith.constant 16 : i32
    %163 = arith.addi %2, %c16_i32 : i32
    %c0_i32_88 = arith.constant 0 : i32
    %164 = arith.addi %163, %c0_i32_88 : i32
    %165 = arith.index_cast %164 : i32 to index
    %166 = memref.load %arg1[%165] : memref<64xi32, #tpu.memory_space<smem>>
    %c0_i32_89 = arith.constant 0 : i32
    %c0_i32_90 = arith.constant 0 : i32
    %167 = tpu.memref_slice %arg3[%166, %c0_i32_90] : memref<256x128xf32, #tpu.memory_space<any>> -> memref<1x128xf32, #tpu.memory_space<any>>
    %168 = tpu.memref_slice %arg5[%c0_i32_89] : memref<8x!tpu.dma_semaphore, #tpu.memory_space<semaphore_mem>> -> memref<1x!tpu.dma_semaphore, #tpu.memory_space<semaphore_mem>>
    %169 = tpu.memref_squeeze %168 : memref<1x!tpu.dma_semaphore, #tpu.memory_space<semaphore_mem>> -> memref<!tpu.dma_semaphore, #tpu.memory_space<semaphore_mem>>
    tpu.enqueue_dma source(%arg4 : memref<1x128xf32, #tpu.memory_space<vmem>>) target(%167 : memref<1x128xf32, #tpu.memory_space<any>>) target_semaphore(%169 : memref<!tpu.dma_semaphore, #tpu.memory_space<semaphore_mem>>)
    %c16_i32_91 = arith.constant 16 : i32
    %170 = arith.addi %2, %c16_i32_91 : i32
    %c1_i32_92 = arith.constant 1 : i32
    %171 = arith.addi %170, %c1_i32_92 : i32
    %172 = arith.index_cast %171 : i32 to index
    %173 = memref.load %arg1[%172] : memref<64xi32, #tpu.memory_space<smem>>
    %c1_i32_93 = arith.constant 1 : i32
    %c0_i32_94 = arith.constant 0 : i32
    %174 = tpu.memref_slice %arg3[%173, %c0_i32_94] : memref<256x128xf32, #tpu.memory_space<any>> -> memref<1x128xf32, #tpu.memory_space<any>>
    %175 = tpu.memref_slice %arg5[%c1_i32_93] : memref<8x!tpu.dma_semaphore, #tpu.memory_space<semaphore_mem>> -> memref<1x!tpu.dma_semaphore, #tpu.memory_space<semaphore_mem>>
    %176 = tpu.memref_squeeze %175 : memref<1x!tpu.dma_semaphore, #tpu.memory_space<semaphore_mem>> -> memref<!tpu.dma_semaphore, #tpu.memory_space<semaphore_mem>>
    tpu.enqueue_dma source(%arg4 : memref<1x128xf32, #tpu.memory_space<vmem>>) target(%174 : memref<1x128xf32, #tpu.memory_space<any>>) target_semaphore(%176 : memref<!tpu.dma_semaphore, #tpu.memory_space<semaphore_mem>>)
    %c16_i32_95 = arith.constant 16 : i32
    %177 = arith.addi %2, %c16_i32_95 : i32
    %c2_i32_96 = arith.constant 2 : i32
    %178 = arith.addi %177, %c2_i32_96 : i32
    %179 = arith.index_cast %178 : i32 to index
    %180 = memref.load %arg1[%179] : memref<64xi32, #tpu.memory_space<smem>>
    %c2_i32_97 = arith.constant 2 : i32
    %c0_i32_98 = arith.constant 0 : i32
    %181 = tpu.memref_slice %arg3[%180, %c0_i32_98] : memref<256x128xf32, #tpu.memory_space<any>> -> memref<1x128xf32, #tpu.memory_space<any>>
    %182 = tpu.memref_slice %arg5[%c2_i32_97] : memref<8x!tpu.dma_semaphore, #tpu.memory_space<semaphore_mem>> -> memref<1x!tpu.dma_semaphore, #tpu.memory_space<semaphore_mem>>
    %183 = tpu.memref_squeeze %182 : memref<1x!tpu.dma_semaphore, #tpu.memory_space<semaphore_mem>> -> memref<!tpu.dma_semaphore, #tpu.memory_space<semaphore_mem>>
    tpu.enqueue_dma source(%arg4 : memref<1x128xf32, #tpu.memory_space<vmem>>) target(%181 : memref<1x128xf32, #tpu.memory_space<any>>) target_semaphore(%183 : memref<!tpu.dma_semaphore, #tpu.memory_space<semaphore_mem>>)
    %c16_i32_99 = arith.constant 16 : i32
    %184 = arith.addi %2, %c16_i32_99 : i32
    %c3_i32_100 = arith.constant 3 : i32
    %185 = arith.addi %184, %c3_i32_100 : i32
    %186 = arith.index_cast %185 : i32 to index
    %187 = memref.load %arg1[%186] : memref<64xi32, #tpu.memory_space<smem>>
    %c3_i32_101 = arith.constant 3 : i32
    %c0_i32_102 = arith.constant 0 : i32
    %188 = tpu.memref_slice %arg3[%187, %c0_i32_102] : memref<256x128xf32, #tpu.memory_space<any>> -> memref<1x128xf32, #tpu.memory_space<any>>
    %189 = tpu.memref_slice %arg5[%c3_i32_101] : memref<8x!tpu.dma_semaphore, #tpu.memory_space<semaphore_mem>> -> memref<1x!tpu.dma_semaphore, #tpu.memory_space<semaphore_mem>>
    %190 = tpu.memref_squeeze %189 : memref<1x!tpu.dma_semaphore, #tpu.memory_space<semaphore_mem>> -> memref<!tpu.dma_semaphore, #tpu.memory_space<semaphore_mem>>
    tpu.enqueue_dma source(%arg4 : memref<1x128xf32, #tpu.memory_space<vmem>>) target(%188 : memref<1x128xf32, #tpu.memory_space<any>>) target_semaphore(%190 : memref<!tpu.dma_semaphore, #tpu.memory_space<semaphore_mem>>)
    %c16_i32_103 = arith.constant 16 : i32
    %191 = arith.addi %2, %c16_i32_103 : i32
    %c4_i32_104 = arith.constant 4 : i32
    %192 = arith.addi %191, %c4_i32_104 : i32
    %193 = arith.index_cast %192 : i32 to index
    %194 = memref.load %arg1[%193] : memref<64xi32, #tpu.memory_space<smem>>
    %c4_i32_105 = arith.constant 4 : i32
    %c0_i32_106 = arith.constant 0 : i32
    %195 = tpu.memref_slice %arg3[%194, %c0_i32_106] : memref<256x128xf32, #tpu.memory_space<any>> -> memref<1x128xf32, #tpu.memory_space<any>>
    %196 = tpu.memref_slice %arg5[%c4_i32_105] : memref<8x!tpu.dma_semaphore, #tpu.memory_space<semaphore_mem>> -> memref<1x!tpu.dma_semaphore, #tpu.memory_space<semaphore_mem>>
    %197 = tpu.memref_squeeze %196 : memref<1x!tpu.dma_semaphore, #tpu.memory_space<semaphore_mem>> -> memref<!tpu.dma_semaphore, #tpu.memory_space<semaphore_mem>>
    tpu.enqueue_dma source(%arg4 : memref<1x128xf32, #tpu.memory_space<vmem>>) target(%195 : memref<1x128xf32, #tpu.memory_space<any>>) target_semaphore(%197 : memref<!tpu.dma_semaphore, #tpu.memory_space<semaphore_mem>>)
    %c16_i32_107 = arith.constant 16 : i32
    %198 = arith.addi %2, %c16_i32_107 : i32
    %c5_i32_108 = arith.constant 5 : i32
    %199 = arith.addi %198, %c5_i32_108 : i32
    %200 = arith.index_cast %199 : i32 to index
    %201 = memref.load %arg1[%200] : memref<64xi32, #tpu.memory_space<smem>>
    %c5_i32_109 = arith.constant 5 : i32
    %c0_i32_110 = arith.constant 0 : i32
    %202 = tpu.memref_slice %arg3[%201, %c0_i32_110] : memref<256x128xf32, #tpu.memory_space<any>> -> memref<1x128xf32, #tpu.memory_space<any>>
    %203 = tpu.memref_slice %arg5[%c5_i32_109] : memref<8x!tpu.dma_semaphore, #tpu.memory_space<semaphore_mem>> -> memref<1x!tpu.dma_semaphore, #tpu.memory_space<semaphore_mem>>
    %204 = tpu.memref_squeeze %203 : memref<1x!tpu.dma_semaphore, #tpu.memory_space<semaphore_mem>> -> memref<!tpu.dma_semaphore, #tpu.memory_space<semaphore_mem>>
    tpu.enqueue_dma source(%arg4 : memref<1x128xf32, #tpu.memory_space<vmem>>) target(%202 : memref<1x128xf32, #tpu.memory_space<any>>) target_semaphore(%204 : memref<!tpu.dma_semaphore, #tpu.memory_space<semaphore_mem>>)
    %c16_i32_111 = arith.constant 16 : i32
    %205 = arith.addi %2, %c16_i32_111 : i32
    %c6_i32_112 = arith.constant 6 : i32
    %206 = arith.addi %205, %c6_i32_112 : i32
    %207 = arith.index_cast %206 : i32 to index
    %208 = memref.load %arg1[%207] : memref<64xi32, #tpu.memory_space<smem>>
    %c6_i32_113 = arith.constant 6 : i32
    %c0_i32_114 = arith.constant 0 : i32
    %209 = tpu.memref_slice %arg3[%208, %c0_i32_114] : memref<256x128xf32, #tpu.memory_space<any>> -> memref<1x128xf32, #tpu.memory_space<any>>
    %210 = tpu.memref_slice %arg5[%c6_i32_113] : memref<8x!tpu.dma_semaphore, #tpu.memory_space<semaphore_mem>> -> memref<1x!tpu.dma_semaphore, #tpu.memory_space<semaphore_mem>>
    %211 = tpu.memref_squeeze %210 : memref<1x!tpu.dma_semaphore, #tpu.memory_space<semaphore_mem>> -> memref<!tpu.dma_semaphore, #tpu.memory_space<semaphore_mem>>
    tpu.enqueue_dma source(%arg4 : memref<1x128xf32, #tpu.memory_space<vmem>>) target(%209 : memref<1x128xf32, #tpu.memory_space<any>>) target_semaphore(%211 : memref<!tpu.dma_semaphore, #tpu.memory_space<semaphore_mem>>)
    %c16_i32_115 = arith.constant 16 : i32
    %212 = arith.addi %2, %c16_i32_115 : i32
    %c7_i32_116 = arith.constant 7 : i32
    %213 = arith.addi %212, %c7_i32_116 : i32
    %214 = arith.index_cast %213 : i32 to index
    %215 = memref.load %arg1[%214] : memref<64xi32, #tpu.memory_space<smem>>
    %c7_i32_117 = arith.constant 7 : i32
    %c0_i32_118 = arith.constant 0 : i32
    %216 = tpu.memref_slice %arg3[%215, %c0_i32_118] : memref<256x128xf32, #tpu.memory_space<any>> -> memref<1x128xf32, #tpu.memory_space<any>>
    %217 = tpu.memref_slice %arg5[%c7_i32_117] : memref<8x!tpu.dma_semaphore, #tpu.memory_space<semaphore_mem>> -> memref<1x!tpu.dma_semaphore, #tpu.memory_space<semaphore_mem>>
    %218 = tpu.memref_squeeze %217 : memref<1x!tpu.dma_semaphore, #tpu.memory_space<semaphore_mem>> -> memref<!tpu.dma_semaphore, #tpu.memory_space<semaphore_mem>>
    tpu.enqueue_dma source(%arg4 : memref<1x128xf32, #tpu.memory_space<vmem>>) target(%216 : memref<1x128xf32, #tpu.memory_space<any>>) target_semaphore(%218 : memref<!tpu.dma_semaphore, #tpu.memory_space<semaphore_mem>>)
    %c0_i32_119 = arith.constant 0 : i32
    %c0_i32_120 = arith.constant 0 : i32
    %219 = tpu.memref_slice %arg3[%166, %c0_i32_120] : memref<256x128xf32, #tpu.memory_space<any>> -> memref<1x128xf32, #tpu.memory_space<any>>
    %220 = tpu.memref_slice %arg5[%c0_i32_119] : memref<8x!tpu.dma_semaphore, #tpu.memory_space<semaphore_mem>> -> memref<1x!tpu.dma_semaphore, #tpu.memory_space<semaphore_mem>>
    %221 = tpu.memref_squeeze %220 : memref<1x!tpu.dma_semaphore, #tpu.memory_space<semaphore_mem>> -> memref<!tpu.dma_semaphore, #tpu.memory_space<semaphore_mem>>
    tpu.wait_dma2 semaphore(%221 : memref<!tpu.dma_semaphore, #tpu.memory_space<semaphore_mem>>) src(%arg4 : memref<1x128xf32, #tpu.memory_space<vmem>>) dst(%219 : memref<1x128xf32, #tpu.memory_space<any>>)
    %c1_i32_121 = arith.constant 1 : i32
    %c0_i32_122 = arith.constant 0 : i32
    %222 = tpu.memref_slice %arg3[%173, %c0_i32_122] : memref<256x128xf32, #tpu.memory_space<any>> -> memref<1x128xf32, #tpu.memory_space<any>>
    %223 = tpu.memref_slice %arg5[%c1_i32_121] : memref<8x!tpu.dma_semaphore, #tpu.memory_space<semaphore_mem>> -> memref<1x!tpu.dma_semaphore, #tpu.memory_space<semaphore_mem>>
    %224 = tpu.memref_squeeze %223 : memref<1x!tpu.dma_semaphore, #tpu.memory_space<semaphore_mem>> -> memref<!tpu.dma_semaphore, #tpu.memory_space<semaphore_mem>>
    tpu.wait_dma2 semaphore(%224 : memref<!tpu.dma_semaphore, #tpu.memory_space<semaphore_mem>>) src(%arg4 : memref<1x128xf32, #tpu.memory_space<vmem>>) dst(%222 : memref<1x128xf32, #tpu.memory_space<any>>)
    %c2_i32_123 = arith.constant 2 : i32
    %c0_i32_124 = arith.constant 0 : i32
    %225 = tpu.memref_slice %arg3[%180, %c0_i32_124] : memref<256x128xf32, #tpu.memory_space<any>> -> memref<1x128xf32, #tpu.memory_space<any>>
    %226 = tpu.memref_slice %arg5[%c2_i32_123] : memref<8x!tpu.dma_semaphore, #tpu.memory_space<semaphore_mem>> -> memref<1x!tpu.dma_semaphore, #tpu.memory_space<semaphore_mem>>
    %227 = tpu.memref_squeeze %226 : memref<1x!tpu.dma_semaphore, #tpu.memory_space<semaphore_mem>> -> memref<!tpu.dma_semaphore, #tpu.memory_space<semaphore_mem>>
    tpu.wait_dma2 semaphore(%227 : memref<!tpu.dma_semaphore, #tpu.memory_space<semaphore_mem>>) src(%arg4 : memref<1x128xf32, #tpu.memory_space<vmem>>) dst(%225 : memref<1x128xf32, #tpu.memory_space<any>>)
    %c3_i32_125 = arith.constant 3 : i32
    %c0_i32_126 = arith.constant 0 : i32
    %228 = tpu.memref_slice %arg3[%187, %c0_i32_126] : memref<256x128xf32, #tpu.memory_space<any>> -> memref<1x128xf32, #tpu.memory_space<any>>
    %229 = tpu.memref_slice %arg5[%c3_i32_125] : memref<8x!tpu.dma_semaphore, #tpu.memory_space<semaphore_mem>> -> memref<1x!tpu.dma_semaphore, #tpu.memory_space<semaphore_mem>>
    %230 = tpu.memref_squeeze %229 : memref<1x!tpu.dma_semaphore, #tpu.memory_space<semaphore_mem>> -> memref<!tpu.dma_semaphore, #tpu.memory_space<semaphore_mem>>
    tpu.wait_dma2 semaphore(%230 : memref<!tpu.dma_semaphore, #tpu.memory_space<semaphore_mem>>) src(%arg4 : memref<1x128xf32, #tpu.memory_space<vmem>>) dst(%228 : memref<1x128xf32, #tpu.memory_space<any>>)
    %c4_i32_127 = arith.constant 4 : i32
    %c0_i32_128 = arith.constant 0 : i32
    %231 = tpu.memref_slice %arg3[%194, %c0_i32_128] : memref<256x128xf32, #tpu.memory_space<any>> -> memref<1x128xf32, #tpu.memory_space<any>>
    %232 = tpu.memref_slice %arg5[%c4_i32_127] : memref<8x!tpu.dma_semaphore, #tpu.memory_space<semaphore_mem>> -> memref<1x!tpu.dma_semaphore, #tpu.memory_space<semaphore_mem>>
    %233 = tpu.memref_squeeze %232 : memref<1x!tpu.dma_semaphore, #tpu.memory_space<semaphore_mem>> -> memref<!tpu.dma_semaphore, #tpu.memory_space<semaphore_mem>>
    tpu.wait_dma2 semaphore(%233 : memref<!tpu.dma_semaphore, #tpu.memory_space<semaphore_mem>>) src(%arg4 : memref<1x128xf32, #tpu.memory_space<vmem>>) dst(%231 : memref<1x128xf32, #tpu.memory_space<any>>)
    %c5_i32_129 = arith.constant 5 : i32
    %c0_i32_130 = arith.constant 0 : i32
    %234 = tpu.memref_slice %arg3[%201, %c0_i32_130] : memref<256x128xf32, #tpu.memory_space<any>> -> memref<1x128xf32, #tpu.memory_space<any>>
    %235 = tpu.memref_slice %arg5[%c5_i32_129] : memref<8x!tpu.dma_semaphore, #tpu.memory_space<semaphore_mem>> -> memref<1x!tpu.dma_semaphore, #tpu.memory_space<semaphore_mem>>
    %236 = tpu.memref_squeeze %235 : memref<1x!tpu.dma_semaphore, #tpu.memory_space<semaphore_mem>> -> memref<!tpu.dma_semaphore, #tpu.memory_space<semaphore_mem>>
    tpu.wait_dma2 semaphore(%236 : memref<!tpu.dma_semaphore, #tpu.memory_space<semaphore_mem>>) src(%arg4 : memref<1x128xf32, #tpu.memory_space<vmem>>) dst(%234 : memref<1x128xf32, #tpu.memory_space<any>>)
    %c6_i32_131 = arith.constant 6 : i32
    %c0_i32_132 = arith.constant 0 : i32
    %237 = tpu.memref_slice %arg3[%208, %c0_i32_132] : memref<256x128xf32, #tpu.memory_space<any>> -> memref<1x128xf32, #tpu.memory_space<any>>
    %238 = tpu.memref_slice %arg5[%c6_i32_131] : memref<8x!tpu.dma_semaphore, #tpu.memory_space<semaphore_mem>> -> memref<1x!tpu.dma_semaphore, #tpu.memory_space<semaphore_mem>>
    %239 = tpu.memref_squeeze %238 : memref<1x!tpu.dma_semaphore, #tpu.memory_space<semaphore_mem>> -> memref<!tpu.dma_semaphore, #tpu.memory_space<semaphore_mem>>
    tpu.wait_dma2 semaphore(%239 : memref<!tpu.dma_semaphore, #tpu.memory_space<semaphore_mem>>) src(%arg4 : memref<1x128xf32, #tpu.memory_space<vmem>>) dst(%237 : memref<1x128xf32, #tpu.memory_space<any>>)
    %c7_i32_133 = arith.constant 7 : i32
    %c0_i32_134 = arith.constant 0 : i32
    %240 = tpu.memref_slice %arg3[%215, %c0_i32_134] : memref<256x128xf32, #tpu.memory_space<any>> -> memref<1x128xf32, #tpu.memory_space<any>>
    %241 = tpu.memref_slice %arg5[%c7_i32_133] : memref<8x!tpu.dma_semaphore, #tpu.memory_space<semaphore_mem>> -> memref<1x!tpu.dma_semaphore, #tpu.memory_space<semaphore_mem>>
    %242 = tpu.memref_squeeze %241 : memref<1x!tpu.dma_semaphore, #tpu.memory_space<semaphore_mem>> -> memref<!tpu.dma_semaphore, #tpu.memory_space<semaphore_mem>>
    tpu.wait_dma2 semaphore(%242 : memref<!tpu.dma_semaphore, #tpu.memory_space<semaphore_mem>>) src(%arg4 : memref<1x128xf32, #tpu.memory_space<vmem>>) dst(%240 : memref<1x128xf32, #tpu.memory_space<any>>)
    %c24_i32 = arith.constant 24 : i32
    %243 = arith.addi %2, %c24_i32 : i32
    %c0_i32_135 = arith.constant 0 : i32
    %244 = arith.addi %243, %c0_i32_135 : i32
    %245 = arith.index_cast %244 : i32 to index
    %246 = memref.load %arg1[%245] : memref<64xi32, #tpu.memory_space<smem>>
    %c0_i32_136 = arith.constant 0 : i32
    %c0_i32_137 = arith.constant 0 : i32
    %247 = tpu.memref_slice %arg3[%246, %c0_i32_137] : memref<256x128xf32, #tpu.memory_space<any>> -> memref<1x128xf32, #tpu.memory_space<any>>
    %248 = tpu.memref_slice %arg5[%c0_i32_136] : memref<8x!tpu.dma_semaphore, #tpu.memory_space<semaphore_mem>> -> memref<1x!tpu.dma_semaphore, #tpu.memory_space<semaphore_mem>>
    %249 = tpu.memref_squeeze %248 : memref<1x!tpu.dma_semaphore, #tpu.memory_space<semaphore_mem>> -> memref<!tpu.dma_semaphore, #tpu.memory_space<semaphore_mem>>
    tpu.enqueue_dma source(%arg4 : memref<1x128xf32, #tpu.memory_space<vmem>>) target(%247 : memref<1x128xf32, #tpu.memory_space<any>>) target_semaphore(%249 : memref<!tpu.dma_semaphore, #tpu.memory_space<semaphore_mem>>)
    %c24_i32_138 = arith.constant 24 : i32
    %250 = arith.addi %2, %c24_i32_138 : i32
    %c1_i32_139 = arith.constant 1 : i32
    %251 = arith.addi %250, %c1_i32_139 : i32
    %252 = arith.index_cast %251 : i32 to index
    %253 = memref.load %arg1[%252] : memref<64xi32, #tpu.memory_space<smem>>
    %c1_i32_140 = arith.constant 1 : i32
    %c0_i32_141 = arith.constant 0 : i32
    %254 = tpu.memref_slice %arg3[%253, %c0_i32_141] : memref<256x128xf32, #tpu.memory_space<any>> -> memref<1x128xf32, #tpu.memory_space<any>>
    %255 = tpu.memref_slice %arg5[%c1_i32_140] : memref<8x!tpu.dma_semaphore, #tpu.memory_space<semaphore_mem>> -> memref<1x!tpu.dma_semaphore, #tpu.memory_space<semaphore_mem>>
    %256 = tpu.memref_squeeze %255 : memref<1x!tpu.dma_semaphore, #tpu.memory_space<semaphore_mem>> -> memref<!tpu.dma_semaphore, #tpu.memory_space<semaphore_mem>>
    tpu.enqueue_dma source(%arg4 : memref<1x128xf32, #tpu.memory_space<vmem>>) target(%254 : memref<1x128xf32, #tpu.memory_space<any>>) target_semaphore(%256 : memref<!tpu.dma_semaphore, #tpu.memory_space<semaphore_mem>>)
    %c24_i32_142 = arith.constant 24 : i32
    %257 = arith.addi %2, %c24_i32_142 : i32
    %c2_i32_143 = arith.constant 2 : i32
    %258 = arith.addi %257, %c2_i32_143 : i32
    %259 = arith.index_cast %258 : i32 to index
    %260 = memref.load %arg1[%259] : memref<64xi32, #tpu.memory_space<smem>>
    %c2_i32_144 = arith.constant 2 : i32
    %c0_i32_145 = arith.constant 0 : i32
    %261 = tpu.memref_slice %arg3[%260, %c0_i32_145] : memref<256x128xf32, #tpu.memory_space<any>> -> memref<1x128xf32, #tpu.memory_space<any>>
    %262 = tpu.memref_slice %arg5[%c2_i32_144] : memref<8x!tpu.dma_semaphore, #tpu.memory_space<semaphore_mem>> -> memref<1x!tpu.dma_semaphore, #tpu.memory_space<semaphore_mem>>
    %263 = tpu.memref_squeeze %262 : memref<1x!tpu.dma_semaphore, #tpu.memory_space<semaphore_mem>> -> memref<!tpu.dma_semaphore, #tpu.memory_space<semaphore_mem>>
    tpu.enqueue_dma source(%arg4 : memref<1x128xf32, #tpu.memory_space<vmem>>) target(%261 : memref<1x128xf32, #tpu.memory_space<any>>) target_semaphore(%263 : memref<!tpu.dma_semaphore, #tpu.memory_space<semaphore_mem>>)
    %c24_i32_146 = arith.constant 24 : i32
    %264 = arith.addi %2, %c24_i32_146 : i32
    %c3_i32_147 = arith.constant 3 : i32
    %265 = arith.addi %264, %c3_i32_147 : i32
    %266 = arith.index_cast %265 : i32 to index
    %267 = memref.load %arg1[%266] : memref<64xi32, #tpu.memory_space<smem>>
    %c3_i32_148 = arith.constant 3 : i32
    %c0_i32_149 = arith.constant 0 : i32
    %268 = tpu.memref_slice %arg3[%267, %c0_i32_149] : memref<256x128xf32, #tpu.memory_space<any>> -> memref<1x128xf32, #tpu.memory_space<any>>
    %269 = tpu.memref_slice %arg5[%c3_i32_148] : memref<8x!tpu.dma_semaphore, #tpu.memory_space<semaphore_mem>> -> memref<1x!tpu.dma_semaphore, #tpu.memory_space<semaphore_mem>>
    %270 = tpu.memref_squeeze %269 : memref<1x!tpu.dma_semaphore, #tpu.memory_space<semaphore_mem>> -> memref<!tpu.dma_semaphore, #tpu.memory_space<semaphore_mem>>
    tpu.enqueue_dma source(%arg4 : memref<1x128xf32, #tpu.memory_space<vmem>>) target(%268 : memref<1x128xf32, #tpu.memory_space<any>>) target_semaphore(%270 : memref<!tpu.dma_semaphore, #tpu.memory_space<semaphore_mem>>)
    %c24_i32_150 = arith.constant 24 : i32
    %271 = arith.addi %2, %c24_i32_150 : i32
    %c4_i32_151 = arith.constant 4 : i32
    %272 = arith.addi %271, %c4_i32_151 : i32
    %273 = arith.index_cast %272 : i32 to index
    %274 = memref.load %arg1[%273] : memref<64xi32, #tpu.memory_space<smem>>
    %c4_i32_152 = arith.constant 4 : i32
    %c0_i32_153 = arith.constant 0 : i32
    %275 = tpu.memref_slice %arg3[%274, %c0_i32_153] : memref<256x128xf32, #tpu.memory_space<any>> -> memref<1x128xf32, #tpu.memory_space<any>>
    %276 = tpu.memref_slice %arg5[%c4_i32_152] : memref<8x!tpu.dma_semaphore, #tpu.memory_space<semaphore_mem>> -> memref<1x!tpu.dma_semaphore, #tpu.memory_space<semaphore_mem>>
    %277 = tpu.memref_squeeze %276 : memref<1x!tpu.dma_semaphore, #tpu.memory_space<semaphore_mem>> -> memref<!tpu.dma_semaphore, #tpu.memory_space<semaphore_mem>>
    tpu.enqueue_dma source(%arg4 : memref<1x128xf32, #tpu.memory_space<vmem>>) target(%275 : memref<1x128xf32, #tpu.memory_space<any>>) target_semaphore(%277 : memref<!tpu.dma_semaphore, #tpu.memory_space<semaphore_mem>>)
    %c24_i32_154 = arith.constant 24 : i32
    %278 = arith.addi %2, %c24_i32_154 : i32
    %c5_i32_155 = arith.constant 5 : i32
    %279 = arith.addi %278, %c5_i32_155 : i32
    %280 = arith.index_cast %279 : i32 to index
    %281 = memref.load %arg1[%280] : memref<64xi32, #tpu.memory_space<smem>>
    %c5_i32_156 = arith.constant 5 : i32
    %c0_i32_157 = arith.constant 0 : i32
    %282 = tpu.memref_slice %arg3[%281, %c0_i32_157] : memref<256x128xf32, #tpu.memory_space<any>> -> memref<1x128xf32, #tpu.memory_space<any>>
    %283 = tpu.memref_slice %arg5[%c5_i32_156] : memref<8x!tpu.dma_semaphore, #tpu.memory_space<semaphore_mem>> -> memref<1x!tpu.dma_semaphore, #tpu.memory_space<semaphore_mem>>
    %284 = tpu.memref_squeeze %283 : memref<1x!tpu.dma_semaphore, #tpu.memory_space<semaphore_mem>> -> memref<!tpu.dma_semaphore, #tpu.memory_space<semaphore_mem>>
    tpu.enqueue_dma source(%arg4 : memref<1x128xf32, #tpu.memory_space<vmem>>) target(%282 : memref<1x128xf32, #tpu.memory_space<any>>) target_semaphore(%284 : memref<!tpu.dma_semaphore, #tpu.memory_space<semaphore_mem>>)
    %c24_i32_158 = arith.constant 24 : i32
    %285 = arith.addi %2, %c24_i32_158 : i32
    %c6_i32_159 = arith.constant 6 : i32
    %286 = arith.addi %285, %c6_i32_159 : i32
    %287 = arith.index_cast %286 : i32 to index
    %288 = memref.load %arg1[%287] : memref<64xi32, #tpu.memory_space<smem>>
    %c6_i32_160 = arith.constant 6 : i32
    %c0_i32_161 = arith.constant 0 : i32
    %289 = tpu.memref_slice %arg3[%288, %c0_i32_161] : memref<256x128xf32, #tpu.memory_space<any>> -> memref<1x128xf32, #tpu.memory_space<any>>
    %290 = tpu.memref_slice %arg5[%c6_i32_160] : memref<8x!tpu.dma_semaphore, #tpu.memory_space<semaphore_mem>> -> memref<1x!tpu.dma_semaphore, #tpu.memory_space<semaphore_mem>>
    %291 = tpu.memref_squeeze %290 : memref<1x!tpu.dma_semaphore, #tpu.memory_space<semaphore_mem>> -> memref<!tpu.dma_semaphore, #tpu.memory_space<semaphore_mem>>
    tpu.enqueue_dma source(%arg4 : memref<1x128xf32, #tpu.memory_space<vmem>>) target(%289 : memref<1x128xf32, #tpu.memory_space<any>>) target_semaphore(%291 : memref<!tpu.dma_semaphore, #tpu.memory_space<semaphore_mem>>)
    %c24_i32_162 = arith.constant 24 : i32
    %292 = arith.addi %2, %c24_i32_162 : i32
    %c7_i32_163 = arith.constant 7 : i32
    %293 = arith.addi %292, %c7_i32_163 : i32
    %294 = arith.index_cast %293 : i32 to index
    %295 = memref.load %arg1[%294] : memref<64xi32, #tpu.memory_space<smem>>
    %c7_i32_164 = arith.constant 7 : i32
    %c0_i32_165 = arith.constant 0 : i32
    %296 = tpu.memref_slice %arg3[%295, %c0_i32_165] : memref<256x128xf32, #tpu.memory_space<any>> -> memref<1x128xf32, #tpu.memory_space<any>>
    %297 = tpu.memref_slice %arg5[%c7_i32_164] : memref<8x!tpu.dma_semaphore, #tpu.memory_space<semaphore_mem>> -> memref<1x!tpu.dma_semaphore, #tpu.memory_space<semaphore_mem>>
    %298 = tpu.memref_squeeze %297 : memref<1x!tpu.dma_semaphore, #tpu.memory_space<semaphore_mem>> -> memref<!tpu.dma_semaphore, #tpu.memory_space<semaphore_mem>>
    tpu.enqueue_dma source(%arg4 : memref<1x128xf32, #tpu.memory_space<vmem>>) target(%296 : memref<1x128xf32, #tpu.memory_space<any>>) target_semaphore(%298 : memref<!tpu.dma_semaphore, #tpu.memory_space<semaphore_mem>>)
    %c0_i32_166 = arith.constant 0 : i32
    %c0_i32_167 = arith.constant 0 : i32
    %299 = tpu.memref_slice %arg3[%246, %c0_i32_167] : memref<256x128xf32, #tpu.memory_space<any>> -> memref<1x128xf32, #tpu.memory_space<any>>
    %300 = tpu.memref_slice %arg5[%c0_i32_166] : memref<8x!tpu.dma_semaphore, #tpu.memory_space<semaphore_mem>> -> memref<1x!tpu.dma_semaphore, #tpu.memory_space<semaphore_mem>>
    %301 = tpu.memref_squeeze %300 : memref<1x!tpu.dma_semaphore, #tpu.memory_space<semaphore_mem>> -> memref<!tpu.dma_semaphore, #tpu.memory_space<semaphore_mem>>
    tpu.wait_dma2 semaphore(%301 : memref<!tpu.dma_semaphore, #tpu.memory_space<semaphore_mem>>) src(%arg4 : memref<1x128xf32, #tpu.memory_space<vmem>>) dst(%299 : memref<1x128xf32, #tpu.memory_space<any>>)
    %c1_i32_168 = arith.constant 1 : i32
    %c0_i32_169 = arith.constant 0 : i32
    %302 = tpu.memref_slice %arg3[%253, %c0_i32_169] : memref<256x128xf32, #tpu.memory_space<any>> -> memref<1x128xf32, #tpu.memory_space<any>>
    %303 = tpu.memref_slice %arg5[%c1_i32_168] : memref<8x!tpu.dma_semaphore, #tpu.memory_space<semaphore_mem>> -> memref<1x!tpu.dma_semaphore, #tpu.memory_space<semaphore_mem>>
    %304 = tpu.memref_squeeze %303 : memref<1x!tpu.dma_semaphore, #tpu.memory_space<semaphore_mem>> -> memref<!tpu.dma_semaphore, #tpu.memory_space<semaphore_mem>>
    tpu.wait_dma2 semaphore(%304 : memref<!tpu.dma_semaphore, #tpu.memory_space<semaphore_mem>>) src(%arg4 : memref<1x128xf32, #tpu.memory_space<vmem>>) dst(%302 : memref<1x128xf32, #tpu.memory_space<any>>)
    %c2_i32_170 = arith.constant 2 : i32
    %c0_i32_171 = arith.constant 0 : i32
    %305 = tpu.memref_slice %arg3[%260, %c0_i32_171] : memref<256x128xf32, #tpu.memory_space<any>> -> memref<1x128xf32, #tpu.memory_space<any>>
    %306 = tpu.memref_slice %arg5[%c2_i32_170] : memref<8x!tpu.dma_semaphore, #tpu.memory_space<semaphore_mem>> -> memref<1x!tpu.dma_semaphore, #tpu.memory_space<semaphore_mem>>
    %307 = tpu.memref_squeeze %306 : memref<1x!tpu.dma_semaphore, #tpu.memory_space<semaphore_mem>> -> memref<!tpu.dma_semaphore, #tpu.memory_space<semaphore_mem>>
    tpu.wait_dma2 semaphore(%307 : memref<!tpu.dma_semaphore, #tpu.memory_space<semaphore_mem>>) src(%arg4 : memref<1x128xf32, #tpu.memory_space<vmem>>) dst(%305 : memref<1x128xf32, #tpu.memory_space<any>>)
    %c3_i32_172 = arith.constant 3 : i32
    %c0_i32_173 = arith.constant 0 : i32
    %308 = tpu.memref_slice %arg3[%267, %c0_i32_173] : memref<256x128xf32, #tpu.memory_space<any>> -> memref<1x128xf32, #tpu.memory_space<any>>
    %309 = tpu.memref_slice %arg5[%c3_i32_172] : memref<8x!tpu.dma_semaphore, #tpu.memory_space<semaphore_mem>> -> memref<1x!tpu.dma_semaphore, #tpu.memory_space<semaphore_mem>>
    %310 = tpu.memref_squeeze %309 : memref<1x!tpu.dma_semaphore, #tpu.memory_space<semaphore_mem>> -> memref<!tpu.dma_semaphore, #tpu.memory_space<semaphore_mem>>
    tpu.wait_dma2 semaphore(%310 : memref<!tpu.dma_semaphore, #tpu.memory_space<semaphore_mem>>) src(%arg4 : memref<1x128xf32, #tpu.memory_space<vmem>>) dst(%308 : memref<1x128xf32, #tpu.memory_space<any>>)
    %c4_i32_174 = arith.constant 4 : i32
    %c0_i32_175 = arith.constant 0 : i32
    %311 = tpu.memref_slice %arg3[%274, %c0_i32_175] : memref<256x128xf32, #tpu.memory_space<any>> -> memref<1x128xf32, #tpu.memory_space<any>>
    %312 = tpu.memref_slice %arg5[%c4_i32_174] : memref<8x!tpu.dma_semaphore, #tpu.memory_space<semaphore_mem>> -> memref<1x!tpu.dma_semaphore, #tpu.memory_space<semaphore_mem>>
    %313 = tpu.memref_squeeze %312 : memref<1x!tpu.dma_semaphore, #tpu.memory_space<semaphore_mem>> -> memref<!tpu.dma_semaphore, #tpu.memory_space<semaphore_mem>>
    tpu.wait_dma2 semaphore(%313 : memref<!tpu.dma_semaphore, #tpu.memory_space<semaphore_mem>>) src(%arg4 : memref<1x128xf32, #tpu.memory_space<vmem>>) dst(%311 : memref<1x128xf32, #tpu.memory_space<any>>)
    %c5_i32_176 = arith.constant 5 : i32
    %c0_i32_177 = arith.constant 0 : i32
    %314 = tpu.memref_slice %arg3[%281, %c0_i32_177] : memref<256x128xf32, #tpu.memory_space<any>> -> memref<1x128xf32, #tpu.memory_space<any>>
    %315 = tpu.memref_slice %arg5[%c5_i32_176] : memref<8x!tpu.dma_semaphore, #tpu.memory_space<semaphore_mem>> -> memref<1x!tpu.dma_semaphore, #tpu.memory_space<semaphore_mem>>
    %316 = tpu.memref_squeeze %315 : memref<1x!tpu.dma_semaphore, #tpu.memory_space<semaphore_mem>> -> memref<!tpu.dma_semaphore, #tpu.memory_space<semaphore_mem>>
    tpu.wait_dma2 semaphore(%316 : memref<!tpu.dma_semaphore, #tpu.memory_space<semaphore_mem>>) src(%arg4 : memref<1x128xf32, #tpu.memory_space<vmem>>) dst(%314 : memref<1x128xf32, #tpu.memory_space<any>>)
    %c6_i32_178 = arith.constant 6 : i32
    %c0_i32_179 = arith.constant 0 : i32
    %317 = tpu.memref_slice %arg3[%288, %c0_i32_179] : memref<256x128xf32, #tpu.memory_space<any>> -> memref<1x128xf32, #tpu.memory_space<any>>
    %318 = tpu.memref_slice %arg5[%c6_i32_178] : memref<8x!tpu.dma_semaphore, #tpu.memory_space<semaphore_mem>> -> memref<1x!tpu.dma_semaphore, #tpu.memory_space<semaphore_mem>>
    %319 = tpu.memref_squeeze %318 : memref<1x!tpu.dma_semaphore, #tpu.memory_space<semaphore_mem>> -> memref<!tpu.dma_semaphore, #tpu.memory_space<semaphore_mem>>
    tpu.wait_dma2 semaphore(%319 : memref<!tpu.dma_semaphore, #tpu.memory_space<semaphore_mem>>) src(%arg4 : memref<1x128xf32, #tpu.memory_space<vmem>>) dst(%317 : memref<1x128xf32, #tpu.memory_space<any>>)
    %c7_i32_180 = arith.constant 7 : i32
    %c0_i32_181 = arith.constant 0 : i32
    %320 = tpu.memref_slice %arg3[%295, %c0_i32_181] : memref<256x128xf32, #tpu.memory_space<any>> -> memref<1x128xf32, #tpu.memory_space<any>>
    %321 = tpu.memref_slice %arg5[%c7_i32_180] : memref<8x!tpu.dma_semaphore, #tpu.memory_space<semaphore_mem>> -> memref<1x!tpu.dma_semaphore, #tpu.memory_space<semaphore_mem>>
    %322 = tpu.memref_squeeze %321 : memref<1x!tpu.dma_semaphore, #tpu.memory_space<semaphore_mem>> -> memref<!tpu.dma_semaphore, #tpu.memory_space<semaphore_mem>>
    tpu.wait_dma2 semaphore(%322 : memref<!tpu.dma_semaphore, #tpu.memory_space<semaphore_mem>>) src(%arg4 : memref<1x128xf32, #tpu.memory_space<vmem>>) dst(%320 : memref<1x128xf32, #tpu.memory_space<any>>)
    %c32_i32 = arith.constant 32 : i32
    %323 = arith.addi %2, %c32_i32 : i32
    %c0_i32_182 = arith.constant 0 : i32
    %324 = arith.addi %323, %c0_i32_182 : i32
    %325 = arith.index_cast %324 : i32 to index
    %326 = memref.load %arg1[%325] : memref<64xi32, #tpu.memory_space<smem>>
    %c0_i32_183 = arith.constant 0 : i32
    %c0_i32_184 = arith.constant 0 : i32
    %327 = tpu.memref_slice %arg3[%326, %c0_i32_184] : memref<256x128xf32, #tpu.memory_space<any>> -> memref<1x128xf32, #tpu.memory_space<any>>
    %328 = tpu.memref_slice %arg5[%c0_i32_183] : memref<8x!tpu.dma_semaphore, #tpu.memory_space<semaphore_mem>> -> memref<1x!tpu.dma_semaphore, #tpu.memory_space<semaphore_mem>>
    %329 = tpu.memref_squeeze %328 : memref<1x!tpu.dma_semaphore, #tpu.memory_space<semaphore_mem>> -> memref<!tpu.dma_semaphore, #tpu.memory_space<semaphore_mem>>
    tpu.enqueue_dma source(%arg4 : memref<1x128xf32, #tpu.memory_space<vmem>>) target(%327 : memref<1x128xf32, #tpu.memory_space<any>>) target_semaphore(%329 : memref<!tpu.dma_semaphore, #tpu.memory_space<semaphore_mem>>)
    %c32_i32_185 = arith.constant 32 : i32
    %330 = arith.addi %2, %c32_i32_185 : i32
    %c1_i32_186 = arith.constant 1 : i32
    %331 = arith.addi %330, %c1_i32_186 : i32
    %332 = arith.index_cast %331 : i32 to index
    %333 = memref.load %arg1[%332] : memref<64xi32, #tpu.memory_space<smem>>
    %c1_i32_187 = arith.constant 1 : i32
    %c0_i32_188 = arith.constant 0 : i32
    %334 = tpu.memref_slice %arg3[%333, %c0_i32_188] : memref<256x128xf32, #tpu.memory_space<any>> -> memref<1x128xf32, #tpu.memory_space<any>>
    %335 = tpu.memref_slice %arg5[%c1_i32_187] : memref<8x!tpu.dma_semaphore, #tpu.memory_space<semaphore_mem>> -> memref<1x!tpu.dma_semaphore, #tpu.memory_space<semaphore_mem>>
    %336 = tpu.memref_squeeze %335 : memref<1x!tpu.dma_semaphore, #tpu.memory_space<semaphore_mem>> -> memref<!tpu.dma_semaphore, #tpu.memory_space<semaphore_mem>>
    tpu.enqueue_dma source(%arg4 : memref<1x128xf32, #tpu.memory_space<vmem>>) target(%334 : memref<1x128xf32, #tpu.memory_space<any>>) target_semaphore(%336 : memref<!tpu.dma_semaphore, #tpu.memory_space<semaphore_mem>>)
    %c32_i32_189 = arith.constant 32 : i32
    %337 = arith.addi %2, %c32_i32_189 : i32
    %c2_i32_190 = arith.constant 2 : i32
    %338 = arith.addi %337, %c2_i32_190 : i32
    %339 = arith.index_cast %338 : i32 to index
    %340 = memref.load %arg1[%339] : memref<64xi32, #tpu.memory_space<smem>>
    %c2_i32_191 = arith.constant 2 : i32
    %c0_i32_192 = arith.constant 0 : i32
    %341 = tpu.memref_slice %arg3[%340, %c0_i32_192] : memref<256x128xf32, #tpu.memory_space<any>> -> memref<1x128xf32, #tpu.memory_space<any>>
    %342 = tpu.memref_slice %arg5[%c2_i32_191] : memref<8x!tpu.dma_semaphore, #tpu.memory_space<semaphore_mem>> -> memref<1x!tpu.dma_semaphore, #tpu.memory_space<semaphore_mem>>
    %343 = tpu.memref_squeeze %342 : memref<1x!tpu.dma_semaphore, #tpu.memory_space<semaphore_mem>> -> memref<!tpu.dma_semaphore, #tpu.memory_space<semaphore_mem>>
    tpu.enqueue_dma source(%arg4 : memref<1x128xf32, #tpu.memory_space<vmem>>) target(%341 : memref<1x128xf32, #tpu.memory_space<any>>) target_semaphore(%343 : memref<!tpu.dma_semaphore, #tpu.memory_space<semaphore_mem>>)
    %c32_i32_193 = arith.constant 32 : i32
    %344 = arith.addi %2, %c32_i32_193 : i32
    %c3_i32_194 = arith.constant 3 : i32
    %345 = arith.addi %344, %c3_i32_194 : i32
    %346 = arith.index_cast %345 : i32 to index
    %347 = memref.load %arg1[%346] : memref<64xi32, #tpu.memory_space<smem>>
    %c3_i32_195 = arith.constant 3 : i32
    %c0_i32_196 = arith.constant 0 : i32
    %348 = tpu.memref_slice %arg3[%347, %c0_i32_196] : memref<256x128xf32, #tpu.memory_space<any>> -> memref<1x128xf32, #tpu.memory_space<any>>
    %349 = tpu.memref_slice %arg5[%c3_i32_195] : memref<8x!tpu.dma_semaphore, #tpu.memory_space<semaphore_mem>> -> memref<1x!tpu.dma_semaphore, #tpu.memory_space<semaphore_mem>>
    %350 = tpu.memref_squeeze %349 : memref<1x!tpu.dma_semaphore, #tpu.memory_space<semaphore_mem>> -> memref<!tpu.dma_semaphore, #tpu.memory_space<semaphore_mem>>
    tpu.enqueue_dma source(%arg4 : memref<1x128xf32, #tpu.memory_space<vmem>>) target(%348 : memref<1x128xf32, #tpu.memory_space<any>>) target_semaphore(%350 : memref<!tpu.dma_semaphore, #tpu.memory_space<semaphore_mem>>)
    %c32_i32_197 = arith.constant 32 : i32
    %351 = arith.addi %2, %c32_i32_197 : i32
    %c4_i32_198 = arith.constant 4 : i32
    %352 = arith.addi %351, %c4_i32_198 : i32
    %353 = arith.index_cast %352 : i32 to index
    %354 = memref.load %arg1[%353] : memref<64xi32, #tpu.memory_space<smem>>
    %c4_i32_199 = arith.constant 4 : i32
    %c0_i32_200 = arith.constant 0 : i32
    %355 = tpu.memref_slice %arg3[%354, %c0_i32_200] : memref<256x128xf32, #tpu.memory_space<any>> -> memref<1x128xf32, #tpu.memory_space<any>>
    %356 = tpu.memref_slice %arg5[%c4_i32_199] : memref<8x!tpu.dma_semaphore, #tpu.memory_space<semaphore_mem>> -> memref<1x!tpu.dma_semaphore, #tpu.memory_space<semaphore_mem>>
    %357 = tpu.memref_squeeze %356 : memref<1x!tpu.dma_semaphore, #tpu.memory_space<semaphore_mem>> -> memref<!tpu.dma_semaphore, #tpu.memory_space<semaphore_mem>>
    tpu.enqueue_dma source(%arg4 : memref<1x128xf32, #tpu.memory_space<vmem>>) target(%355 : memref<1x128xf32, #tpu.memory_space<any>>) target_semaphore(%357 : memref<!tpu.dma_semaphore, #tpu.memory_space<semaphore_mem>>)
    %c32_i32_201 = arith.constant 32 : i32
    %358 = arith.addi %2, %c32_i32_201 : i32
    %c5_i32_202 = arith.constant 5 : i32
    %359 = arith.addi %358, %c5_i32_202 : i32
    %360 = arith.index_cast %359 : i32 to index
    %361 = memref.load %arg1[%360] : memref<64xi32, #tpu.memory_space<smem>>
    %c5_i32_203 = arith.constant 5 : i32
    %c0_i32_204 = arith.constant 0 : i32
    %362 = tpu.memref_slice %arg3[%361, %c0_i32_204] : memref<256x128xf32, #tpu.memory_space<any>> -> memref<1x128xf32, #tpu.memory_space<any>>
    %363 = tpu.memref_slice %arg5[%c5_i32_203] : memref<8x!tpu.dma_semaphore, #tpu.memory_space<semaphore_mem>> -> memref<1x!tpu.dma_semaphore, #tpu.memory_space<semaphore_mem>>
    %364 = tpu.memref_squeeze %363 : memref<1x!tpu.dma_semaphore, #tpu.memory_space<semaphore_mem>> -> memref<!tpu.dma_semaphore, #tpu.memory_space<semaphore_mem>>
    tpu.enqueue_dma source(%arg4 : memref<1x128xf32, #tpu.memory_space<vmem>>) target(%362 : memref<1x128xf32, #tpu.memory_space<any>>) target_semaphore(%364 : memref<!tpu.dma_semaphore, #tpu.memory_space<semaphore_mem>>)
    %c32_i32_205 = arith.constant 32 : i32
    %365 = arith.addi %2, %c32_i32_205 : i32
    %c6_i32_206 = arith.constant 6 : i32
    %366 = arith.addi %365, %c6_i32_206 : i32
    %367 = arith.index_cast %366 : i32 to index
    %368 = memref.load %arg1[%367] : memref<64xi32, #tpu.memory_space<smem>>
    %c6_i32_207 = arith.constant 6 : i32
    %c0_i32_208 = arith.constant 0 : i32
    %369 = tpu.memref_slice %arg3[%368, %c0_i32_208] : memref<256x128xf32, #tpu.memory_space<any>> -> memref<1x128xf32, #tpu.memory_space<any>>
    %370 = tpu.memref_slice %arg5[%c6_i32_207] : memref<8x!tpu.dma_semaphore, #tpu.memory_space<semaphore_mem>> -> memref<1x!tpu.dma_semaphore, #tpu.memory_space<semaphore_mem>>
    %371 = tpu.memref_squeeze %370 : memref<1x!tpu.dma_semaphore, #tpu.memory_space<semaphore_mem>> -> memref<!tpu.dma_semaphore, #tpu.memory_space<semaphore_mem>>
    tpu.enqueue_dma source(%arg4 : memref<1x128xf32, #tpu.memory_space<vmem>>) target(%369 : memref<1x128xf32, #tpu.memory_space<any>>) target_semaphore(%371 : memref<!tpu.dma_semaphore, #tpu.memory_space<semaphore_mem>>)
    %c32_i32_209 = arith.constant 32 : i32
    %372 = arith.addi %2, %c32_i32_209 : i32
    %c7_i32_210 = arith.constant 7 : i32
    %373 = arith.addi %372, %c7_i32_210 : i32
    %374 = arith.index_cast %373 : i32 to index
    %375 = memref.load %arg1[%374] : memref<64xi32, #tpu.memory_space<smem>>
    %c7_i32_211 = arith.constant 7 : i32
    %c0_i32_212 = arith.constant 0 : i32
    %376 = tpu.memref_slice %arg3[%375, %c0_i32_212] : memref<256x128xf32, #tpu.memory_space<any>> -> memref<1x128xf32, #tpu.memory_space<any>>
    %377 = tpu.memref_slice %arg5[%c7_i32_211] : memref<8x!tpu.dma_semaphore, #tpu.memory_space<semaphore_mem>> -> memref<1x!tpu.dma_semaphore, #tpu.memory_space<semaphore_mem>>
    %378 = tpu.memref_squeeze %377 : memref<1x!tpu.dma_semaphore, #tpu.memory_space<semaphore_mem>> -> memref<!tpu.dma_semaphore, #tpu.memory_space<semaphore_mem>>
    tpu.enqueue_dma source(%arg4 : memref<1x128xf32, #tpu.memory_space<vmem>>) target(%376 : memref<1x128xf32, #tpu.memory_space<any>>) target_semaphore(%378 : memref<!tpu.dma_semaphore, #tpu.memory_space<semaphore_mem>>)
    %c0_i32_213 = arith.constant 0 : i32
    %c0_i32_214 = arith.constant 0 : i32
    %379 = tpu.memref_slice %arg3[%326, %c0_i32_214] : memref<256x128xf32, #tpu.memory_space<any>> -> memref<1x128xf32, #tpu.memory_space<any>>
    %380 = tpu.memref_slice %arg5[%c0_i32_213] : memref<8x!tpu.dma_semaphore, #tpu.memory_space<semaphore_mem>> -> memref<1x!tpu.dma_semaphore, #tpu.memory_space<semaphore_mem>>
    %381 = tpu.memref_squeeze %380 : memref<1x!tpu.dma_semaphore, #tpu.memory_space<semaphore_mem>> -> memref<!tpu.dma_semaphore, #tpu.memory_space<semaphore_mem>>
    tpu.wait_dma2 semaphore(%381 : memref<!tpu.dma_semaphore, #tpu.memory_space<semaphore_mem>>) src(%arg4 : memref<1x128xf32, #tpu.memory_space<vmem>>) dst(%379 : memref<1x128xf32, #tpu.memory_space<any>>)
    %c1_i32_215 = arith.constant 1 : i32
    %c0_i32_216 = arith.constant 0 : i32
    %382 = tpu.memref_slice %arg3[%333, %c0_i32_216] : memref<256x128xf32, #tpu.memory_space<any>> -> memref<1x128xf32, #tpu.memory_space<any>>
    %383 = tpu.memref_slice %arg5[%c1_i32_215] : memref<8x!tpu.dma_semaphore, #tpu.memory_space<semaphore_mem>> -> memref<1x!tpu.dma_semaphore, #tpu.memory_space<semaphore_mem>>
    %384 = tpu.memref_squeeze %383 : memref<1x!tpu.dma_semaphore, #tpu.memory_space<semaphore_mem>> -> memref<!tpu.dma_semaphore, #tpu.memory_space<semaphore_mem>>
    tpu.wait_dma2 semaphore(%384 : memref<!tpu.dma_semaphore, #tpu.memory_space<semaphore_mem>>) src(%arg4 : memref<1x128xf32, #tpu.memory_space<vmem>>) dst(%382 : memref<1x128xf32, #tpu.memory_space<any>>)
    %c2_i32_217 = arith.constant 2 : i32
    %c0_i32_218 = arith.constant 0 : i32
    %385 = tpu.memref_slice %arg3[%340, %c0_i32_218] : memref<256x128xf32, #tpu.memory_space<any>> -> memref<1x128xf32, #tpu.memory_space<any>>
    %386 = tpu.memref_slice %arg5[%c2_i32_217] : memref<8x!tpu.dma_semaphore, #tpu.memory_space<semaphore_mem>> -> memref<1x!tpu.dma_semaphore, #tpu.memory_space<semaphore_mem>>
    %387 = tpu.memref_squeeze %386 : memref<1x!tpu.dma_semaphore, #tpu.memory_space<semaphore_mem>> -> memref<!tpu.dma_semaphore, #tpu.memory_space<semaphore_mem>>
    tpu.wait_dma2 semaphore(%387 : memref<!tpu.dma_semaphore, #tpu.memory_space<semaphore_mem>>) src(%arg4 : memref<1x128xf32, #tpu.memory_space<vmem>>) dst(%385 : memref<1x128xf32, #tpu.memory_space<any>>)
    %c3_i32_219 = arith.constant 3 : i32
    %c0_i32_220 = arith.constant 0 : i32
    %388 = tpu.memref_slice %arg3[%347, %c0_i32_220] : memref<256x128xf32, #tpu.memory_space<any>> -> memref<1x128xf32, #tpu.memory_space<any>>
    %389 = tpu.memref_slice %arg5[%c3_i32_219] : memref<8x!tpu.dma_semaphore, #tpu.memory_space<semaphore_mem>> -> memref<1x!tpu.dma_semaphore, #tpu.memory_space<semaphore_mem>>
    %390 = tpu.memref_squeeze %389 : memref<1x!tpu.dma_semaphore, #tpu.memory_space<semaphore_mem>> -> memref<!tpu.dma_semaphore, #tpu.memory_space<semaphore_mem>>
    tpu.wait_dma2 semaphore(%390 : memref<!tpu.dma_semaphore, #tpu.memory_space<semaphore_mem>>) src(%arg4 : memref<1x128xf32, #tpu.memory_space<vmem>>) dst(%388 : memref<1x128xf32, #tpu.memory_space<any>>)
    %c4_i32_221 = arith.constant 4 : i32
    %c0_i32_222 = arith.constant 0 : i32
    %391 = tpu.memref_slice %arg3[%354, %c0_i32_222] : memref<256x128xf32, #tpu.memory_space<any>> -> memref<1x128xf32, #tpu.memory_space<any>>
    %392 = tpu.memref_slice %arg5[%c4_i32_221] : memref<8x!tpu.dma_semaphore, #tpu.memory_space<semaphore_mem>> -> memref<1x!tpu.dma_semaphore, #tpu.memory_space<semaphore_mem>>
    %393 = tpu.memref_squeeze %392 : memref<1x!tpu.dma_semaphore, #tpu.memory_space<semaphore_mem>> -> memref<!tpu.dma_semaphore, #tpu.memory_space<semaphore_mem>>
    tpu.wait_dma2 semaphore(%393 : memref<!tpu.dma_semaphore, #tpu.memory_space<semaphore_mem>>) src(%arg4 : memref<1x128xf32, #tpu.memory_space<vmem>>) dst(%391 : memref<1x128xf32, #tpu.memory_space<any>>)
    %c5_i32_223 = arith.constant 5 : i32
    %c0_i32_224 = arith.constant 0 : i32
    %394 = tpu.memref_slice %arg3[%361, %c0_i32_224] : memref<256x128xf32, #tpu.memory_space<any>> -> memref<1x128xf32, #tpu.memory_space<any>>
    %395 = tpu.memref_slice %arg5[%c5_i32_223] : memref<8x!tpu.dma_semaphore, #tpu.memory_space<semaphore_mem>> -> memref<1x!tpu.dma_semaphore, #tpu.memory_space<semaphore_mem>>
    %396 = tpu.memref_squeeze %395 : memref<1x!tpu.dma_semaphore, #tpu.memory_space<semaphore_mem>> -> memref<!tpu.dma_semaphore, #tpu.memory_space<semaphore_mem>>
    tpu.wait_dma2 semaphore(%396 : memref<!tpu.dma_semaphore, #tpu.memory_space<semaphore_mem>>) src(%arg4 : memref<1x128xf32, #tpu.memory_space<vmem>>) dst(%394 : memref<1x128xf32, #tpu.memory_space<any>>)
    %c6_i32_225 = arith.constant 6 : i32
    %c0_i32_226 = arith.constant 0 : i32
    %397 = tpu.memref_slice %arg3[%368, %c0_i32_226] : memref<256x128xf32, #tpu.memory_space<any>> -> memref<1x128xf32, #tpu.memory_space<any>>
    %398 = tpu.memref_slice %arg5[%c6_i32_225] : memref<8x!tpu.dma_semaphore, #tpu.memory_space<semaphore_mem>> -> memref<1x!tpu.dma_semaphore, #tpu.memory_space<semaphore_mem>>
    %399 = tpu.memref_squeeze %398 : memref<1x!tpu.dma_semaphore, #tpu.memory_space<semaphore_mem>> -> memref<!tpu.dma_semaphore, #tpu.memory_space<semaphore_mem>>
    tpu.wait_dma2 semaphore(%399 : memref<!tpu.dma_semaphore, #tpu.memory_space<semaphore_mem>>) src(%arg4 : memref<1x128xf32, #tpu.memory_space<vmem>>) dst(%397 : memref<1x128xf32, #tpu.memory_space<any>>)
    %c7_i32_227 = arith.constant 7 : i32
    %c0_i32_228 = arith.constant 0 : i32
    %400 = tpu.memref_slice %arg3[%375, %c0_i32_228] : memref<256x128xf32, #tpu.memory_space<any>> -> memref<1x128xf32, #tpu.memory_space<any>>
    %401 = tpu.memref_slice %arg5[%c7_i32_227] : memref<8x!tpu.dma_semaphore, #tpu.memory_space<semaphore_mem>> -> memref<1x!tpu.dma_semaphore, #tpu.memory_space<semaphore_mem>>
    %402 = tpu.memref_squeeze %401 : memref<1x!tpu.dma_semaphore, #tpu.memory_space<semaphore_mem>> -> memref<!tpu.dma_semaphore, #tpu.memory_space<semaphore_mem>>
    tpu.wait_dma2 semaphore(%402 : memref<!tpu.dma_semaphore, #tpu.memory_space<semaphore_mem>>) src(%arg4 : memref<1x128xf32, #tpu.memory_space<vmem>>) dst(%400 : memref<1x128xf32, #tpu.memory_space<any>>)
    %c40_i32 = arith.constant 40 : i32
    %403 = arith.addi %2, %c40_i32 : i32
    %c0_i32_229 = arith.constant 0 : i32
    %404 = arith.addi %403, %c0_i32_229 : i32
    %405 = arith.index_cast %404 : i32 to index
    %406 = memref.load %arg1[%405] : memref<64xi32, #tpu.memory_space<smem>>
    %c0_i32_230 = arith.constant 0 : i32
    %c0_i32_231 = arith.constant 0 : i32
    %407 = tpu.memref_slice %arg3[%406, %c0_i32_231] : memref<256x128xf32, #tpu.memory_space<any>> -> memref<1x128xf32, #tpu.memory_space<any>>
    %408 = tpu.memref_slice %arg5[%c0_i32_230] : memref<8x!tpu.dma_semaphore, #tpu.memory_space<semaphore_mem>> -> memref<1x!tpu.dma_semaphore, #tpu.memory_space<semaphore_mem>>
    %409 = tpu.memref_squeeze %408 : memref<1x!tpu.dma_semaphore, #tpu.memory_space<semaphore_mem>> -> memref<!tpu.dma_semaphore, #tpu.memory_space<semaphore_mem>>
    tpu.enqueue_dma source(%arg4 : memref<1x128xf32, #tpu.memory_space<vmem>>) target(%407 : memref<1x128xf32, #tpu.memory_space<any>>) target_semaphore(%409 : memref<!tpu.dma_semaphore, #tpu.memory_space<semaphore_mem>>)
    %c40_i32_232 = arith.constant 40 : i32
    %410 = arith.addi %2, %c40_i32_232 : i32
    %c1_i32_233 = arith.constant 1 : i32
    %411 = arith.addi %410, %c1_i32_233 : i32
    %412 = arith.index_cast %411 : i32 to index
    %413 = memref.load %arg1[%412] : memref<64xi32, #tpu.memory_space<smem>>
    %c1_i32_234 = arith.constant 1 : i32
    %c0_i32_235 = arith.constant 0 : i32
    %414 = tpu.memref_slice %arg3[%413, %c0_i32_235] : memref<256x128xf32, #tpu.memory_space<any>> -> memref<1x128xf32, #tpu.memory_space<any>>
    %415 = tpu.memref_slice %arg5[%c1_i32_234] : memref<8x!tpu.dma_semaphore, #tpu.memory_space<semaphore_mem>> -> memref<1x!tpu.dma_semaphore, #tpu.memory_space<semaphore_mem>>
    %416 = tpu.memref_squeeze %415 : memref<1x!tpu.dma_semaphore, #tpu.memory_space<semaphore_mem>> -> memref<!tpu.dma_semaphore, #tpu.memory_space<semaphore_mem>>
    tpu.enqueue_dma source(%arg4 : memref<1x128xf32, #tpu.memory_space<vmem>>) target(%414 : memref<1x128xf32, #tpu.memory_space<any>>) target_semaphore(%416 : memref<!tpu.dma_semaphore, #tpu.memory_space<semaphore_mem>>)
    %c40_i32_236 = arith.constant 40 : i32
    %417 = arith.addi %2, %c40_i32_236 : i32
    %c2_i32_237 = arith.constant 2 : i32
    %418 = arith.addi %417, %c2_i32_237 : i32
    %419 = arith.index_cast %418 : i32 to index
    %420 = memref.load %arg1[%419] : memref<64xi32, #tpu.memory_space<smem>>
    %c2_i32_238 = arith.constant 2 : i32
    %c0_i32_239 = arith.constant 0 : i32
    %421 = tpu.memref_slice %arg3[%420, %c0_i32_239] : memref<256x128xf32, #tpu.memory_space<any>> -> memref<1x128xf32, #tpu.memory_space<any>>
    %422 = tpu.memref_slice %arg5[%c2_i32_238] : memref<8x!tpu.dma_semaphore, #tpu.memory_space<semaphore_mem>> -> memref<1x!tpu.dma_semaphore, #tpu.memory_space<semaphore_mem>>
    %423 = tpu.memref_squeeze %422 : memref<1x!tpu.dma_semaphore, #tpu.memory_space<semaphore_mem>> -> memref<!tpu.dma_semaphore, #tpu.memory_space<semaphore_mem>>
    tpu.enqueue_dma source(%arg4 : memref<1x128xf32, #tpu.memory_space<vmem>>) target(%421 : memref<1x128xf32, #tpu.memory_space<any>>) target_semaphore(%423 : memref<!tpu.dma_semaphore, #tpu.memory_space<semaphore_mem>>)
    %c40_i32_240 = arith.constant 40 : i32
    %424 = arith.addi %2, %c40_i32_240 : i32
    %c3_i32_241 = arith.constant 3 : i32
    %425 = arith.addi %424, %c3_i32_241 : i32
    %426 = arith.index_cast %425 : i32 to index
    %427 = memref.load %arg1[%426] : memref<64xi32, #tpu.memory_space<smem>>
    %c3_i32_242 = arith.constant 3 : i32
    %c0_i32_243 = arith.constant 0 : i32
    %428 = tpu.memref_slice %arg3[%427, %c0_i32_243] : memref<256x128xf32, #tpu.memory_space<any>> -> memref<1x128xf32, #tpu.memory_space<any>>
    %429 = tpu.memref_slice %arg5[%c3_i32_242] : memref<8x!tpu.dma_semaphore, #tpu.memory_space<semaphore_mem>> -> memref<1x!tpu.dma_semaphore, #tpu.memory_space<semaphore_mem>>
    %430 = tpu.memref_squeeze %429 : memref<1x!tpu.dma_semaphore, #tpu.memory_space<semaphore_mem>> -> memref<!tpu.dma_semaphore, #tpu.memory_space<semaphore_mem>>
    tpu.enqueue_dma source(%arg4 : memref<1x128xf32, #tpu.memory_space<vmem>>) target(%428 : memref<1x128xf32, #tpu.memory_space<any>>) target_semaphore(%430 : memref<!tpu.dma_semaphore, #tpu.memory_space<semaphore_mem>>)
    %c40_i32_244 = arith.constant 40 : i32
    %431 = arith.addi %2, %c40_i32_244 : i32
    %c4_i32_245 = arith.constant 4 : i32
    %432 = arith.addi %431, %c4_i32_245 : i32
    %433 = arith.index_cast %432 : i32 to index
    %434 = memref.load %arg1[%433] : memref<64xi32, #tpu.memory_space<smem>>
    %c4_i32_246 = arith.constant 4 : i32
    %c0_i32_247 = arith.constant 0 : i32
    %435 = tpu.memref_slice %arg3[%434, %c0_i32_247] : memref<256x128xf32, #tpu.memory_space<any>> -> memref<1x128xf32, #tpu.memory_space<any>>
    %436 = tpu.memref_slice %arg5[%c4_i32_246] : memref<8x!tpu.dma_semaphore, #tpu.memory_space<semaphore_mem>> -> memref<1x!tpu.dma_semaphore, #tpu.memory_space<semaphore_mem>>
    %437 = tpu.memref_squeeze %436 : memref<1x!tpu.dma_semaphore, #tpu.memory_space<semaphore_mem>> -> memref<!tpu.dma_semaphore, #tpu.memory_space<semaphore_mem>>
    tpu.enqueue_dma source(%arg4 : memref<1x128xf32, #tpu.memory_space<vmem>>) target(%435 : memref<1x128xf32, #tpu.memory_space<any>>) target_semaphore(%437 : memref<!tpu.dma_semaphore, #tpu.memory_space<semaphore_mem>>)
    %c40_i32_248 = arith.constant 40 : i32
    %438 = arith.addi %2, %c40_i32_248 : i32
    %c5_i32_249 = arith.constant 5 : i32
    %439 = arith.addi %438, %c5_i32_249 : i32
    %440 = arith.index_cast %439 : i32 to index
    %441 = memref.load %arg1[%440] : memref<64xi32, #tpu.memory_space<smem>>
    %c5_i32_250 = arith.constant 5 : i32
    %c0_i32_251 = arith.constant 0 : i32
    %442 = tpu.memref_slice %arg3[%441, %c0_i32_251] : memref<256x128xf32, #tpu.memory_space<any>> -> memref<1x128xf32, #tpu.memory_space<any>>
    %443 = tpu.memref_slice %arg5[%c5_i32_250] : memref<8x!tpu.dma_semaphore, #tpu.memory_space<semaphore_mem>> -> memref<1x!tpu.dma_semaphore, #tpu.memory_space<semaphore_mem>>
    %444 = tpu.memref_squeeze %443 : memref<1x!tpu.dma_semaphore, #tpu.memory_space<semaphore_mem>> -> memref<!tpu.dma_semaphore, #tpu.memory_space<semaphore_mem>>
    tpu.enqueue_dma source(%arg4 : memref<1x128xf32, #tpu.memory_space<vmem>>) target(%442 : memref<1x128xf32, #tpu.memory_space<any>>) target_semaphore(%444 : memref<!tpu.dma_semaphore, #tpu.memory_space<semaphore_mem>>)
    %c40_i32_252 = arith.constant 40 : i32
    %445 = arith.addi %2, %c40_i32_252 : i32
    %c6_i32_253 = arith.constant 6 : i32
    %446 = arith.addi %445, %c6_i32_253 : i32
    %447 = arith.index_cast %446 : i32 to index
    %448 = memref.load %arg1[%447] : memref<64xi32, #tpu.memory_space<smem>>
    %c6_i32_254 = arith.constant 6 : i32
    %c0_i32_255 = arith.constant 0 : i32
    %449 = tpu.memref_slice %arg3[%448, %c0_i32_255] : memref<256x128xf32, #tpu.memory_space<any>> -> memref<1x128xf32, #tpu.memory_space<any>>
    %450 = tpu.memref_slice %arg5[%c6_i32_254] : memref<8x!tpu.dma_semaphore, #tpu.memory_space<semaphore_mem>> -> memref<1x!tpu.dma_semaphore, #tpu.memory_space<semaphore_mem>>
    %451 = tpu.memref_squeeze %450 : memref<1x!tpu.dma_semaphore, #tpu.memory_space<semaphore_mem>> -> memref<!tpu.dma_semaphore, #tpu.memory_space<semaphore_mem>>
    tpu.enqueue_dma source(%arg4 : memref<1x128xf32, #tpu.memory_space<vmem>>) target(%449 : memref<1x128xf32, #tpu.memory_space<any>>) target_semaphore(%451 : memref<!tpu.dma_semaphore, #tpu.memory_space<semaphore_mem>>)
    %c40_i32_256 = arith.constant 40 : i32
    %452 = arith.addi %2, %c40_i32_256 : i32
    %c7_i32_257 = arith.constant 7 : i32
    %453 = arith.addi %452, %c7_i32_257 : i32
    %454 = arith.index_cast %453 : i32 to index
    %455 = memref.load %arg1[%454] : memref<64xi32, #tpu.memory_space<smem>>
    %c7_i32_258 = arith.constant 7 : i32
    %c0_i32_259 = arith.constant 0 : i32
    %456 = tpu.memref_slice %arg3[%455, %c0_i32_259] : memref<256x128xf32, #tpu.memory_space<any>> -> memref<1x128xf32, #tpu.memory_space<any>>
    %457 = tpu.memref_slice %arg5[%c7_i32_258] : memref<8x!tpu.dma_semaphore, #tpu.memory_space<semaphore_mem>> -> memref<1x!tpu.dma_semaphore, #tpu.memory_space<semaphore_mem>>
    %458 = tpu.memref_squeeze %457 : memref<1x!tpu.dma_semaphore, #tpu.memory_space<semaphore_mem>> -> memref<!tpu.dma_semaphore, #tpu.memory_space<semaphore_mem>>
    tpu.enqueue_dma source(%arg4 : memref<1x128xf32, #tpu.memory_space<vmem>>) target(%456 : memref<1x128xf32, #tpu.memory_space<any>>) target_semaphore(%458 : memref<!tpu.dma_semaphore, #tpu.memory_space<semaphore_mem>>)
    %c0_i32_260 = arith.constant 0 : i32
    %c0_i32_261 = arith.constant 0 : i32
    %459 = tpu.memref_slice %arg3[%406, %c0_i32_261] : memref<256x128xf32, #tpu.memory_space<any>> -> memref<1x128xf32, #tpu.memory_space<any>>
    %460 = tpu.memref_slice %arg5[%c0_i32_260] : memref<8x!tpu.dma_semaphore, #tpu.memory_space<semaphore_mem>> -> memref<1x!tpu.dma_semaphore, #tpu.memory_space<semaphore_mem>>
    %461 = tpu.memref_squeeze %460 : memref<1x!tpu.dma_semaphore, #tpu.memory_space<semaphore_mem>> -> memref<!tpu.dma_semaphore, #tpu.memory_space<semaphore_mem>>
    tpu.wait_dma2 semaphore(%461 : memref<!tpu.dma_semaphore, #tpu.memory_space<semaphore_mem>>) src(%arg4 : memref<1x128xf32, #tpu.memory_space<vmem>>) dst(%459 : memref<1x128xf32, #tpu.memory_space<any>>)
    %c1_i32_262 = arith.constant 1 : i32
    %c0_i32_263 = arith.constant 0 : i32
    %462 = tpu.memref_slice %arg3[%413, %c0_i32_263] : memref<256x128xf32, #tpu.memory_space<any>> -> memref<1x128xf32, #tpu.memory_space<any>>
    %463 = tpu.memref_slice %arg5[%c1_i32_262] : memref<8x!tpu.dma_semaphore, #tpu.memory_space<semaphore_mem>> -> memref<1x!tpu.dma_semaphore, #tpu.memory_space<semaphore_mem>>
    %464 = tpu.memref_squeeze %463 : memref<1x!tpu.dma_semaphore, #tpu.memory_space<semaphore_mem>> -> memref<!tpu.dma_semaphore, #tpu.memory_space<semaphore_mem>>
    tpu.wait_dma2 semaphore(%464 : memref<!tpu.dma_semaphore, #tpu.memory_space<semaphore_mem>>) src(%arg4 : memref<1x128xf32, #tpu.memory_space<vmem>>) dst(%462 : memref<1x128xf32, #tpu.memory_space<any>>)
    %c2_i32_264 = arith.constant 2 : i32
    %c0_i32_265 = arith.constant 0 : i32
    %465 = tpu.memref_slice %arg3[%420, %c0_i32_265] : memref<256x128xf32, #tpu.memory_space<any>> -> memref<1x128xf32, #tpu.memory_space<any>>
    %466 = tpu.memref_slice %arg5[%c2_i32_264] : memref<8x!tpu.dma_semaphore, #tpu.memory_space<semaphore_mem>> -> memref<1x!tpu.dma_semaphore, #tpu.memory_space<semaphore_mem>>
    %467 = tpu.memref_squeeze %466 : memref<1x!tpu.dma_semaphore, #tpu.memory_space<semaphore_mem>> -> memref<!tpu.dma_semaphore, #tpu.memory_space<semaphore_mem>>
    tpu.wait_dma2 semaphore(%467 : memref<!tpu.dma_semaphore, #tpu.memory_space<semaphore_mem>>) src(%arg4 : memref<1x128xf32, #tpu.memory_space<vmem>>) dst(%465 : memref<1x128xf32, #tpu.memory_space<any>>)
    %c3_i32_266 = arith.constant 3 : i32
    %c0_i32_267 = arith.constant 0 : i32
    %468 = tpu.memref_slice %arg3[%427, %c0_i32_267] : memref<256x128xf32, #tpu.memory_space<any>> -> memref<1x128xf32, #tpu.memory_space<any>>
    %469 = tpu.memref_slice %arg5[%c3_i32_266] : memref<8x!tpu.dma_semaphore, #tpu.memory_space<semaphore_mem>> -> memref<1x!tpu.dma_semaphore, #tpu.memory_space<semaphore_mem>>
    %470 = tpu.memref_squeeze %469 : memref<1x!tpu.dma_semaphore, #tpu.memory_space<semaphore_mem>> -> memref<!tpu.dma_semaphore, #tpu.memory_space<semaphore_mem>>
    tpu.wait_dma2 semaphore(%470 : memref<!tpu.dma_semaphore, #tpu.memory_space<semaphore_mem>>) src(%arg4 : memref<1x128xf32, #tpu.memory_space<vmem>>) dst(%468 : memref<1x128xf32, #tpu.memory_space<any>>)
    %c4_i32_268 = arith.constant 4 : i32
    %c0_i32_269 = arith.constant 0 : i32
    %471 = tpu.memref_slice %arg3[%434, %c0_i32_269] : memref<256x128xf32, #tpu.memory_space<any>> -> memref<1x128xf32, #tpu.memory_space<any>>
    %472 = tpu.memref_slice %arg5[%c4_i32_268] : memref<8x!tpu.dma_semaphore, #tpu.memory_space<semaphore_mem>> -> memref<1x!tpu.dma_semaphore, #tpu.memory_space<semaphore_mem>>
    %473 = tpu.memref_squeeze %472 : memref<1x!tpu.dma_semaphore, #tpu.memory_space<semaphore_mem>> -> memref<!tpu.dma_semaphore, #tpu.memory_space<semaphore_mem>>
    tpu.wait_dma2 semaphore(%473 : memref<!tpu.dma_semaphore, #tpu.memory_space<semaphore_mem>>) src(%arg4 : memref<1x128xf32, #tpu.memory_space<vmem>>) dst(%471 : memref<1x128xf32, #tpu.memory_space<any>>)
    %c5_i32_270 = arith.constant 5 : i32
    %c0_i32_271 = arith.constant 0 : i32
    %474 = tpu.memref_slice %arg3[%441, %c0_i32_271] : memref<256x128xf32, #tpu.memory_space<any>> -> memref<1x128xf32, #tpu.memory_space<any>>
    %475 = tpu.memref_slice %arg5[%c5_i32_270] : memref<8x!tpu.dma_semaphore, #tpu.memory_space<semaphore_mem>> -> memref<1x!tpu.dma_semaphore, #tpu.memory_space<semaphore_mem>>
    %476 = tpu.memref_squeeze %475 : memref<1x!tpu.dma_semaphore, #tpu.memory_space<semaphore_mem>> -> memref<!tpu.dma_semaphore, #tpu.memory_space<semaphore_mem>>
    tpu.wait_dma2 semaphore(%476 : memref<!tpu.dma_semaphore, #tpu.memory_space<semaphore_mem>>) src(%arg4 : memref<1x128xf32, #tpu.memory_space<vmem>>) dst(%474 : memref<1x128xf32, #tpu.memory_space<any>>)
    %c6_i32_272 = arith.constant 6 : i32
    %c0_i32_273 = arith.constant 0 : i32
    %477 = tpu.memref_slice %arg3[%448, %c0_i32_273] : memref<256x128xf32, #tpu.memory_space<any>> -> memref<1x128xf32, #tpu.memory_space<any>>
    %478 = tpu.memref_slice %arg5[%c6_i32_272] : memref<8x!tpu.dma_semaphore, #tpu.memory_space<semaphore_mem>> -> memref<1x!tpu.dma_semaphore, #tpu.memory_space<semaphore_mem>>
    %479 = tpu.memref_squeeze %478 : memref<1x!tpu.dma_semaphore, #tpu.memory_space<semaphore_mem>> -> memref<!tpu.dma_semaphore, #tpu.memory_space<semaphore_mem>>
    tpu.wait_dma2 semaphore(%479 : memref<!tpu.dma_semaphore, #tpu.memory_space<semaphore_mem>>) src(%arg4 : memref<1x128xf32, #tpu.memory_space<vmem>>) dst(%477 : memref<1x128xf32, #tpu.memory_space<any>>)
    %c7_i32_274 = arith.constant 7 : i32
    %c0_i32_275 = arith.constant 0 : i32
    %480 = tpu.memref_slice %arg3[%455, %c0_i32_275] : memref<256x128xf32, #tpu.memory_space<any>> -> memref<1x128xf32, #tpu.memory_space<any>>
    %481 = tpu.memref_slice %arg5[%c7_i32_274] : memref<8x!tpu.dma_semaphore, #tpu.memory_space<semaphore_mem>> -> memref<1x!tpu.dma_semaphore, #tpu.memory_space<semaphore_mem>>
    %482 = tpu.memref_squeeze %481 : memref<1x!tpu.dma_semaphore, #tpu.memory_space<semaphore_mem>> -> memref<!tpu.dma_semaphore, #tpu.memory_space<semaphore_mem>>
    tpu.wait_dma2 semaphore(%482 : memref<!tpu.dma_semaphore, #tpu.memory_space<semaphore_mem>>) src(%arg4 : memref<1x128xf32, #tpu.memory_space<vmem>>) dst(%480 : memref<1x128xf32, #tpu.memory_space<any>>)
    %c48_i32 = arith.constant 48 : i32
    %483 = arith.addi %2, %c48_i32 : i32
    %c0_i32_276 = arith.constant 0 : i32
    %484 = arith.addi %483, %c0_i32_276 : i32
    %485 = arith.index_cast %484 : i32 to index
    %486 = memref.load %arg1[%485] : memref<64xi32, #tpu.memory_space<smem>>
    %c0_i32_277 = arith.constant 0 : i32
    %c0_i32_278 = arith.constant 0 : i32
    %487 = tpu.memref_slice %arg3[%486, %c0_i32_278] : memref<256x128xf32, #tpu.memory_space<any>> -> memref<1x128xf32, #tpu.memory_space<any>>
    %488 = tpu.memref_slice %arg5[%c0_i32_277] : memref<8x!tpu.dma_semaphore, #tpu.memory_space<semaphore_mem>> -> memref<1x!tpu.dma_semaphore, #tpu.memory_space<semaphore_mem>>
    %489 = tpu.memref_squeeze %488 : memref<1x!tpu.dma_semaphore, #tpu.memory_space<semaphore_mem>> -> memref<!tpu.dma_semaphore, #tpu.memory_space<semaphore_mem>>
    tpu.enqueue_dma source(%arg4 : memref<1x128xf32, #tpu.memory_space<vmem>>) target(%487 : memref<1x128xf32, #tpu.memory_space<any>>) target_semaphore(%489 : memref<!tpu.dma_semaphore, #tpu.memory_space<semaphore_mem>>)
    %c48_i32_279 = arith.constant 48 : i32
    %490 = arith.addi %2, %c48_i32_279 : i32
    %c1_i32_280 = arith.constant 1 : i32
    %491 = arith.addi %490, %c1_i32_280 : i32
    %492 = arith.index_cast %491 : i32 to index
    %493 = memref.load %arg1[%492] : memref<64xi32, #tpu.memory_space<smem>>
    %c1_i32_281 = arith.constant 1 : i32
    %c0_i32_282 = arith.constant 0 : i32
    %494 = tpu.memref_slice %arg3[%493, %c0_i32_282] : memref<256x128xf32, #tpu.memory_space<any>> -> memref<1x128xf32, #tpu.memory_space<any>>
    %495 = tpu.memref_slice %arg5[%c1_i32_281] : memref<8x!tpu.dma_semaphore, #tpu.memory_space<semaphore_mem>> -> memref<1x!tpu.dma_semaphore, #tpu.memory_space<semaphore_mem>>
    %496 = tpu.memref_squeeze %495 : memref<1x!tpu.dma_semaphore, #tpu.memory_space<semaphore_mem>> -> memref<!tpu.dma_semaphore, #tpu.memory_space<semaphore_mem>>
    tpu.enqueue_dma source(%arg4 : memref<1x128xf32, #tpu.memory_space<vmem>>) target(%494 : memref<1x128xf32, #tpu.memory_space<any>>) target_semaphore(%496 : memref<!tpu.dma_semaphore, #tpu.memory_space<semaphore_mem>>)
    %c48_i32_283 = arith.constant 48 : i32
    %497 = arith.addi %2, %c48_i32_283 : i32
    %c2_i32_284 = arith.constant 2 : i32
    %498 = arith.addi %497, %c2_i32_284 : i32
    %499 = arith.index_cast %498 : i32 to index
    %500 = memref.load %arg1[%499] : memref<64xi32, #tpu.memory_space<smem>>
    %c2_i32_285 = arith.constant 2 : i32
    %c0_i32_286 = arith.constant 0 : i32
    %501 = tpu.memref_slice %arg3[%500, %c0_i32_286] : memref<256x128xf32, #tpu.memory_space<any>> -> memref<1x128xf32, #tpu.memory_space<any>>
    %502 = tpu.memref_slice %arg5[%c2_i32_285] : memref<8x!tpu.dma_semaphore, #tpu.memory_space<semaphore_mem>> -> memref<1x!tpu.dma_semaphore, #tpu.memory_space<semaphore_mem>>
    %503 = tpu.memref_squeeze %502 : memref<1x!tpu.dma_semaphore, #tpu.memory_space<semaphore_mem>> -> memref<!tpu.dma_semaphore, #tpu.memory_space<semaphore_mem>>
    tpu.enqueue_dma source(%arg4 : memref<1x128xf32, #tpu.memory_space<vmem>>) target(%501 : memref<1x128xf32, #tpu.memory_space<any>>) target_semaphore(%503 : memref<!tpu.dma_semaphore, #tpu.memory_space<semaphore_mem>>)
    %c48_i32_287 = arith.constant 48 : i32
    %504 = arith.addi %2, %c48_i32_287 : i32
    %c3_i32_288 = arith.constant 3 : i32
    %505 = arith.addi %504, %c3_i32_288 : i32
    %506 = arith.index_cast %505 : i32 to index
    %507 = memref.load %arg1[%506] : memref<64xi32, #tpu.memory_space<smem>>
    %c3_i32_289 = arith.constant 3 : i32
    %c0_i32_290 = arith.constant 0 : i32
    %508 = tpu.memref_slice %arg3[%507, %c0_i32_290] : memref<256x128xf32, #tpu.memory_space<any>> -> memref<1x128xf32, #tpu.memory_space<any>>
    %509 = tpu.memref_slice %arg5[%c3_i32_289] : memref<8x!tpu.dma_semaphore, #tpu.memory_space<semaphore_mem>> -> memref<1x!tpu.dma_semaphore, #tpu.memory_space<semaphore_mem>>
    %510 = tpu.memref_squeeze %509 : memref<1x!tpu.dma_semaphore, #tpu.memory_space<semaphore_mem>> -> memref<!tpu.dma_semaphore, #tpu.memory_space<semaphore_mem>>
    tpu.enqueue_dma source(%arg4 : memref<1x128xf32, #tpu.memory_space<vmem>>) target(%508 : memref<1x128xf32, #tpu.memory_space<any>>) target_semaphore(%510 : memref<!tpu.dma_semaphore, #tpu.memory_space<semaphore_mem>>)
    %c48_i32_291 = arith.constant 48 : i32
    %511 = arith.addi %2, %c48_i32_291 : i32
    %c4_i32_292 = arith.constant 4 : i32
    %512 = arith.addi %511, %c4_i32_292 : i32
    %513 = arith.index_cast %512 : i32 to index
    %514 = memref.load %arg1[%513] : memref<64xi32, #tpu.memory_space<smem>>
    %c4_i32_293 = arith.constant 4 : i32
    %c0_i32_294 = arith.constant 0 : i32
    %515 = tpu.memref_slice %arg3[%514, %c0_i32_294] : memref<256x128xf32, #tpu.memory_space<any>> -> memref<1x128xf32, #tpu.memory_space<any>>
    %516 = tpu.memref_slice %arg5[%c4_i32_293] : memref<8x!tpu.dma_semaphore, #tpu.memory_space<semaphore_mem>> -> memref<1x!tpu.dma_semaphore, #tpu.memory_space<semaphore_mem>>
    %517 = tpu.memref_squeeze %516 : memref<1x!tpu.dma_semaphore, #tpu.memory_space<semaphore_mem>> -> memref<!tpu.dma_semaphore, #tpu.memory_space<semaphore_mem>>
    tpu.enqueue_dma source(%arg4 : memref<1x128xf32, #tpu.memory_space<vmem>>) target(%515 : memref<1x128xf32, #tpu.memory_space<any>>) target_semaphore(%517 : memref<!tpu.dma_semaphore, #tpu.memory_space<semaphore_mem>>)
    %c48_i32_295 = arith.constant 48 : i32
    %518 = arith.addi %2, %c48_i32_295 : i32
    %c5_i32_296 = arith.constant 5 : i32
    %519 = arith.addi %518, %c5_i32_296 : i32
    %520 = arith.index_cast %519 : i32 to index
    %521 = memref.load %arg1[%520] : memref<64xi32, #tpu.memory_space<smem>>
    %c5_i32_297 = arith.constant 5 : i32
    %c0_i32_298 = arith.constant 0 : i32
    %522 = tpu.memref_slice %arg3[%521, %c0_i32_298] : memref<256x128xf32, #tpu.memory_space<any>> -> memref<1x128xf32, #tpu.memory_space<any>>
    %523 = tpu.memref_slice %arg5[%c5_i32_297] : memref<8x!tpu.dma_semaphore, #tpu.memory_space<semaphore_mem>> -> memref<1x!tpu.dma_semaphore, #tpu.memory_space<semaphore_mem>>
    %524 = tpu.memref_squeeze %523 : memref<1x!tpu.dma_semaphore, #tpu.memory_space<semaphore_mem>> -> memref<!tpu.dma_semaphore, #tpu.memory_space<semaphore_mem>>
    tpu.enqueue_dma source(%arg4 : memref<1x128xf32, #tpu.memory_space<vmem>>) target(%522 : memref<1x128xf32, #tpu.memory_space<any>>) target_semaphore(%524 : memref<!tpu.dma_semaphore, #tpu.memory_space<semaphore_mem>>)
    %c48_i32_299 = arith.constant 48 : i32
    %525 = arith.addi %2, %c48_i32_299 : i32
    %c6_i32_300 = arith.constant 6 : i32
    %526 = arith.addi %525, %c6_i32_300 : i32
    %527 = arith.index_cast %526 : i32 to index
    %528 = memref.load %arg1[%527] : memref<64xi32, #tpu.memory_space<smem>>
    %c6_i32_301 = arith.constant 6 : i32
    %c0_i32_302 = arith.constant 0 : i32
    %529 = tpu.memref_slice %arg3[%528, %c0_i32_302] : memref<256x128xf32, #tpu.memory_space<any>> -> memref<1x128xf32, #tpu.memory_space<any>>
    %530 = tpu.memref_slice %arg5[%c6_i32_301] : memref<8x!tpu.dma_semaphore, #tpu.memory_space<semaphore_mem>> -> memref<1x!tpu.dma_semaphore, #tpu.memory_space<semaphore_mem>>
    %531 = tpu.memref_squeeze %530 : memref<1x!tpu.dma_semaphore, #tpu.memory_space<semaphore_mem>> -> memref<!tpu.dma_semaphore, #tpu.memory_space<semaphore_mem>>
    tpu.enqueue_dma source(%arg4 : memref<1x128xf32, #tpu.memory_space<vmem>>) target(%529 : memref<1x128xf32, #tpu.memory_space<any>>) target_semaphore(%531 : memref<!tpu.dma_semaphore, #tpu.memory_space<semaphore_mem>>)
    %c48_i32_303 = arith.constant 48 : i32
    %532 = arith.addi %2, %c48_i32_303 : i32
    %c7_i32_304 = arith.constant 7 : i32
    %533 = arith.addi %532, %c7_i32_304 : i32
    %534 = arith.index_cast %533 : i32 to index
    %535 = memref.load %arg1[%534] : memref<64xi32, #tpu.memory_space<smem>>
    %c7_i32_305 = arith.constant 7 : i32
    %c0_i32_306 = arith.constant 0 : i32
    %536 = tpu.memref_slice %arg3[%535, %c0_i32_306] : memref<256x128xf32, #tpu.memory_space<any>> -> memref<1x128xf32, #tpu.memory_space<any>>
    %537 = tpu.memref_slice %arg5[%c7_i32_305] : memref<8x!tpu.dma_semaphore, #tpu.memory_space<semaphore_mem>> -> memref<1x!tpu.dma_semaphore, #tpu.memory_space<semaphore_mem>>
    %538 = tpu.memref_squeeze %537 : memref<1x!tpu.dma_semaphore, #tpu.memory_space<semaphore_mem>> -> memref<!tpu.dma_semaphore, #tpu.memory_space<semaphore_mem>>
    tpu.enqueue_dma source(%arg4 : memref<1x128xf32, #tpu.memory_space<vmem>>) target(%536 : memref<1x128xf32, #tpu.memory_space<any>>) target_semaphore(%538 : memref<!tpu.dma_semaphore, #tpu.memory_space<semaphore_mem>>)
    %c0_i32_307 = arith.constant 0 : i32
    %c0_i32_308 = arith.constant 0 : i32
    %539 = tpu.memref_slice %arg3[%486, %c0_i32_308] : memref<256x128xf32, #tpu.memory_space<any>> -> memref<1x128xf32, #tpu.memory_space<any>>
    %540 = tpu.memref_slice %arg5[%c0_i32_307] : memref<8x!tpu.dma_semaphore, #tpu.memory_space<semaphore_mem>> -> memref<1x!tpu.dma_semaphore, #tpu.memory_space<semaphore_mem>>
    %541 = tpu.memref_squeeze %540 : memref<1x!tpu.dma_semaphore, #tpu.memory_space<semaphore_mem>> -> memref<!tpu.dma_semaphore, #tpu.memory_space<semaphore_mem>>
    tpu.wait_dma2 semaphore(%541 : memref<!tpu.dma_semaphore, #tpu.memory_space<semaphore_mem>>) src(%arg4 : memref<1x128xf32, #tpu.memory_space<vmem>>) dst(%539 : memref<1x128xf32, #tpu.memory_space<any>>)
    %c1_i32_309 = arith.constant 1 : i32
    %c0_i32_310 = arith.constant 0 : i32
    %542 = tpu.memref_slice %arg3[%493, %c0_i32_310] : memref<256x128xf32, #tpu.memory_space<any>> -> memref<1x128xf32, #tpu.memory_space<any>>
    %543 = tpu.memref_slice %arg5[%c1_i32_309] : memref<8x!tpu.dma_semaphore, #tpu.memory_space<semaphore_mem>> -> memref<1x!tpu.dma_semaphore, #tpu.memory_space<semaphore_mem>>
    %544 = tpu.memref_squeeze %543 : memref<1x!tpu.dma_semaphore, #tpu.memory_space<semaphore_mem>> -> memref<!tpu.dma_semaphore, #tpu.memory_space<semaphore_mem>>
    tpu.wait_dma2 semaphore(%544 : memref<!tpu.dma_semaphore, #tpu.memory_space<semaphore_mem>>) src(%arg4 : memref<1x128xf32, #tpu.memory_space<vmem>>) dst(%542 : memref<1x128xf32, #tpu.memory_space<any>>)
    %c2_i32_311 = arith.constant 2 : i32
    %c0_i32_312 = arith.constant 0 : i32
    %545 = tpu.memref_slice %arg3[%500, %c0_i32_312] : memref<256x128xf32, #tpu.memory_space<any>> -> memref<1x128xf32, #tpu.memory_space<any>>
    %546 = tpu.memref_slice %arg5[%c2_i32_311] : memref<8x!tpu.dma_semaphore, #tpu.memory_space<semaphore_mem>> -> memref<1x!tpu.dma_semaphore, #tpu.memory_space<semaphore_mem>>
    %547 = tpu.memref_squeeze %546 : memref<1x!tpu.dma_semaphore, #tpu.memory_space<semaphore_mem>> -> memref<!tpu.dma_semaphore, #tpu.memory_space<semaphore_mem>>
    tpu.wait_dma2 semaphore(%547 : memref<!tpu.dma_semaphore, #tpu.memory_space<semaphore_mem>>) src(%arg4 : memref<1x128xf32, #tpu.memory_space<vmem>>) dst(%545 : memref<1x128xf32, #tpu.memory_space<any>>)
    %c3_i32_313 = arith.constant 3 : i32
    %c0_i32_314 = arith.constant 0 : i32
    %548 = tpu.memref_slice %arg3[%507, %c0_i32_314] : memref<256x128xf32, #tpu.memory_space<any>> -> memref<1x128xf32, #tpu.memory_space<any>>
    %549 = tpu.memref_slice %arg5[%c3_i32_313] : memref<8x!tpu.dma_semaphore, #tpu.memory_space<semaphore_mem>> -> memref<1x!tpu.dma_semaphore, #tpu.memory_space<semaphore_mem>>
    %550 = tpu.memref_squeeze %549 : memref<1x!tpu.dma_semaphore, #tpu.memory_space<semaphore_mem>> -> memref<!tpu.dma_semaphore, #tpu.memory_space<semaphore_mem>>
    tpu.wait_dma2 semaphore(%550 : memref<!tpu.dma_semaphore, #tpu.memory_space<semaphore_mem>>) src(%arg4 : memref<1x128xf32, #tpu.memory_space<vmem>>) dst(%548 : memref<1x128xf32, #tpu.memory_space<any>>)
    %c4_i32_315 = arith.constant 4 : i32
    %c0_i32_316 = arith.constant 0 : i32
    %551 = tpu.memref_slice %arg3[%514, %c0_i32_316] : memref<256x128xf32, #tpu.memory_space<any>> -> memref<1x128xf32, #tpu.memory_space<any>>
    %552 = tpu.memref_slice %arg5[%c4_i32_315] : memref<8x!tpu.dma_semaphore, #tpu.memory_space<semaphore_mem>> -> memref<1x!tpu.dma_semaphore, #tpu.memory_space<semaphore_mem>>
    %553 = tpu.memref_squeeze %552 : memref<1x!tpu.dma_semaphore, #tpu.memory_space<semaphore_mem>> -> memref<!tpu.dma_semaphore, #tpu.memory_space<semaphore_mem>>
    tpu.wait_dma2 semaphore(%553 : memref<!tpu.dma_semaphore, #tpu.memory_space<semaphore_mem>>) src(%arg4 : memref<1x128xf32, #tpu.memory_space<vmem>>) dst(%551 : memref<1x128xf32, #tpu.memory_space<any>>)
    %c5_i32_317 = arith.constant 5 : i32
    %c0_i32_318 = arith.constant 0 : i32
    %554 = tpu.memref_slice %arg3[%521, %c0_i32_318] : memref<256x128xf32, #tpu.memory_space<any>> -> memref<1x128xf32, #tpu.memory_space<any>>
    %555 = tpu.memref_slice %arg5[%c5_i32_317] : memref<8x!tpu.dma_semaphore, #tpu.memory_space<semaphore_mem>> -> memref<1x!tpu.dma_semaphore, #tpu.memory_space<semaphore_mem>>
    %556 = tpu.memref_squeeze %555 : memref<1x!tpu.dma_semaphore, #tpu.memory_space<semaphore_mem>> -> memref<!tpu.dma_semaphore, #tpu.memory_space<semaphore_mem>>
    tpu.wait_dma2 semaphore(%556 : memref<!tpu.dma_semaphore, #tpu.memory_space<semaphore_mem>>) src(%arg4 : memref<1x128xf32, #tpu.memory_space<vmem>>) dst(%554 : memref<1x128xf32, #tpu.memory_space<any>>)
    %c6_i32_319 = arith.constant 6 : i32
    %c0_i32_320 = arith.constant 0 : i32
    %557 = tpu.memref_slice %arg3[%528, %c0_i32_320] : memref<256x128xf32, #tpu.memory_space<any>> -> memref<1x128xf32, #tpu.memory_space<any>>
    %558 = tpu.memref_slice %arg5[%c6_i32_319] : memref<8x!tpu.dma_semaphore, #tpu.memory_space<semaphore_mem>> -> memref<1x!tpu.dma_semaphore, #tpu.memory_space<semaphore_mem>>
    %559 = tpu.memref_squeeze %558 : memref<1x!tpu.dma_semaphore, #tpu.memory_space<semaphore_mem>> -> memref<!tpu.dma_semaphore, #tpu.memory_space<semaphore_mem>>
    tpu.wait_dma2 semaphore(%559 : memref<!tpu.dma_semaphore, #tpu.memory_space<semaphore_mem>>) src(%arg4 : memref<1x128xf32, #tpu.memory_space<vmem>>) dst(%557 : memref<1x128xf32, #tpu.memory_space<any>>)
    %c7_i32_321 = arith.constant 7 : i32
    %c0_i32_322 = arith.constant 0 : i32
    %560 = tpu.memref_slice %arg3[%535, %c0_i32_322] : memref<256x128xf32, #tpu.memory_space<any>> -> memref<1x128xf32, #tpu.memory_space<any>>
    %561 = tpu.memref_slice %arg5[%c7_i32_321] : memref<8x!tpu.dma_semaphore, #tpu.memory_space<semaphore_mem>> -> memref<1x!tpu.dma_semaphore, #tpu.memory_space<semaphore_mem>>
    %562 = tpu.memref_squeeze %561 : memref<1x!tpu.dma_semaphore, #tpu.memory_space<semaphore_mem>> -> memref<!tpu.dma_semaphore, #tpu.memory_space<semaphore_mem>>
    tpu.wait_dma2 semaphore(%562 : memref<!tpu.dma_semaphore, #tpu.memory_space<semaphore_mem>>) src(%arg4 : memref<1x128xf32, #tpu.memory_space<vmem>>) dst(%560 : memref<1x128xf32, #tpu.memory_space<any>>)
    %c56_i32 = arith.constant 56 : i32
    %563 = arith.addi %2, %c56_i32 : i32
    %c0_i32_323 = arith.constant 0 : i32
    %564 = arith.addi %563, %c0_i32_323 : i32
    %565 = arith.index_cast %564 : i32 to index
    %566 = memref.load %arg1[%565] : memref<64xi32, #tpu.memory_space<smem>>
    %c0_i32_324 = arith.constant 0 : i32
    %c0_i32_325 = arith.constant 0 : i32
    %567 = tpu.memref_slice %arg3[%566, %c0_i32_325] : memref<256x128xf32, #tpu.memory_space<any>> -> memref<1x128xf32, #tpu.memory_space<any>>
    %568 = tpu.memref_slice %arg5[%c0_i32_324] : memref<8x!tpu.dma_semaphore, #tpu.memory_space<semaphore_mem>> -> memref<1x!tpu.dma_semaphore, #tpu.memory_space<semaphore_mem>>
    %569 = tpu.memref_squeeze %568 : memref<1x!tpu.dma_semaphore, #tpu.memory_space<semaphore_mem>> -> memref<!tpu.dma_semaphore, #tpu.memory_space<semaphore_mem>>
    tpu.enqueue_dma source(%arg4 : memref<1x128xf32, #tpu.memory_space<vmem>>) target(%567 : memref<1x128xf32, #tpu.memory_space<any>>) target_semaphore(%569 : memref<!tpu.dma_semaphore, #tpu.memory_space<semaphore_mem>>)
    %c56_i32_326 = arith.constant 56 : i32
    %570 = arith.addi %2, %c56_i32_326 : i32
    %c1_i32_327 = arith.constant 1 : i32
    %571 = arith.addi %570, %c1_i32_327 : i32
    %572 = arith.index_cast %571 : i32 to index
    %573 = memref.load %arg1[%572] : memref<64xi32, #tpu.memory_space<smem>>
    %c1_i32_328 = arith.constant 1 : i32
    %c0_i32_329 = arith.constant 0 : i32
    %574 = tpu.memref_slice %arg3[%573, %c0_i32_329] : memref<256x128xf32, #tpu.memory_space<any>> -> memref<1x128xf32, #tpu.memory_space<any>>
    %575 = tpu.memref_slice %arg5[%c1_i32_328] : memref<8x!tpu.dma_semaphore, #tpu.memory_space<semaphore_mem>> -> memref<1x!tpu.dma_semaphore, #tpu.memory_space<semaphore_mem>>
    %576 = tpu.memref_squeeze %575 : memref<1x!tpu.dma_semaphore, #tpu.memory_space<semaphore_mem>> -> memref<!tpu.dma_semaphore, #tpu.memory_space<semaphore_mem>>
    tpu.enqueue_dma source(%arg4 : memref<1x128xf32, #tpu.memory_space<vmem>>) target(%574 : memref<1x128xf32, #tpu.memory_space<any>>) target_semaphore(%576 : memref<!tpu.dma_semaphore, #tpu.memory_space<semaphore_mem>>)
    %c56_i32_330 = arith.constant 56 : i32
    %577 = arith.addi %2, %c56_i32_330 : i32
    %c2_i32_331 = arith.constant 2 : i32
    %578 = arith.addi %577, %c2_i32_331 : i32
    %579 = arith.index_cast %578 : i32 to index
    %580 = memref.load %arg1[%579] : memref<64xi32, #tpu.memory_space<smem>>
    %c2_i32_332 = arith.constant 2 : i32
    %c0_i32_333 = arith.constant 0 : i32
    %581 = tpu.memref_slice %arg3[%580, %c0_i32_333] : memref<256x128xf32, #tpu.memory_space<any>> -> memref<1x128xf32, #tpu.memory_space<any>>
    %582 = tpu.memref_slice %arg5[%c2_i32_332] : memref<8x!tpu.dma_semaphore, #tpu.memory_space<semaphore_mem>> -> memref<1x!tpu.dma_semaphore, #tpu.memory_space<semaphore_mem>>
    %583 = tpu.memref_squeeze %582 : memref<1x!tpu.dma_semaphore, #tpu.memory_space<semaphore_mem>> -> memref<!tpu.dma_semaphore, #tpu.memory_space<semaphore_mem>>
    tpu.enqueue_dma source(%arg4 : memref<1x128xf32, #tpu.memory_space<vmem>>) target(%581 : memref<1x128xf32, #tpu.memory_space<any>>) target_semaphore(%583 : memref<!tpu.dma_semaphore, #tpu.memory_space<semaphore_mem>>)
    %c56_i32_334 = arith.constant 56 : i32
    %584 = arith.addi %2, %c56_i32_334 : i32
    %c3_i32_335 = arith.constant 3 : i32
    %585 = arith.addi %584, %c3_i32_335 : i32
    %586 = arith.index_cast %585 : i32 to index
    %587 = memref.load %arg1[%586] : memref<64xi32, #tpu.memory_space<smem>>
    %c3_i32_336 = arith.constant 3 : i32
    %c0_i32_337 = arith.constant 0 : i32
    %588 = tpu.memref_slice %arg3[%587, %c0_i32_337] : memref<256x128xf32, #tpu.memory_space<any>> -> memref<1x128xf32, #tpu.memory_space<any>>
    %589 = tpu.memref_slice %arg5[%c3_i32_336] : memref<8x!tpu.dma_semaphore, #tpu.memory_space<semaphore_mem>> -> memref<1x!tpu.dma_semaphore, #tpu.memory_space<semaphore_mem>>
    %590 = tpu.memref_squeeze %589 : memref<1x!tpu.dma_semaphore, #tpu.memory_space<semaphore_mem>> -> memref<!tpu.dma_semaphore, #tpu.memory_space<semaphore_mem>>
    tpu.enqueue_dma source(%arg4 : memref<1x128xf32, #tpu.memory_space<vmem>>) target(%588 : memref<1x128xf32, #tpu.memory_space<any>>) target_semaphore(%590 : memref<!tpu.dma_semaphore, #tpu.memory_space<semaphore_mem>>)
    %c56_i32_338 = arith.constant 56 : i32
    %591 = arith.addi %2, %c56_i32_338 : i32
    %c4_i32_339 = arith.constant 4 : i32
    %592 = arith.addi %591, %c4_i32_339 : i32
    %593 = arith.index_cast %592 : i32 to index
    %594 = memref.load %arg1[%593] : memref<64xi32, #tpu.memory_space<smem>>
    %c4_i32_340 = arith.constant 4 : i32
    %c0_i32_341 = arith.constant 0 : i32
    %595 = tpu.memref_slice %arg3[%594, %c0_i32_341] : memref<256x128xf32, #tpu.memory_space<any>> -> memref<1x128xf32, #tpu.memory_space<any>>
    %596 = tpu.memref_slice %arg5[%c4_i32_340] : memref<8x!tpu.dma_semaphore, #tpu.memory_space<semaphore_mem>> -> memref<1x!tpu.dma_semaphore, #tpu.memory_space<semaphore_mem>>
    %597 = tpu.memref_squeeze %596 : memref<1x!tpu.dma_semaphore, #tpu.memory_space<semaphore_mem>> -> memref<!tpu.dma_semaphore, #tpu.memory_space<semaphore_mem>>
    tpu.enqueue_dma source(%arg4 : memref<1x128xf32, #tpu.memory_space<vmem>>) target(%595 : memref<1x128xf32, #tpu.memory_space<any>>) target_semaphore(%597 : memref<!tpu.dma_semaphore, #tpu.memory_space<semaphore_mem>>)
    %c56_i32_342 = arith.constant 56 : i32
    %598 = arith.addi %2, %c56_i32_342 : i32
    %c5_i32_343 = arith.constant 5 : i32
    %599 = arith.addi %598, %c5_i32_343 : i32
    %600 = arith.index_cast %599 : i32 to index
    %601 = memref.load %arg1[%600] : memref<64xi32, #tpu.memory_space<smem>>
    %c5_i32_344 = arith.constant 5 : i32
    %c0_i32_345 = arith.constant 0 : i32
    %602 = tpu.memref_slice %arg3[%601, %c0_i32_345] : memref<256x128xf32, #tpu.memory_space<any>> -> memref<1x128xf32, #tpu.memory_space<any>>
    %603 = tpu.memref_slice %arg5[%c5_i32_344] : memref<8x!tpu.dma_semaphore, #tpu.memory_space<semaphore_mem>> -> memref<1x!tpu.dma_semaphore, #tpu.memory_space<semaphore_mem>>
    %604 = tpu.memref_squeeze %603 : memref<1x!tpu.dma_semaphore, #tpu.memory_space<semaphore_mem>> -> memref<!tpu.dma_semaphore, #tpu.memory_space<semaphore_mem>>
    tpu.enqueue_dma source(%arg4 : memref<1x128xf32, #tpu.memory_space<vmem>>) target(%602 : memref<1x128xf32, #tpu.memory_space<any>>) target_semaphore(%604 : memref<!tpu.dma_semaphore, #tpu.memory_space<semaphore_mem>>)
    %c56_i32_346 = arith.constant 56 : i32
    %605 = arith.addi %2, %c56_i32_346 : i32
    %c6_i32_347 = arith.constant 6 : i32
    %606 = arith.addi %605, %c6_i32_347 : i32
    %607 = arith.index_cast %606 : i32 to index
    %608 = memref.load %arg1[%607] : memref<64xi32, #tpu.memory_space<smem>>
    %c6_i32_348 = arith.constant 6 : i32
    %c0_i32_349 = arith.constant 0 : i32
    %609 = tpu.memref_slice %arg3[%608, %c0_i32_349] : memref<256x128xf32, #tpu.memory_space<any>> -> memref<1x128xf32, #tpu.memory_space<any>>
    %610 = tpu.memref_slice %arg5[%c6_i32_348] : memref<8x!tpu.dma_semaphore, #tpu.memory_space<semaphore_mem>> -> memref<1x!tpu.dma_semaphore, #tpu.memory_space<semaphore_mem>>
    %611 = tpu.memref_squeeze %610 : memref<1x!tpu.dma_semaphore, #tpu.memory_space<semaphore_mem>> -> memref<!tpu.dma_semaphore, #tpu.memory_space<semaphore_mem>>
    tpu.enqueue_dma source(%arg4 : memref<1x128xf32, #tpu.memory_space<vmem>>) target(%609 : memref<1x128xf32, #tpu.memory_space<any>>) target_semaphore(%611 : memref<!tpu.dma_semaphore, #tpu.memory_space<semaphore_mem>>)
    %c56_i32_350 = arith.constant 56 : i32
    %612 = arith.addi %2, %c56_i32_350 : i32
    %c7_i32_351 = arith.constant 7 : i32
    %613 = arith.addi %612, %c7_i32_351 : i32
    %614 = arith.index_cast %613 : i32 to index
    %615 = memref.load %arg1[%614] : memref<64xi32, #tpu.memory_space<smem>>
    %c7_i32_352 = arith.constant 7 : i32
    %c0_i32_353 = arith.constant 0 : i32
    %616 = tpu.memref_slice %arg3[%615, %c0_i32_353] : memref<256x128xf32, #tpu.memory_space<any>> -> memref<1x128xf32, #tpu.memory_space<any>>
    %617 = tpu.memref_slice %arg5[%c7_i32_352] : memref<8x!tpu.dma_semaphore, #tpu.memory_space<semaphore_mem>> -> memref<1x!tpu.dma_semaphore, #tpu.memory_space<semaphore_mem>>
    %618 = tpu.memref_squeeze %617 : memref<1x!tpu.dma_semaphore, #tpu.memory_space<semaphore_mem>> -> memref<!tpu.dma_semaphore, #tpu.memory_space<semaphore_mem>>
    tpu.enqueue_dma source(%arg4 : memref<1x128xf32, #tpu.memory_space<vmem>>) target(%616 : memref<1x128xf32, #tpu.memory_space<any>>) target_semaphore(%618 : memref<!tpu.dma_semaphore, #tpu.memory_space<semaphore_mem>>)
    %c0_i32_354 = arith.constant 0 : i32
    %c0_i32_355 = arith.constant 0 : i32
    %619 = tpu.memref_slice %arg3[%566, %c0_i32_355] : memref<256x128xf32, #tpu.memory_space<any>> -> memref<1x128xf32, #tpu.memory_space<any>>
    %620 = tpu.memref_slice %arg5[%c0_i32_354] : memref<8x!tpu.dma_semaphore, #tpu.memory_space<semaphore_mem>> -> memref<1x!tpu.dma_semaphore, #tpu.memory_space<semaphore_mem>>
    %621 = tpu.memref_squeeze %620 : memref<1x!tpu.dma_semaphore, #tpu.memory_space<semaphore_mem>> -> memref<!tpu.dma_semaphore, #tpu.memory_space<semaphore_mem>>
    tpu.wait_dma2 semaphore(%621 : memref<!tpu.dma_semaphore, #tpu.memory_space<semaphore_mem>>) src(%arg4 : memref<1x128xf32, #tpu.memory_space<vmem>>) dst(%619 : memref<1x128xf32, #tpu.memory_space<any>>)
    %c1_i32_356 = arith.constant 1 : i32
    %c0_i32_357 = arith.constant 0 : i32
    %622 = tpu.memref_slice %arg3[%573, %c0_i32_357] : memref<256x128xf32, #tpu.memory_space<any>> -> memref<1x128xf32, #tpu.memory_space<any>>
    %623 = tpu.memref_slice %arg5[%c1_i32_356] : memref<8x!tpu.dma_semaphore, #tpu.memory_space<semaphore_mem>> -> memref<1x!tpu.dma_semaphore, #tpu.memory_space<semaphore_mem>>
    %624 = tpu.memref_squeeze %623 : memref<1x!tpu.dma_semaphore, #tpu.memory_space<semaphore_mem>> -> memref<!tpu.dma_semaphore, #tpu.memory_space<semaphore_mem>>
    tpu.wait_dma2 semaphore(%624 : memref<!tpu.dma_semaphore, #tpu.memory_space<semaphore_mem>>) src(%arg4 : memref<1x128xf32, #tpu.memory_space<vmem>>) dst(%622 : memref<1x128xf32, #tpu.memory_space<any>>)
    %c2_i32_358 = arith.constant 2 : i32
    %c0_i32_359 = arith.constant 0 : i32
    %625 = tpu.memref_slice %arg3[%580, %c0_i32_359] : memref<256x128xf32, #tpu.memory_space<any>> -> memref<1x128xf32, #tpu.memory_space<any>>
    %626 = tpu.memref_slice %arg5[%c2_i32_358] : memref<8x!tpu.dma_semaphore, #tpu.memory_space<semaphore_mem>> -> memref<1x!tpu.dma_semaphore, #tpu.memory_space<semaphore_mem>>
    %627 = tpu.memref_squeeze %626 : memref<1x!tpu.dma_semaphore, #tpu.memory_space<semaphore_mem>> -> memref<!tpu.dma_semaphore, #tpu.memory_space<semaphore_mem>>
    tpu.wait_dma2 semaphore(%627 : memref<!tpu.dma_semaphore, #tpu.memory_space<semaphore_mem>>) src(%arg4 : memref<1x128xf32, #tpu.memory_space<vmem>>) dst(%625 : memref<1x128xf32, #tpu.memory_space<any>>)
    %c3_i32_360 = arith.constant 3 : i32
    %c0_i32_361 = arith.constant 0 : i32
    %628 = tpu.memref_slice %arg3[%587, %c0_i32_361] : memref<256x128xf32, #tpu.memory_space<any>> -> memref<1x128xf32, #tpu.memory_space<any>>
    %629 = tpu.memref_slice %arg5[%c3_i32_360] : memref<8x!tpu.dma_semaphore, #tpu.memory_space<semaphore_mem>> -> memref<1x!tpu.dma_semaphore, #tpu.memory_space<semaphore_mem>>
    %630 = tpu.memref_squeeze %629 : memref<1x!tpu.dma_semaphore, #tpu.memory_space<semaphore_mem>> -> memref<!tpu.dma_semaphore, #tpu.memory_space<semaphore_mem>>
    tpu.wait_dma2 semaphore(%630 : memref<!tpu.dma_semaphore, #tpu.memory_space<semaphore_mem>>) src(%arg4 : memref<1x128xf32, #tpu.memory_space<vmem>>) dst(%628 : memref<1x128xf32, #tpu.memory_space<any>>)
    %c4_i32_362 = arith.constant 4 : i32
    %c0_i32_363 = arith.constant 0 : i32
    %631 = tpu.memref_slice %arg3[%594, %c0_i32_363] : memref<256x128xf32, #tpu.memory_space<any>> -> memref<1x128xf32, #tpu.memory_space<any>>
    %632 = tpu.memref_slice %arg5[%c4_i32_362] : memref<8x!tpu.dma_semaphore, #tpu.memory_space<semaphore_mem>> -> memref<1x!tpu.dma_semaphore, #tpu.memory_space<semaphore_mem>>
    %633 = tpu.memref_squeeze %632 : memref<1x!tpu.dma_semaphore, #tpu.memory_space<semaphore_mem>> -> memref<!tpu.dma_semaphore, #tpu.memory_space<semaphore_mem>>
    tpu.wait_dma2 semaphore(%633 : memref<!tpu.dma_semaphore, #tpu.memory_space<semaphore_mem>>) src(%arg4 : memref<1x128xf32, #tpu.memory_space<vmem>>) dst(%631 : memref<1x128xf32, #tpu.memory_space<any>>)
    %c5_i32_364 = arith.constant 5 : i32
    %c0_i32_365 = arith.constant 0 : i32
    %634 = tpu.memref_slice %arg3[%601, %c0_i32_365] : memref<256x128xf32, #tpu.memory_space<any>> -> memref<1x128xf32, #tpu.memory_space<any>>
    %635 = tpu.memref_slice %arg5[%c5_i32_364] : memref<8x!tpu.dma_semaphore, #tpu.memory_space<semaphore_mem>> -> memref<1x!tpu.dma_semaphore, #tpu.memory_space<semaphore_mem>>
    %636 = tpu.memref_squeeze %635 : memref<1x!tpu.dma_semaphore, #tpu.memory_space<semaphore_mem>> -> memref<!tpu.dma_semaphore, #tpu.memory_space<semaphore_mem>>
    tpu.wait_dma2 semaphore(%636 : memref<!tpu.dma_semaphore, #tpu.memory_space<semaphore_mem>>) src(%arg4 : memref<1x128xf32, #tpu.memory_space<vmem>>) dst(%634 : memref<1x128xf32, #tpu.memory_space<any>>)
    %c6_i32_366 = arith.constant 6 : i32
    %c0_i32_367 = arith.constant 0 : i32
    %637 = tpu.memref_slice %arg3[%608, %c0_i32_367] : memref<256x128xf32, #tpu.memory_space<any>> -> memref<1x128xf32, #tpu.memory_space<any>>
    %638 = tpu.memref_slice %arg5[%c6_i32_366] : memref<8x!tpu.dma_semaphore, #tpu.memory_space<semaphore_mem>> -> memref<1x!tpu.dma_semaphore, #tpu.memory_space<semaphore_mem>>
    %639 = tpu.memref_squeeze %638 : memref<1x!tpu.dma_semaphore, #tpu.memory_space<semaphore_mem>> -> memref<!tpu.dma_semaphore, #tpu.memory_space<semaphore_mem>>
    tpu.wait_dma2 semaphore(%639 : memref<!tpu.dma_semaphore, #tpu.memory_space<semaphore_mem>>) src(%arg4 : memref<1x128xf32, #tpu.memory_space<vmem>>) dst(%637 : memref<1x128xf32, #tpu.memory_space<any>>)
    %c7_i32_368 = arith.constant 7 : i32
    %c0_i32_369 = arith.constant 0 : i32
    %640 = tpu.memref_slice %arg3[%615, %c0_i32_369] : memref<256x128xf32, #tpu.memory_space<any>> -> memref<1x128xf32, #tpu.memory_space<any>>
    %641 = tpu.memref_slice %arg5[%c7_i32_368] : memref<8x!tpu.dma_semaphore, #tpu.memory_space<semaphore_mem>> -> memref<1x!tpu.dma_semaphore, #tpu.memory_space<semaphore_mem>>
    %642 = tpu.memref_squeeze %641 : memref<1x!tpu.dma_semaphore, #tpu.memory_space<semaphore_mem>> -> memref<!tpu.dma_semaphore, #tpu.memory_space<semaphore_mem>>
    tpu.wait_dma2 semaphore(%642 : memref<!tpu.dma_semaphore, #tpu.memory_space<semaphore_mem>>) src(%arg4 : memref<1x128xf32, #tpu.memory_space<vmem>>) dst(%640 : memref<1x128xf32, #tpu.memory_space<any>>)
    return
  }
  func.func @transform_0(%arg0: i32) -> i32 {
    %c0_i32 = arith.constant 0 : i32
    %c0_i32_0 = arith.constant 0 : i32
    return %c0_i32 : i32
  }
}

</mosaic_0001>

<llo_original>
// kernel: tpu_custom_call.1
$region0: #{tpu_custom_call.1}
  #allocation0 [shape = 'u32[]', space=smem, size = 0x4, offset = 0x4, fixed_abs, tag = 'smem constant byte address 0x4 - core index']
  #allocation1 [shape = 'u32[144,128]{1,0:T(1,128)}', space=vmem, size = 0x12000, scoped, tag = 'internal scratch']
  #allocation2 [shape = 'f32[1,128]{1,0:T(1,128)}', space=vmem, size = 0x200, scoped, tag = 'scratch operand']
  #allocation3 [shape = 's32[8]{0}', space=sflag, size = 0x20, scoped, tag = 'scratch operand']
  #allocation6 [shape = 's32[]', space=sflag, size = 0x4, offset = 0, fixed_abs, tag = 'sflag constant byte address 0x0 - dummy sync flag']
  #allocation7 [shape = 's32[]', space=sflag, size = 0x4, offset = 0, fixed_abs, tag = 'sflag constant byte address 0x0 - dummy sync flag']
  #allocation8 [shape = 'u32[]', space=smem, size = 0x4, offset = 0x44, fixed_abs, tag = 'smem constant byte address 0x44 - assertion arg 0']
  #allocation9 [shape = 'u32[]', space=smem, size = 0x4, offset = 0x48, fixed_abs, tag = 'smem constant byte address 0x48 - assertion arg 1']
  #allocation10 [shape = 's32[]', space=sflag, size = 0x4, offset = 0, fixed_abs, tag = 'sflag constant byte address 0x0 - dummy sync flag']
  #allocation11 [shape = 's32[]', space=sflag, size = 0x4, offset = 0, fixed_abs, tag = 'sflag constant byte address 0x0 - dummy sync flag']
  #allocation12 [shape = 's32[]', space=sflag, size = 0x4, offset = 0, fixed_abs, tag = 'sflag constant byte address 0x0 - dummy sync flag']
  #allocation13 [shape = 's32[]', space=sflag, size = 0x4, offset = 0, fixed_abs, tag = 'sflag constant byte address 0x0 - dummy sync flag']
  #allocation14 [shape = 's32[]', space=sflag, size = 0x4, offset = 0, fixed_abs, tag = 'sflag constant byte address 0x0 - dummy sync flag']
  #allocation15 [shape = 's32[]', space=sflag, size = 0x4, offset = 0, fixed_abs, tag = 'sflag constant byte address 0x0 - dummy sync flag']
  #allocation16 [shape = 's32[]', space=sflag, size = 0x4, offset = 0, fixed_abs, tag = 'sflag constant byte address 0x0 - dummy sync flag']
  #allocation17 [shape = 's32[]', space=sflag, size = 0x4, offset = 0, fixed_abs, tag = 'sflag constant byte address 0x0 - dummy sync flag']
  #allocation18 [shape = 's32[]', space=sflag, size = 0x4, offset = 0, fixed_abs, tag = 'sflag constant byte address 0x0 - dummy sync flag']
  #allocation19 [shape = 's32[]', space=sflag, size = 0x4, offset = 0, fixed_abs, tag = 'sflag constant byte address 0x0 - dummy sync flag']
  #allocation20 [shape = 's32[]', space=sflag, size = 0x4, offset = 0, fixed_abs, tag = 'sflag constant byte address 0x0 - dummy sync flag']
  #allocation21 [shape = 's32[]', space=sflag, size = 0x4, offset = 0, fixed_abs, tag = 'sflag constant byte address 0x0 - dummy sync flag']
  #allocation22 [shape = 's32[]', space=sflag, size = 0x4, offset = 0, fixed_abs, tag = 'sflag constant byte address 0x0 - dummy sync flag']
  #allocation23 [shape = 's32[]', space=sflag, size = 0x4, offset = 0, fixed_abs, tag = 'sflag constant byte address 0x0 - dummy sync flag']
  #allocation24 [shape = 's32[]', space=sflag, size = 0x4, offset = 0, fixed_abs, tag = 'sflag constant byte address 0x0 - dummy sync flag']
  #allocation25 [shape = 's32[]', space=sflag, size = 0x4, offset = 0, fixed_abs, tag = 'sflag constant byte address 0x0 - dummy sync flag']
  #allocation26 [shape = 's32[]', space=sflag, size = 0x4, offset = 0, fixed_abs, tag = 'sflag constant byte address 0x0 - dummy sync flag']
  #allocation27 [shape = 's32[]', space=sflag, size = 0x4, offset = 0, fixed_abs, tag = 'sflag constant byte address 0x0 - dummy sync flag']
  #allocation28 [shape = 's32[]', space=sflag, size = 0x4, offset = 0, fixed_abs, tag = 'sflag constant byte address 0x0 - dummy sync flag']
  #allocation29 [shape = 's32[]', space=sflag, size = 0x4, offset = 0, fixed_abs, tag = 'sflag constant byte address 0x0 - dummy sync flag']
  #allocation30 [shape = 's32[]', space=sflag, size = 0x4, offset = 0, fixed_abs, tag = 'sflag constant byte address 0x0 - dummy sync flag']
  #allocation31 [shape = 's32[]', space=sflag, size = 0x4, offset = 0, fixed_abs, tag = 'sflag constant byte address 0x0 - dummy sync flag']
  #allocation32 [shape = 's32[]', space=sflag, size = 0x4, offset = 0, fixed_abs, tag = 'sflag constant byte address 0x0 - dummy sync flag']
  #allocation33 [shape = 's32[]', space=sflag, size = 0x4, offset = 0, fixed_abs, tag = 'sflag constant byte address 0x0 - dummy sync flag']
  #allocation34 [shape = 's32[]', space=sflag, size = 0x4, offset = 0, fixed_abs, tag = 'sflag constant byte address 0x0 - dummy sync flag']
  #allocation35 [shape = 's32[]', space=sflag, size = 0x4, offset = 0, fixed_abs, tag = 'sflag constant byte address 0x0 - dummy sync flag']
  #allocation36 [shape = 's32[]', space=sflag, size = 0x4, offset = 0, fixed_abs, tag = 'sflag constant byte address 0x0 - dummy sync flag']
  #allocation37 [shape = 's32[]', space=sflag, size = 0x4, offset = 0, fixed_abs, tag = 'sflag constant byte address 0x0 - dummy sync flag']
  #allocation38 [shape = 's32[]', space=sflag, size = 0x4, offset = 0, fixed_abs, tag = 'sflag constant byte address 0x0 - dummy sync flag']
  #allocation39 [shape = 's32[]', space=sflag, size = 0x4, offset = 0, fixed_abs, tag = 'sflag constant byte address 0x0 - dummy sync flag']
  #allocation40 [shape = 's32[]', space=sflag, size = 0x4, offset = 0, fixed_abs, tag = 'sflag constant byte address 0x0 - dummy sync flag']
  #allocation41 [shape = 's32[]', space=sflag, size = 0x4, offset = 0, fixed_abs, tag = 'sflag constant byte address 0x0 - dummy sync flag']
  #allocation42 [shape = 's32[]', space=sflag, size = 0x4, offset = 0, fixed_abs, tag = 'sflag constant byte address 0x0 - dummy sync flag']
  #allocation43 [shape = 's32[]', space=sflag, size = 0x4, offset = 0, fixed_abs, tag = 'sflag constant byte address 0x0 - dummy sync flag']
  #allocation44 [shape = 's32[]', space=sflag, size = 0x4, offset = 0, fixed_abs, tag = 'sflag constant byte address 0x0 - dummy sync flag']
  #allocation45 [shape = 's32[]', space=sflag, size = 0x4, offset = 0, fixed_abs, tag = 'sflag constant byte address 0x0 - dummy sync flag']
  #allocation46 [shape = 's32[]', space=sflag, size = 0x4, offset = 0, fixed_abs, tag = 'sflag constant byte address 0x0 - dummy sync flag']
  #allocation47 [shape = 's32[]', space=sflag, size = 0x4, offset = 0, fixed_abs, tag = 'sflag constant byte address 0x0 - dummy sync flag']
  #allocation48 [shape = 's32[]', space=sflag, size = 0x4, offset = 0, fixed_abs, tag = 'sflag constant byte address 0x0 - dummy sync flag']
  #allocation49 [shape = 's32[]', space=sflag, size = 0x4, offset = 0, fixed_abs, tag = 'sflag constant byte address 0x0 - dummy sync flag']
  #allocation50 [shape = 's32[]', space=sflag, size = 0x4, offset = 0, fixed_abs, tag = 'sflag constant byte address 0x0 - dummy sync flag']
  #allocation51 [shape = 's32[]', space=sflag, size = 0x4, offset = 0, fixed_abs, tag = 'sflag constant byte address 0x0 - dummy sync flag']
  #allocation52 [shape = 's32[]', space=sflag, size = 0x4, offset = 0, fixed_abs, tag = 'sflag constant byte address 0x0 - dummy sync flag']
  #allocation53 [shape = 's32[]', space=sflag, size = 0x4, offset = 0, fixed_abs, tag = 'sflag constant byte address 0x0 - dummy sync flag']
  #allocation54 [shape = 's32[]', space=sflag, size = 0x4, offset = 0, fixed_abs, tag = 'sflag constant byte address 0x0 - dummy sync flag']
  #allocation55 [shape = 's32[]', space=sflag, size = 0x4, offset = 0, fixed_abs, tag = 'sflag constant byte address 0x0 - dummy sync flag']
  #allocation56 [shape = 's32[]', space=sflag, size = 0x4, offset = 0, fixed_abs, tag = 'sflag constant byte address 0x0 - dummy sync flag']
  #allocation57 [shape = 's32[]', space=sflag, size = 0x4, offset = 0, fixed_abs, tag = 'sflag constant byte address 0x0 - dummy sync flag']
  #allocation58 [shape = 's32[]', space=sflag, size = 0x4, offset = 0, fixed_abs, tag = 'sflag constant byte address 0x0 - dummy sync flag']
  #allocation59 [shape = 's32[]', space=sflag, size = 0x4, offset = 0, fixed_abs, tag = 'sflag constant byte address 0x0 - dummy sync flag']
  #allocation60 [shape = 's32[]', space=sflag, size = 0x4, offset = 0, fixed_abs, tag = 'sflag constant byte address 0x0 - dummy sync flag']
  #allocation61 [shape = 's32[]', space=sflag, size = 0x4, offset = 0, fixed_abs, tag = 'sflag constant byte address 0x0 - dummy sync flag']
  #allocation62 [shape = 's32[]', space=sflag, size = 0x4, offset = 0, fixed_abs, tag = 'sflag constant byte address 0x0 - dummy sync flag']
  #allocation63 [shape = 's32[]', space=sflag, size = 0x4, offset = 0, fixed_abs, tag = 'sflag constant byte address 0x0 - dummy sync flag']
  #allocation64 [shape = 's32[]', space=sflag, size = 0x4, offset = 0, fixed_abs, tag = 'sflag constant byte address 0x0 - dummy sync flag']
  #allocation65 [shape = 's32[]', space=sflag, size = 0x4, offset = 0, fixed_abs, tag = 'sflag constant byte address 0x0 - dummy sync flag']
  #allocation66 [shape = 's32[]', space=sflag, size = 0x4, offset = 0, fixed_abs, tag = 'sflag constant byte address 0x0 - dummy sync flag']
  #allocation67 [shape = 's32[]', space=sflag, size = 0x4, offset = 0, fixed_abs, tag = 'sflag constant byte address 0x0 - dummy sync flag']
  #allocation68 [shape = 's32[]', space=sflag, size = 0x4, offset = 0, fixed_abs, tag = 'sflag constant byte address 0x0 - dummy sync flag']
  #allocation69 [shape = 's32[]', space=sflag, size = 0x4, offset = 0, fixed_abs, tag = 'sflag constant byte address 0x0 - dummy sync flag']
  #allocation70 [shape = 's32[]', space=sflag, size = 0x4, offset = 0, fixed_abs, tag = 'sflag constant byte address 0x0 - dummy sync flag']
  #allocation71 [shape = 's32[]', space=sflag, size = 0x4, offset = 0, fixed_abs, tag = 'sflag constant byte address 0x0 - dummy sync flag']
  #allocation72 [shape = 's32[]', space=sflag, size = 0x4, offset = 0, fixed_abs, tag = 'sflag constant byte address 0x0 - dummy sync flag']
  #allocation73 [shape = 's32[]', space=sflag, size = 0x4, offset = 0, fixed_abs, tag = 'sflag constant byte address 0x0 - dummy sync flag']
  #allocation74 [shape = 's32[]', space=sflag, size = 0x4, offset = 0, fixed_abs, tag = 'sflag constant byte address 0x0 - dummy sync flag']
  #allocation75 [shape = 's32[]', space=sflag, size = 0x4, offset = 0, fixed_abs, tag = 'sflag constant byte address 0x0 - dummy sync flag']
  #allocation76 [shape = 's32[]', space=sflag, size = 0x4, offset = 0, fixed_abs, tag = 'sflag constant byte address 0x0 - dummy sync flag']
  #allocation77 [shape = 's32[]', space=sflag, size = 0x4, offset = 0, fixed_abs, tag = 'sflag constant byte address 0x0 - dummy sync flag']
  #allocation78 [shape = 's32[]', space=sflag, size = 0x4, offset = 0, fixed_abs, tag = 'sflag constant byte address 0x0 - dummy sync flag']
  #allocation79 [shape = 's32[]', space=sflag, size = 0x4, offset = 0, fixed_abs, tag = 'sflag constant byte address 0x0 - dummy sync flag']
  #allocation80 [shape = 's32[]', space=sflag, size = 0x4, offset = 0, fixed_abs, tag = 'sflag constant byte address 0x0 - dummy sync flag']
  #allocation81 [shape = 's32[]', space=sflag, size = 0x4, offset = 0, fixed_abs, tag = 'sflag constant byte address 0x0 - dummy sync flag']
  #allocation82 [shape = 's32[]', space=sflag, size = 0x4, offset = 0, fixed_abs, tag = 'sflag constant byte address 0x0 - dummy sync flag']
  #allocation83 [shape = 's32[]', space=sflag, size = 0x4, offset = 0, fixed_abs, tag = 'sflag constant byte address 0x0 - dummy sync flag']
  #allocation84 [shape = 's32[]', space=sflag, size = 0x4, offset = 0, fixed_abs, tag = 'sflag constant byte address 0x0 - dummy sync flag']
  #allocation85 [shape = 's32[]', space=sflag, size = 0x4, offset = 0, fixed_abs, tag = 'sflag constant byte address 0x0 - dummy sync flag']
  #allocation86 [shape = 's32[]', space=sflag, size = 0x4, offset = 0, fixed_abs, tag = 'sflag constant byte address 0x0 - dummy sync flag']
  #allocation87 [shape = 's32[]', space=sflag, size = 0x4, offset = 0, fixed_abs, tag = 'sflag constant byte address 0x0 - dummy sync flag']
  #allocation88 [shape = 's32[]', space=sflag, size = 0x4, offset = 0, fixed_abs, tag = 'sflag constant byte address 0x0 - dummy sync flag']
  #allocation89 [shape = 's32[]', space=sflag, size = 0x4, offset = 0, fixed_abs, tag = 'sflag constant byte address 0x0 - dummy sync flag']
  #allocation90 [shape = 's32[]', space=sflag, size = 0x4, offset = 0, fixed_abs, tag = 'sflag constant byte address 0x0 - dummy sync flag']
  #allocation91 [shape = 's32[]', space=sflag, size = 0x4, offset = 0, fixed_abs, tag = 'sflag constant byte address 0x0 - dummy sync flag']
  #allocation92 [shape = 's32[]', space=sflag, size = 0x4, offset = 0, fixed_abs, tag = 'sflag constant byte address 0x0 - dummy sync flag']
  #allocation93 [shape = 's32[]', space=sflag, size = 0x4, offset = 0, fixed_abs, tag = 'sflag constant byte address 0x0 - dummy sync flag']
  #allocation94 [shape = 's32[]', space=sflag, size = 0x4, offset = 0, fixed_abs, tag = 'sflag constant byte address 0x0 - dummy sync flag']
  #allocation95 [shape = 's32[]', space=sflag, size = 0x4, offset = 0, fixed_abs, tag = 'sflag constant byte address 0x0 - dummy sync flag']
  #allocation96 [shape = 's32[]', space=sflag, size = 0x4, offset = 0, fixed_abs, tag = 'sflag constant byte address 0x0 - dummy sync flag']
  #allocation97 [shape = 's32[]', space=sflag, size = 0x4, offset = 0, fixed_abs, tag = 'sflag constant byte address 0x0 - dummy sync flag']
  #allocation98 [shape = 's32[]', space=sflag, size = 0x4, offset = 0, fixed_abs, tag = 'sflag constant byte address 0x0 - dummy sync flag']
  #allocation99 [shape = 's32[]', space=sflag, size = 0x4, offset = 0, fixed_abs, tag = 'sflag constant byte address 0x0 - dummy sync flag']
  #allocation100 [shape = 's32[]', space=sflag, size = 0x4, offset = 0, fixed_abs, tag = 'sflag constant byte address 0x0 - dummy sync flag']
  #allocation101 [shape = 's32[]', space=sflag, size = 0x4, offset = 0, fixed_abs, tag = 'sflag constant byte address 0x0 - dummy sync flag']
  #allocation102 [shape = 's32[]', space=sflag, size = 0x4, offset = 0, fixed_abs, tag = 'sflag constant byte address 0x0 - dummy sync flag']
  #allocation103 [shape = 's32[]', space=sflag, size = 0x4, offset = 0, fixed_abs, tag = 'sflag constant byte address 0x0 - dummy sync flag']
  #allocation104 [shape = 's32[]', space=sflag, size = 0x4, offset = 0, fixed_abs, tag = 'sflag constant byte address 0x0 - dummy sync flag']
  #allocation105 [shape = 's32[]', space=sflag, size = 0x4, offset = 0, fixed_abs, tag = 'sflag constant byte address 0x0 - dummy sync flag']
  #allocation106 [shape = 's32[]', space=sflag, size = 0x4, offset = 0, fixed_abs, tag = 'sflag constant byte address 0x0 - dummy sync flag']
  #allocation107 [shape = 's32[]', space=sflag, size = 0x4, offset = 0, fixed_abs, tag = 'sflag constant byte address 0x0 - dummy sync flag']
  #allocation108 [shape = 's32[]', space=sflag, size = 0x4, offset = 0, fixed_abs, tag = 'sflag constant byte address 0x0 - dummy sync flag']
  #allocation109 [shape = 's32[]', space=sflag, size = 0x4, offset = 0, fixed_abs, tag = 'sflag constant byte address 0x0 - dummy sync flag']
  #allocation110 [shape = 's32[]', space=sflag, size = 0x4, offset = 0, fixed_abs, tag = 'sflag constant byte address 0x0 - dummy sync flag']
  #allocation111 [shape = 's32[]', space=sflag, size = 0x4, offset = 0, fixed_abs, tag = 'sflag constant byte address 0x0 - dummy sync flag']
  #allocation112 [shape = 's32[]', space=sflag, size = 0x4, offset = 0, fixed_abs, tag = 'sflag constant byte address 0x0 - dummy sync flag']
  #allocation113 [shape = 's32[]', space=sflag, size = 0x4, offset = 0, fixed_abs, tag = 'sflag constant byte address 0x0 - dummy sync flag']
  #allocation114 [shape = 's32[]', space=sflag, size = 0x4, offset = 0, fixed_abs, tag = 'sflag constant byte address 0x0 - dummy sync flag']
  #allocation115 [shape = 's32[]', space=sflag, size = 0x4, offset = 0, fixed_abs, tag = 'sflag constant byte address 0x0 - dummy sync flag']
  #allocation116 [shape = 's32[]', space=sflag, size = 0x4, offset = 0, fixed_abs, tag = 'sflag constant byte address 0x0 - dummy sync flag']
  #allocation117 [shape = 's32[]', space=sflag, size = 0x4, offset = 0, fixed_abs, tag = 'sflag constant byte address 0x0 - dummy sync flag']
  #allocation118 [shape = 's32[]', space=sflag, size = 0x4, offset = 0, fixed_abs, tag = 'sflag constant byte address 0x0 - dummy sync flag']
  #allocation119 [shape = 's32[]', space=sflag, size = 0x4, offset = 0, fixed_abs, tag = 'sflag constant byte address 0x0 - dummy sync flag']
  #allocation120 [shape = 's32[]', space=sflag, size = 0x4, offset = 0, fixed_abs, tag = 'sflag constant byte address 0x0 - dummy sync flag']
  #allocation121 [shape = 's32[]', space=sflag, size = 0x4, offset = 0, fixed_abs, tag = 'sflag constant byte address 0x0 - dummy sync flag']
  #allocation122 [shape = 's32[]', space=sflag, size = 0x4, offset = 0, fixed_abs, tag = 'sflag constant byte address 0x0 - dummy sync flag']
  #allocation123 [shape = 's32[]', space=sflag, size = 0x4, offset = 0, fixed_abs, tag = 'sflag constant byte address 0x0 - dummy sync flag']
  #allocation124 [shape = 's32[]', space=sflag, size = 0x4, offset = 0, fixed_abs, tag = 'sflag constant byte address 0x0 - dummy sync flag']
  #allocation125 [shape = 's32[]', space=sflag, size = 0x4, offset = 0, fixed_abs, tag = 'sflag constant byte address 0x0 - dummy sync flag']
  #allocation126 [shape = 's32[]', space=sflag, size = 0x4, offset = 0, fixed_abs, tag = 'sflag constant byte address 0x0 - dummy sync flag']
  #allocation127 [shape = 's32[]', space=sflag, size = 0x4, offset = 0, fixed_abs, tag = 'sflag constant byte address 0x0 - dummy sync flag']
  #allocation128 [shape = 's32[]', space=sflag, size = 0x4, offset = 0, fixed_abs, tag = 'sflag constant byte address 0x0 - dummy sync flag']
  #allocation129 [shape = 's32[]', space=sflag, size = 0x4, offset = 0, fixed_abs, tag = 'sflag constant byte address 0x0 - dummy sync flag']
  #allocation130 [shape = 's32[]', space=sflag, size = 0x4, offset = 0, fixed_abs, tag = 'sflag constant byte address 0x0 - dummy sync flag']
  #allocation131 [shape = 's32[]', space=sflag, size = 0x4, offset = 0, fixed_abs, tag = 'sflag constant byte address 0x0 - dummy sync flag']
  #allocation132 [shape = 's32[]', space=sflag, size = 0x4, offset = 0, fixed_abs, tag = 'sflag constant byte address 0x0 - dummy sync flag']
  #allocation133 [shape = 's32[]', space=sflag, size = 0x4, offset = 0, fixed_abs, tag = 'sflag constant byte address 0x0 - dummy sync flag']
  #allocation134 [shape = 's32[]', space=sflag, size = 0x4, offset = 0, fixed_abs, tag = 'sflag constant byte address 0x0 - dummy sync flag']
  #allocation135 [shape = 's32[]', space=sflag, size = 0x4, offset = 0, fixed_abs, tag = 'sflag constant byte address 0x0 - dummy sync flag']
  %s0 = inlined_call_operand.vmem [shape: s32[64], index: 0, kind: input, shape index: {}]
  %s1 = inlined_call_operand.hbm [shape: f32[256,128], index: 1, kind: input, shape index: {}, may-alias: {1,2}]
  %s2 = inlined_call_operand.hbm [shape: f32[256,128], index: 2, kind: output, shape index: {}, may-alias: {1,2}]
  %s3 = sld [smem:[#allocation0]]
  $region266: #{tpu_custom_call.1} parent=0
    _
  %s5 = ssub.s32 1, %s3
  %s6 = scalar_select 0, %s5, %s3
  $region1: #{tpu_custom_call.1} parent=0
    #allocation4 [shape = 'u8[512]{0}', space=smem, size = 0x200, scoped, tag = 'input window, operand 0, single buffered']
    #allocation5 [shape = 's32[1]{0}', space=sflag, size = 0x4, scoped, tag = 'scoped memory for tpu_custom_call.1']
    %7 = vsyncpa [#allocation5], 0
    // Predicated region
    $region2: #{tpu_custom_call.1} parent=1 // pred_check
      _
    $region3: #{tpu_custom_call.1} parent=1 // pred_check_branch
      %9 = sbr.rel (0) target = $region5
    $region4: #{tpu_custom_call.1} parent=1 // pred_region
      %s11 = ssub.s32 16, 16
      %12 = vsyncadd [#allocation5], %s11
      %s14 = sshll.u32 %s0, 4
      %s15 = int_to_ptr.vmem [resolvable:$true] %s14
      %17 = dma.vmem_to_smem %s15, 16, [#allocation4], [#allocation5]
    $region5: #{tpu_custom_call.1} parent=1 // pred_fallthru
      _
    // Predicated region
    $region6: #{tpu_custom_call.1} parent=1 // pred_check
      _
    $region7: #{tpu_custom_call.1} parent=1 // pred_check_branch
      %19 = sbr.rel (0) target = $region9
    $region8: #{tpu_custom_call.1} parent=1 // pred_region
      %20 = dma.done [#allocation5], 16
    $region9: #{tpu_custom_call.1} parent=1 // pred_fallthru
      _
    %21 = sfence
    %22 = vst [vmem:[#allocation2] sm:$0x1] 0.0
    %s23 = smul.u32 0, 64
    %s24 = sld [smem:[#allocation4 + %s23]]
    %s25 = smul.addr %s24, 16
    %s26 = scalar_lea.hbm %s2, %s25
    // Predicated region
    $region10: #{tpu_custom_call.1} parent=1 // pred_check
      _
    $region11: #{tpu_custom_call.1} parent=1 // pred_check_branch
      %28 = sbr.rel target = $region13
    $region12: #{tpu_custom_call.1} parent=1 // pred_region
      %29 = sst [smem:[#allocation8]] [#allocation7]
      %30 = sst [smem:[#allocation9]] [#allocation6]
    $region13: #{tpu_custom_call.1} parent=1 // pred_fallthru
      _
    %32 = shalt.err (0)
    %s34 = sshll.u32 [#allocation2], 4
    %s35 = int_to_ptr.vmem [resolvable:$true] %s34
    %37 = dma.vmem_to_hbm [thread:$0]  %s35, 16, %s26, [#allocation3]
    %s38 = sadd.s32 %s23, 1
    %s39 = sld [smem:[#allocation4 + %s38]]
    %s40 = smul.addr %s39, 16
    %s41 = scalar_lea.hbm %s2, %s40
    %s42 = scalar_lea.sflag [#allocation3], 1
    // Predicated region
    $region14: #{tpu_custom_call.1} parent=1 // pred_check
      _
    $region15: #{tpu_custom_call.1} parent=1 // pred_check_branch
      %44 = sbr.rel target = $region17
    $region16: #{tpu_custom_call.1} parent=1 // pred_region
      %45 = sst [smem:[#allocation8]] [#allocation11]
      %46 = sst [smem:[#allocation9]] [#allocation10]
    $region17: #{tpu_custom_call.1} parent=1 // pred_fallthru
      _
    %48 = shalt.err (0)
    %s50 = sshll.u32 [#allocation2], 4
    %s51 = int_to_ptr.vmem [resolvable:$true] %s50
    %53 = dma.vmem_to_hbm [thread:$0]  %s51, 16, %s41, %s42
    %s54 = sadd.s32 %s23, 2
    %s55 = sld [smem:[#allocation4 + %s54]]
    %s56 = smul.addr %s55, 16
    %s57 = scalar_lea.hbm %s2, %s56
    %s58 = scalar_lea.sflag [#allocation3], 2
    // Predicated region
    $region18: #{tpu_custom_call.1} parent=1 // pred_check
      _
    $region19: #{tpu_custom_call.1} parent=1 // pred_check_branch
      %60 = sbr.rel target = $region21
    $region20: #{tpu_custom_call.1} parent=1 // pred_region
      %61 = sst [smem:[#allocation8]] [#allocation13]
      %62 = sst [smem:[#allocation9]] [#allocation12]
    $region21: #{tpu_custom_call.1} parent=1 // pred_fallthru
      _
    %64 = shalt.err (0)
    %s66 = sshll.u32 [#allocation2], 4
    %s67 = int_to_ptr.vmem [resolvable:$true] %s66
    %69 = dma.vmem_to_hbm [thread:$0]  %s67, 16, %s57, %s58
    %s70 = sadd.s32 %s23, 3
    %s71 = sld [smem:[#allocation4 + %s70]]
    %s72 = smul.addr %s71, 16
    %s73 = scalar_lea.hbm %s2, %s72
    %s74 = scalar_lea.sflag [#allocation3], 3
    // Predicated region
    $region22: #{tpu_custom_call.1} parent=1 // pred_check
      _
    $region23: #{tpu_custom_call.1} parent=1 // pred_check_branch
      %76 = sbr.rel target = $region25
    $region24: #{tpu_custom_call.1} parent=1 // pred_region
      %77 = sst [smem:[#allocation8]] [#allocation15]
      %78 = sst [smem:[#allocation9]] [#allocation14]
    $region25: #{tpu_custom_call.1} parent=1 // pred_fallthru
      _
    %80 = shalt.err (0)
    %s82 = sshll.u32 [#allocation2], 4
    %s83 = int_to_ptr.vmem [resolvable:$true] %s82
    %85 = dma.vmem_to_hbm [thread:$0]  %s83, 16, %s73, %s74
    %s86 = sadd.s32 %s23, 4
    %s87 = sld [smem:[#allocation4 + %s86]]
    %s88 = smul.addr %s87, 16
    %s89 = scalar_lea.hbm %s2, %s88
    %s90 = scalar_lea.sflag [#allocation3], 4
    // Predicated region
    $region26: #{tpu_custom_call.1} parent=1 // pred_check
      _
    $region27: #{tpu_custom_call.1} parent=1 // pred_check_branch
      %92 = sbr.rel target = $region29
    $region28: #{tpu_custom_call.1} parent=1 // pred_region
      %93 = sst [smem:[#allocation8]] [#allocation17]
      %94 = sst [smem:[#allocation9]] [#allocation16]
    $region29: #{tpu_custom_call.1} parent=1 // pred_fallthru
      _
    %96 = shalt.err (0)
    %s98 = sshll.u32 [#allocation2], 4
    %s99 = int_to_ptr.vmem [resolvable:$true] %s98
    %101 = dma.vmem_to_hbm [thread:$0]  %s99, 16, %s89, %s90
    %s102 = sadd.s32 %s23, 5
    %s103 = sld [smem:[#allocation4 + %s102]]
    %s104 = smul.addr %s103, 16
    %s105 = scalar_lea.hbm %s2, %s104
    %s106 = scalar_lea.sflag [#allocation3], 5
    // Predicated region
    $region30: #{tpu_custom_call.1} parent=1 // pred_check
      _
    $region31: #{tpu_custom_call.1} parent=1 // pred_check_branch
      %108 = sbr.rel target = $region33
    $region32: #{tpu_custom_call.1} parent=1 // pred_region
      %109 = sst [smem:[#allocation8]] [#allocation19]
      %110 = sst [smem:[#allocation9]] [#allocation18]
    $region33: #{tpu_custom_call.1} parent=1 // pred_fallthru
      _
    %112 = shalt.err (0)
    %s114 = sshll.u32 [#allocation2], 4
    %s115 = int_to_ptr.vmem [resolvable:$true] %s114
    %117 = dma.vmem_to_hbm [thread:$0]  %s115, 16, %s105, %s106
    %s118 = sadd.s32 %s23, 6
    %s119 = sld [smem:[#allocation4 + %s118]]
    %s120 = smul.addr %s119, 16
    %s121 = scalar_lea.hbm %s2, %s120
    %s122 = scalar_lea.sflag [#allocation3], 6
    // Predicated region
    $region34: #{tpu_custom_call.1} parent=1 // pred_check
      _
    $region35: #{tpu_custom_call.1} parent=1 // pred_check_branch
      %124 = sbr.rel target = $region37
    $region36: #{tpu_custom_call.1} parent=1 // pred_region
      %125 = sst [smem:[#allocation8]] [#allocation21]
      %126 = sst [smem:[#allocation9]] [#allocation20]
    $region37: #{tpu_custom_call.1} parent=1 // pred_fallthru
      _
    %128 = shalt.err (0)
    %s130 = sshll.u32 [#allocation2], 4
    %s131 = int_to_ptr.vmem [resolvable:$true] %s130
    %133 = dma.vmem_to_hbm [thread:$0]  %s131, 16, %s121, %s122
    %s134 = sadd.s32 %s23, 7
    %s135 = sld [smem:[#allocation4 + %s134]]
    %s136 = smul.addr %s135, 16
    %s137 = scalar_lea.hbm %s2, %s136
    %s138 = scalar_lea.sflag [#allocation3], 7
    // Predicated region
    $region38: #{tpu_custom_call.1} parent=1 // pred_check
      _
    $region39: #{tpu_custom_call.1} parent=1 // pred_check_branch
      %140 = sbr.rel target = $region41
    $region40: #{tpu_custom_call.1} parent=1 // pred_region
      %141 = sst [smem:[#allocation8]] [#allocation23]
      %142 = sst [smem:[#allocation9]] [#allocation22]
    $region41: #{tpu_custom_call.1} parent=1 // pred_fallthru
      _
    %144 = shalt.err (0)
    %s146 = sshll.u32 [#allocation2], 4
    %s147 = int_to_ptr.vmem [resolvable:$true] %s146
    %149 = dma.vmem_to_hbm [thread:$0]  %s147, 16, %s137, %s138
    %s150 = smul.u32 1, 1
    %s151 = sshll.u32 %s150, 4
    %152 = dma.done [#allocation3], %s151
    %s153 = sshll.u32 %s150, 4
    %154 = dma.done %s42, %s153
    %s155 = sshll.u32 %s150, 4
    %156 = dma.done %s58, %s155
    %s157 = sshll.u32 %s150, 4
    %158 = dma.done %s74, %s157
    %s159 = sshll.u32 %s150, 4
    %160 = dma.done %s90, %s159
    %s161 = sshll.u32 %s150, 4
    %162 = dma.done %s106, %s161
    %s163 = sshll.u32 %s150, 4
    %164 = dma.done %s122, %s163
    %s165 = sshll.u32 %s150, 4
    %166 = dma.done %s138, %s165
    %s167 = sadd.s32 %s23, 8
    %s168 = sld [smem:[#allocation4 + %s167]]
    %s169 = smul.addr %s168, 16
    %s170 = scalar_lea.hbm %s2, %s169
    // Predicated region
    $region42: #{tpu_custom_call.1} parent=1 // pred_check
      _
    $region43: #{tpu_custom_call.1} parent=1 // pred_check_branch
      %172 = sbr.rel target = $region45
    $region44: #{tpu_custom_call.1} parent=1 // pred_region
      %173 = sst [smem:[#allocation8]] [#allocation25]
      %174 = sst [smem:[#allocation9]] [#allocation24]
    $region45: #{tpu_custom_call.1} parent=1 // pred_fallthru
      _
    %176 = shalt.err (0)
    %s178 = sshll.u32 [#allocation2], 4
    %s179 = int_to_ptr.vmem [resolvable:$true] %s178
    %181 = dma.vmem_to_hbm [thread:$0]  %s179, 16, %s170, [#allocation3]
    %s182 = sadd.s32 %s23, 9
    %s183 = sld [smem:[#allocation4 + %s182]]
    %s184 = smul.addr %s183, 16
    %s185 = scalar_lea.hbm %s2, %s184
    // Predicated region
    $region46: #{tpu_custom_call.1} parent=1 // pred_check
      _
    $region47: #{tpu_custom_call.1} parent=1 // pred_check_branch
      %187 = sbr.rel target = $region49
    $region48: #{tpu_custom_call.1} parent=1 // pred_region
      %188 = sst [smem:[#allocation8]] [#allocation27]
      %189 = sst [smem:[#allocation9]] [#allocation26]
    $region49: #{tpu_custom_call.1} parent=1 // pred_fallthru
      _
    %191 = shalt.err (0)
    %s193 = sshll.u32 [#allocation2], 4
    %s194 = int_to_ptr.vmem [resolvable:$true] %s193
    %196 = dma.vmem_to_hbm [thread:$0]  %s194, 16, %s185, %s42
    %s197 = sadd.s32 %s23, 10
    %s198 = sld [smem:[#allocation4 + %s197]]
    %s199 = smul.addr %s198, 16
    %s200 = scalar_lea.hbm %s2, %s199
    // Predicated region
    $region50: #{tpu_custom_call.1} parent=1 // pred_check
      _
    $region51: #{tpu_custom_call.1} parent=1 // pred_check_branch
      %202 = sbr.rel target = $region53
    $region52: #{tpu_custom_call.1} parent=1 // pred_region
      %203 = sst [smem:[#allocation8]] [#allocation29]
      %204 = sst [smem:[#allocation9]] [#allocation28]
    $region53: #{tpu_custom_call.1} parent=1 // pred_fallthru
      _
    %206 = shalt.err (0)
    %s208 = sshll.u32 [#allocation2], 4
    %s209 = int_to_ptr.vmem [resolvable:$true] %s208
    %211 = dma.vmem_to_hbm [thread:$0]  %s209, 16, %s200, %s58
    %s212 = sadd.s32 %s23, 11
    %s213 = sld [smem:[#allocation4 + %s212]]
    %s214 = smul.addr %s213, 16
    %s215 = scalar_lea.hbm %s2, %s214
    // Predicated region
    $region54: #{tpu_custom_call.1} parent=1 // pred_check
      _
    $region55: #{tpu_custom_call.1} parent=1 // pred_check_branch
      %217 = sbr.rel target = $region57
    $region56: #{tpu_custom_call.1} parent=1 // pred_region
      %218 = sst [smem:[#allocation8]] [#allocation31]
      %219 = sst [smem:[#allocation9]] [#allocation30]
    $region57: #{tpu_custom_call.1} parent=1 // pred_fallthru
      _
    %221 = shalt.err (0)
    %s223 = sshll.u32 [#allocation2], 4
    %s224 = int_to_ptr.vmem [resolvable:$true] %s223
    %226 = dma.vmem_to_hbm [thread:$0]  %s224, 16, %s215, %s74
    %s227 = sadd.s32 %s23, 12
    %s228 = sld [smem:[#allocation4 + %s227]]
    %s229 = smul.addr %s228, 16
    %s230 = scalar_lea.hbm %s2, %s229
    // Predicated region
    $region58: #{tpu_custom_call.1} parent=1 // pred_check
      _
    $region59: #{tpu_custom_call.1} parent=1 // pred_check_branch
      %232 = sbr.rel target = $region61
    $region60: #{tpu_custom_call.1} parent=1 // pred_region
      %233 = sst [smem:[#allocation8]] [#allocation33]
      %234 = sst [smem:[#allocation9]] [#allocation32]
    $region61: #{tpu_custom_call.1} parent=1 // pred_fallthru
      _
    %236 = shalt.err (0)
    %s238 = sshll.u32 [#allocation2], 4
    %s239 = int_to_ptr.vmem [resolvable:$true] %s238
    %241 = dma.vmem_to_hbm [thread:$0]  %s239, 16, %s230, %s90
    %s242 = sadd.s32 %s23, 13
    %s243 = sld [smem:[#allocation4 + %s242]]
    %s244 = smul.addr %s243, 16
    %s245 = scalar_lea.hbm %s2, %s244
    // Predicated region
    $region62: #{tpu_custom_call.1} parent=1 // pred_check
      _
    $region63: #{tpu_custom_call.1} parent=1 // pred_check_branch
      %247 = sbr.rel target = $region65
    $region64: #{tpu_custom_call.1} parent=1 // pred_region
      %248 = sst [smem:[#allocation8]] [#allocation35]
      %249 = sst [smem:[#allocation9]] [#allocation34]
    $region65: #{tpu_custom_call.1} parent=1 // pred_fallthru
      _
    %251 = shalt.err (0)
    %s253 = sshll.u32 [#allocation2], 4
    %s254 = int_to_ptr.vmem [resolvable:$true] %s253
    %256 = dma.vmem_to_hbm [thread:$0]  %s254, 16, %s245, %s106
    %s257 = sadd.s32 %s23, 14
    %s258 = sld [smem:[#allocation4 + %s257]]
    %s259 = smul.addr %s258, 16
    %s260 = scalar_lea.hbm %s2, %s259
    // Predicated region
    $region66: #{tpu_custom_call.1} parent=1 // pred_check
      _
    $region67: #{tpu_custom_call.1} parent=1 // pred_check_branch
      %262 = sbr.rel target = $region69
    $region68: #{tpu_custom_call.1} parent=1 // pred_region
      %263 = sst [smem:[#allocation8]] [#allocation37]
      %264 = sst [smem:[#allocation9]] [#allocation36]
    $region69: #{tpu_custom_call.1} parent=1 // pred_fallthru
      _
    %266 = shalt.err (0)
    %s268 = sshll.u32 [#allocation2], 4
    %s269 = int_to_ptr.vmem [resolvable:$true] %s268
    %271 = dma.vmem_to_hbm [thread:$0]  %s269, 16, %s260, %s122
    %s272 = sadd.s32 %s23, 15
    %s273 = sld [smem:[#allocation4 + %s272]]
    %s274 = smul.addr %s273, 16
    %s275 = scalar_lea.hbm %s2, %s274
    // Predicated region
    $region70: #{tpu_custom_call.1} parent=1 // pred_check
      _
    $region71: #{tpu_custom_call.1} parent=1 // pred_check_branch
      %277 = sbr.rel target = $region73
    $region72: #{tpu_custom_call.1} parent=1 // pred_region
      %278 = sst [smem:[#allocation8]] [#allocation39]
      %279 = sst [smem:[#allocation9]] [#allocation38]
    $region73: #{tpu_custom_call.1} parent=1 // pred_fallthru
      _
    %281 = shalt.err (0)
    %s283 = sshll.u32 [#allocation2], 4
    %s284 = int_to_ptr.vmem [resolvable:$true] %s283
    %286 = dma.vmem_to_hbm [thread:$0]  %s284, 16, %s275, %s138
    %s287 = sshll.u32 %s150, 4
    %288 = dma.done [#allocation3], %s287
    %s289 = sshll.u32 %s150, 4
    %290 = dma.done %s42, %s289
    %s291 = sshll.u32 %s150, 4
    %292 = dma.done %s58, %s291
    %s293 = sshll.u32 %s150, 4
    %294 = dma.done %s74, %s293
    %s295 = sshll.u32 %s150, 4
    %296 = dma.done %s90, %s295
    %s297 = sshll.u32 %s150, 4
    %298 = dma.done %s106, %s297
    %s299 = sshll.u32 %s150, 4
    %300 = dma.done %s122, %s299
    %s301 = sshll.u32 %s150, 4
    %302 = dma.done %s138, %s301
    %s303 = sadd.s32 %s23, 16
    %s304 = sld [smem:[#allocation4 + %s303]]
    %s305 = smul.addr %s304, 16
    %s306 = scalar_lea.hbm %s2, %s305
    // Predicated region
    $region74: #{tpu_custom_call.1} parent=1 // pred_check
      _
    $region75: #{tpu_custom_call.1} parent=1 // pred_check_branch
      %308 = sbr.rel target = $region77
    $region76: #{tpu_custom_call.1} parent=1 // pred_region
      %309 = sst [smem:[#allocation8]] [#allocation41]
      %310 = sst [smem:[#allocation9]] [#allocation40]
    $region77: #{tpu_custom_call.1} parent=1 // pred_fallthru
      _
    %312 = shalt.err (0)
    %s314 = sshll.u32 [#allocation2], 4
    %s315 = int_to_ptr.vmem [resolvable:$true] %s314
    %317 = dma.vmem_to_hbm [thread:$0]  %s315, 16, %s306, [#allocation3]
    %s318 = sadd.s32 %s23, 17
    %s319 = sld [smem:[#allocation4 + %s318]]
    %s320 = smul.addr %s319, 16
    %s321 = scalar_lea.hbm %s2, %s320
    // Predicated region
    $region78: #{tpu_custom_call.1} parent=1 // pred_check
      _
    $region79: #{tpu_custom_call.1} parent=1 // pred_check_branch
      %323 = sbr.rel target = $region81
    $region80: #{tpu_custom_call.1} parent=1 // pred_region
      %324 = sst [smem:[#allocation8]] [#allocation43]
      %325 = sst [smem:[#allocation9]] [#allocation42]
    $region81: #{tpu_custom_call.1} parent=1 // pred_fallthru
      _
    %327 = shalt.err (0)
    %s329 = sshll.u32 [#allocation2], 4
    %s330 = int_to_ptr.vmem [resolvable:$true] %s329
    %332 = dma.vmem_to_hbm [thread:$0]  %s330, 16, %s321, %s42
    %s333 = sadd.s32 %s23, 18
    %s334 = sld [smem:[#allocation4 + %s333]]
    %s335 = smul.addr %s334, 16
    %s336 = scalar_lea.hbm %s2, %s335
    // Predicated region
    $region82: #{tpu_custom_call.1} parent=1 // pred_check
      _
    $region83: #{tpu_custom_call.1} parent=1 // pred_check_branch
      %338 = sbr.rel target = $region85
    $region84: #{tpu_custom_call.1} parent=1 // pred_region
      %339 = sst [smem:[#allocation8]] [#allocation45]
      %340 = sst [smem:[#allocation9]] [#allocation44]
    $region85: #{tpu_custom_call.1} parent=1 // pred_fallthru
      _
    %342 = shalt.err (0)
    %s344 = sshll.u32 [#allocation2], 4
    %s345 = int_to_ptr.vmem [resolvable:$true] %s344
    %347 = dma.vmem_to_hbm [thread:$0]  %s345, 16, %s336, %s58
    %s348 = sadd.s32 %s23, 19
    %s349 = sld [smem:[#allocation4 + %s348]]
    %s350 = smul.addr %s349, 16
    %s351 = scalar_lea.hbm %s2, %s350
    // Predicated region
    $region86: #{tpu_custom_call.1} parent=1 // pred_check
      _
    $region87: #{tpu_custom_call.1} parent=1 // pred_check_branch
      %353 = sbr.rel target = $region89
    $region88: #{tpu_custom_call.1} parent=1 // pred_region
      %354 = sst [smem:[#allocation8]] [#allocation47]
      %355 = sst [smem:[#allocation9]] [#allocation46]
    $region89: #{tpu_custom_call.1} parent=1 // pred_fallthru
      _
    %357 = shalt.err (0)
    %s359 = sshll.u32 [#allocation2], 4
    %s360 = int_to_ptr.vmem [resolvable:$true] %s359
    %362 = dma.vmem_to_hbm [thread:$0]  %s360, 16, %s351, %s74
    %s363 = sadd.s32 %s23, 20
    %s364 = sld [smem:[#allocation4 + %s363]]
    %s365 = smul.addr %s364, 16
    %s366 = scalar_lea.hbm %s2, %s365
    // Predicated region
    $region90: #{tpu_custom_call.1} parent=1 // pred_check
      _
    $region91: #{tpu_custom_call.1} parent=1 // pred_check_branch
      %368 = sbr.rel target = $region93
    $region92: #{tpu_custom_call.1} parent=1 // pred_region
      %369 = sst [smem:[#allocation8]] [#allocation49]
      %370 = sst [smem:[#allocation9]] [#allocation48]
    $region93: #{tpu_custom_call.1} parent=1 // pred_fallthru
      _
    %372 = shalt.err (0)
    %s374 = sshll.u32 [#allocation2], 4
    %s375 = int_to_ptr.vmem [resolvable:$true] %s374
    %377 = dma.vmem_to_hbm [thread:$0]  %s375, 16, %s366, %s90
    %s378 = sadd.s32 %s23, 21
    %s379 = sld [smem:[#allocation4 + %s378]]
    %s380 = smul.addr %s379, 16
    %s381 = scalar_lea.hbm %s2, %s380
    // Predicated region
    $region94: #{tpu_custom_call.1} parent=1 // pred_check
      _
    $region95: #{tpu_custom_call.1} parent=1 // pred_check_branch
      %383 = sbr.rel target = $region97
    $region96: #{tpu_custom_call.1} parent=1 // pred_region
      %384 = sst [smem:[#allocation8]] [#allocation51]
      %385 = sst [smem:[#allocation9]] [#allocation50]
    $region97: #{tpu_custom_call.1} parent=1 // pred_fallthru
      _
    %387 = shalt.err (0)
    %s389 = sshll.u32 [#allocation2], 4
    %s390 = int_to_ptr.vmem [resolvable:$true] %s389
    %392 = dma.vmem_to_hbm [thread:$0]  %s390, 16, %s381, %s106
    %s393 = sadd.s32 %s23, 22
    %s394 = sld [smem:[#allocation4 + %s393]]
    %s395 = smul.addr %s394, 16
    %s396 = scalar_lea.hbm %s2, %s395
    // Predicated region
    $region98: #{tpu_custom_call.1} parent=1 // pred_check
      _
    $region99: #{tpu_custom_call.1} parent=1 // pred_check_branch
      %398 = sbr.rel target = $region101
    $region100: #{tpu_custom_call.1} parent=1 // pred_region
      %399 = sst [smem:[#allocation8]] [#allocation53]
      %400 = sst [smem:[#allocation9]] [#allocation52]
    $region101: #{tpu_custom_call.1} parent=1 // pred_fallthru
      _
    %402 = shalt.err (0)
    %s404 = sshll.u32 [#allocation2], 4
    %s405 = int_to_ptr.vmem [resolvable:$true] %s404
    %407 = dma.vmem_to_hbm [thread:$0]  %s405, 16, %s396, %s122
    %s408 = sadd.s32 %s23, 23
    %s409 = sld [smem:[#allocation4 + %s408]]
    %s410 = smul.addr %s409, 16
    %s411 = scalar_lea.hbm %s2, %s410
    // Predicated region
    $region102: #{tpu_custom_call.1} parent=1 // pred_check
      _
    $region103: #{tpu_custom_call.1} parent=1 // pred_check_branch
      %413 = sbr.rel target = $region105
    $region104: #{tpu_custom_call.1} parent=1 // pred_region
      %414 = sst [smem:[#allocation8]] [#allocation55]
      %415 = sst [smem:[#allocation9]] [#allocation54]
    $region105: #{tpu_custom_call.1} parent=1 // pred_fallthru
      _
    %417 = shalt.err (0)
    %s419 = sshll.u32 [#allocation2], 4
    %s420 = int_to_ptr.vmem [resolvable:$true] %s419
    %422 = dma.vmem_to_hbm [thread:$0]  %s420, 16, %s411, %s138
    %s423 = sshll.u32 %s150, 4
    %424 = dma.done [#allocation3], %s423
    %s425 = sshll.u32 %s150, 4
    %426 = dma.done %s42, %s425
    %s427 = sshll.u32 %s150, 4
    %428 = dma.done %s58, %s427
    %s429 = sshll.u32 %s150, 4
    %430 = dma.done %s74, %s429
    %s431 = sshll.u32 %s150, 4
    %432 = dma.done %s90, %s431
    %s433 = sshll.u32 %s150, 4
    %434 = dma.done %s106, %s433
    %s435 = sshll.u32 %s150, 4
    %436 = dma.done %s122, %s435
    %s437 = sshll.u32 %s150, 4
    %438 = dma.done %s138, %s437
    %s439 = sadd.s32 %s23, 24
    %s440 = sld [smem:[#allocation4 + %s439]]
    %s441 = smul.addr %s440, 16
    %s442 = scalar_lea.hbm %s2, %s441
    // Predicated region
    $region106: #{tpu_custom_call.1} parent=1 // pred_check
      _
    $region107: #{tpu_custom_call.1} parent=1 // pred_check_branch
      %444 = sbr.rel target = $region109
    $region108: #{tpu_custom_call.1} parent=1 // pred_region
      %445 = sst [smem:[#allocation8]] [#allocation57]
      %446 = sst [smem:[#allocation9]] [#allocation56]
    $region109: #{tpu_custom_call.1} parent=1 // pred_fallthru
      _
    %448 = shalt.err (0)
    %s450 = sshll.u32 [#allocation2], 4
    %s451 = int_to_ptr.vmem [resolvable:$true] %s450
    %453 = dma.vmem_to_hbm [thread:$0]  %s451, 16, %s442, [#allocation3]
    %s454 = sadd.s32 %s23, 25
    %s455 = sld [smem:[#allocation4 + %s454]]
    %s456 = smul.addr %s455, 16
    %s457 = scalar_lea.hbm %s2, %s456
    // Predicated region
    $region110: #{tpu_custom_call.1} parent=1 // pred_check
      _
    $region111: #{tpu_custom_call.1} parent=1 // pred_check_branch
      %459 = sbr.rel target = $region113
    $region112: #{tpu_custom_call.1} parent=1 // pred_region
      %460 = sst [smem:[#allocation8]] [#allocation59]
      %461 = sst [smem:[#allocation9]] [#allocation58]
    $region113: #{tpu_custom_call.1} parent=1 // pred_fallthru
      _
    %463 = shalt.err (0)
    %s465 = sshll.u32 [#allocation2], 4
    %s466 = int_to_ptr.vmem [resolvable:$true] %s465
    %468 = dma.vmem_to_hbm [thread:$0]  %s466, 16, %s457, %s42
    %s469 = sadd.s32 %s23, 26
    %s470 = sld [smem:[#allocation4 + %s469]]
    %s471 = smul.addr %s470, 16
    %s472 = scalar_lea.hbm %s2, %s471
    // Predicated region
    $region114: #{tpu_custom_call.1} parent=1 // pred_check
      _
    $region115: #{tpu_custom_call.1} parent=1 // pred_check_branch
      %474 = sbr.rel target = $region117
    $region116: #{tpu_custom_call.1} parent=1 // pred_region
      %475 = sst [smem:[#allocation8]] [#allocation61]
      %476 = sst [smem:[#allocation9]] [#allocation60]
    $region117: #{tpu_custom_call.1} parent=1 // pred_fallthru
      _
    %478 = shalt.err (0)
    %s480 = sshll.u32 [#allocation2], 4
    %s481 = int_to_ptr.vmem [resolvable:$true] %s480
    %483 = dma.vmem_to_hbm [thread:$0]  %s481, 16, %s472, %s58
    %s484 = sadd.s32 %s23, 27
    %s485 = sld [smem:[#allocation4 + %s484]]
    %s486 = smul.addr %s485, 16
    %s487 = scalar_lea.hbm %s2, %s486
    // Predicated region
    $region118: #{tpu_custom_call.1} parent=1 // pred_check
      _
    $region119: #{tpu_custom_call.1} parent=1 // pred_check_branch
      %489 = sbr.rel target = $region121
    $region120: #{tpu_custom_call.1} parent=1 // pred_region
      %490 = sst [smem:[#allocation8]] [#allocation63]
      %491 = sst [smem:[#allocation9]] [#allocation62]
    $region121: #{tpu_custom_call.1} parent=1 // pred_fallthru
      _
    %493 = shalt.err (0)
    %s495 = sshll.u32 [#allocation2], 4
    %s496 = int_to_ptr.vmem [resolvable:$true] %s495
    %498 = dma.vmem_to_hbm [thread:$0]  %s496, 16, %s487, %s74
    %s499 = sadd.s32 %s23, 28
    %s500 = sld [smem:[#allocation4 + %s499]]
    %s501 = smul.addr %s500, 16
    %s502 = scalar_lea.hbm %s2, %s501
    // Predicated region
    $region122: #{tpu_custom_call.1} parent=1 // pred_check
      _
    $region123: #{tpu_custom_call.1} parent=1 // pred_check_branch
      %504 = sbr.rel target = $region125
    $region124: #{tpu_custom_call.1} parent=1 // pred_region
      %505 = sst [smem:[#allocation8]] [#allocation65]
      %506 = sst [smem:[#allocation9]] [#allocation64]
    $region125: #{tpu_custom_call.1} parent=1 // pred_fallthru
      _
    %508 = shalt.err (0)
    %s510 = sshll.u32 [#allocation2], 4
    %s511 = int_to_ptr.vmem [resolvable:$true] %s510
    %513 = dma.vmem_to_hbm [thread:$0]  %s511, 16, %s502, %s90
    %s514 = sadd.s32 %s23, 29
    %s515 = sld [smem:[#allocation4 + %s514]]
    %s516 = smul.addr %s515, 16
    %s517 = scalar_lea.hbm %s2, %s516
    // Predicated region
    $region126: #{tpu_custom_call.1} parent=1 // pred_check
      _
    $region127: #{tpu_custom_call.1} parent=1 // pred_check_branch
      %519 = sbr.rel target = $region129
    $region128: #{tpu_custom_call.1} parent=1 // pred_region
      %520 = sst [smem:[#allocation8]] [#allocation67]
      %521 = sst [smem:[#allocation9]] [#allocation66]
    $region129: #{tpu_custom_call.1} parent=1 // pred_fallthru
      _
    %523 = shalt.err (0)
    %s525 = sshll.u32 [#allocation2], 4
    %s526 = int_to_ptr.vmem [resolvable:$true] %s525
    %528 = dma.vmem_to_hbm [thread:$0]  %s526, 16, %s517, %s106
    %s529 = sadd.s32 %s23, 30
    %s530 = sld [smem:[#allocation4 + %s529]]
    %s531 = smul.addr %s530, 16
    %s532 = scalar_lea.hbm %s2, %s531
    // Predicated region
    $region130: #{tpu_custom_call.1} parent=1 // pred_check
      _
    $region131: #{tpu_custom_call.1} parent=1 // pred_check_branch
      %534 = sbr.rel target = $region133
    $region132: #{tpu_custom_call.1} parent=1 // pred_region
      %535 = sst [smem:[#allocation8]] [#allocation69]
      %536 = sst [smem:[#allocation9]] [#allocation68]
    $region133: #{tpu_custom_call.1} parent=1 // pred_fallthru
      _
    %538 = shalt.err (0)
    %s540 = sshll.u32 [#allocation2], 4
    %s541 = int_to_ptr.vmem [resolvable:$true] %s540
    %543 = dma.vmem_to_hbm [thread:$0]  %s541, 16, %s532, %s122
    %s544 = sadd.s32 %s23, 31
    %s545 = sld [smem:[#allocation4 + %s544]]
    %s546 = smul.addr %s545, 16
    %s547 = scalar_lea.hbm %s2, %s546
    // Predicated region
    $region134: #{tpu_custom_call.1} parent=1 // pred_check
      _
    $region135: #{tpu_custom_call.1} parent=1 // pred_check_branch
      %549 = sbr.rel target = $region137
    $region136: #{tpu_custom_call.1} parent=1 // pred_region
      %550 = sst [smem:[#allocation8]] [#allocation71]
      %551 = sst [smem:[#allocation9]] [#allocation70]
    $region137: #{tpu_custom_call.1} parent=1 // pred_fallthru
      _
    %553 = shalt.err (0)
    %s555 = sshll.u32 [#allocation2], 4
    %s556 = int_to_ptr.vmem [resolvable:$true] %s555
    %558 = dma.vmem_to_hbm [thread:$0]  %s556, 16, %s547, %s138
    %s559 = sshll.u32 %s150, 4
    %560 = dma.done [#allocation3], %s559
    %s561 = sshll.u32 %s150, 4
    %562 = dma.done %s42, %s561
    %s563 = sshll.u32 %s150, 4
    %564 = dma.done %s58, %s563
    %s565 = sshll.u32 %s150, 4
    %566 = dma.done %s74, %s565
    %s567 = sshll.u32 %s150, 4
    %568 = dma.done %s90, %s567
    %s569 = sshll.u32 %s150, 4
    %570 = dma.done %s106, %s569
    %s571 = sshll.u32 %s150, 4
    %572 = dma.done %s122, %s571
    %s573 = sshll.u32 %s150, 4
    %574 = dma.done %s138, %s573
    %s575 = sadd.s32 %s23, 32
    %s576 = sld [smem:[#allocation4 + %s575]]
    %s577 = smul.addr %s576, 16
    %s578 = scalar_lea.hbm %s2, %s577
    // Predicated region
    $region138: #{tpu_custom_call.1} parent=1 // pred_check
      _
    $region139: #{tpu_custom_call.1} parent=1 // pred_check_branch
      %580 = sbr.rel target = $region141
    $region140: #{tpu_custom_call.1} parent=1 // pred_region
      %581 = sst [smem:[#allocation8]] [#allocation73]
      %582 = sst [smem:[#allocation9]] [#allocation72]
    $region141: #{tpu_custom_call.1} parent=1 // pred_fallthru
      _
    %584 = shalt.err (0)
    %s586 = sshll.u32 [#allocation2], 4
    %s587 = int_to_ptr.vmem [resolvable:$true] %s586
    %589 = dma.vmem_to_hbm [thread:$0]  %s587, 16, %s578, [#allocation3]
    %s590 = sadd.s32 %s23, 33
    %s591 = sld [smem:[#allocation4 + %s590]]
    %s592 = smul.addr %s591, 16
    %s593 = scalar_lea.hbm %s2, %s592
    // Predicated region
    $region142: #{tpu_custom_call.1} parent=1 // pred_check
      _
    $region143: #{tpu_custom_call.1} parent=1 // pred_check_branch
      %595 = sbr.rel target = $region145
    $region144: #{tpu_custom_call.1} parent=1 // pred_region
      %596 = sst [smem:[#allocation8]] [#allocation75]
      %597 = sst [smem:[#allocation9]] [#allocation74]
    $region145: #{tpu_custom_call.1} parent=1 // pred_fallthru
      _
    %599 = shalt.err (0)
    %s601 = sshll.u32 [#allocation2], 4
    %s602 = int_to_ptr.vmem [resolvable:$true] %s601
    %604 = dma.vmem_to_hbm [thread:$0]  %s602, 16, %s593, %s42
    %s605 = sadd.s32 %s23, 34
    %s606 = sld [smem:[#allocation4 + %s605]]
    %s607 = smul.addr %s606, 16
    %s608 = scalar_lea.hbm %s2, %s607
    // Predicated region
    $region146: #{tpu_custom_call.1} parent=1 // pred_check
      _
    $region147: #{tpu_custom_call.1} parent=1 // pred_check_branch
      %610 = sbr.rel target = $region149
    $region148: #{tpu_custom_call.1} parent=1 // pred_region
      %611 = sst [smem:[#allocation8]] [#allocation77]
      %612 = sst [smem:[#allocation9]] [#allocation76]
    $region149: #{tpu_custom_call.1} parent=1 // pred_fallthru
      _
    %614 = shalt.err (0)
    %s616 = sshll.u32 [#allocation2], 4
    %s617 = int_to_ptr.vmem [resolvable:$true] %s616
    %619 = dma.vmem_to_hbm [thread:$0]  %s617, 16, %s608, %s58
    %s620 = sadd.s32 %s23, 35
    %s621 = sld [smem:[#allocation4 + %s620]]
    %s622 = smul.addr %s621, 16
    %s623 = scalar_lea.hbm %s2, %s622
    // Predicated region
    $region150: #{tpu_custom_call.1} parent=1 // pred_check
      _
    $region151: #{tpu_custom_call.1} parent=1 // pred_check_branch
      %625 = sbr.rel target = $region153
    $region152: #{tpu_custom_call.1} parent=1 // pred_region
      %626 = sst [smem:[#allocation8]] [#allocation79]
      %627 = sst [smem:[#allocation9]] [#allocation78]
    $region153: #{tpu_custom_call.1} parent=1 // pred_fallthru
      _
    %629 = shalt.err (0)
    %s631 = sshll.u32 [#allocation2], 4
    %s632 = int_to_ptr.vmem [resolvable:$true] %s631
    %634 = dma.vmem_to_hbm [thread:$0]  %s632, 16, %s623, %s74
    %s635 = sadd.s32 %s23, 36
    %s636 = sld [smem:[#allocation4 + %s635]]
    %s637 = smul.addr %s636, 16
    %s638 = scalar_lea.hbm %s2, %s637
    // Predicated region
    $region154: #{tpu_custom_call.1} parent=1 // pred_check
      _
    $region155: #{tpu_custom_call.1} parent=1 // pred_check_branch
      %640 = sbr.rel target = $region157
    $region156: #{tpu_custom_call.1} parent=1 // pred_region
      %641 = sst [smem:[#allocation8]] [#allocation81]
      %642 = sst [smem:[#allocation9]] [#allocation80]
    $region157: #{tpu_custom_call.1} parent=1 // pred_fallthru
      _
    %644 = shalt.err (0)
    %s646 = sshll.u32 [#allocation2], 4
    %s647 = int_to_ptr.vmem [resolvable:$true] %s646
    %649 = dma.vmem_to_hbm [thread:$0]  %s647, 16, %s638, %s90
    %s650 = sadd.s32 %s23, 37
    %s651 = sld [smem:[#allocation4 + %s650]]
    %s652 = smul.addr %s651, 16
    %s653 = scalar_lea.hbm %s2, %s652
    // Predicated region
    $region158: #{tpu_custom_call.1} parent=1 // pred_check
      _
    $region159: #{tpu_custom_call.1} parent=1 // pred_check_branch
      %655 = sbr.rel target = $region161
    $region160: #{tpu_custom_call.1} parent=1 // pred_region
      %656 = sst [smem:[#allocation8]] [#allocation83]
      %657 = sst [smem:[#allocation9]] [#allocation82]
    $region161: #{tpu_custom_call.1} parent=1 // pred_fallthru
      _
    %659 = shalt.err (0)
    %s661 = sshll.u32 [#allocation2], 4
    %s662 = int_to_ptr.vmem [resolvable:$true] %s661
    %664 = dma.vmem_to_hbm [thread:$0]  %s662, 16, %s653, %s106
    %s665 = sadd.s32 %s23, 38
    %s666 = sld [smem:[#allocation4 + %s665]]
    %s667 = smul.addr %s666, 16
    %s668 = scalar_lea.hbm %s2, %s667
    // Predicated region
    $region162: #{tpu_custom_call.1} parent=1 // pred_check
      _
    $region163: #{tpu_custom_call.1} parent=1 // pred_check_branch
      %670 = sbr.rel target = $region165
    $region164: #{tpu_custom_call.1} parent=1 // pred_region
      %671 = sst [smem:[#allocation8]] [#allocation85]
      %672 = sst [smem:[#allocation9]] [#allocation84]
    $region165: #{tpu_custom_call.1} parent=1 // pred_fallthru
      _
    %674 = shalt.err (0)
    %s676 = sshll.u32 [#allocation2], 4
    %s677 = int_to_ptr.vmem [resolvable:$true] %s676
    %679 = dma.vmem_to_hbm [thread:$0]  %s677, 16, %s668, %s122
    %s680 = sadd.s32 %s23, 39
    %s681 = sld [smem:[#allocation4 + %s680]]
    %s682 = smul.addr %s681, 16
    %s683 = scalar_lea.hbm %s2, %s682
    // Predicated region
    $region166: #{tpu_custom_call.1} parent=1 // pred_check
      _
    $region167: #{tpu_custom_call.1} parent=1 // pred_check_branch
      %685 = sbr.rel target = $region169
    $region168: #{tpu_custom_call.1} parent=1 // pred_region
      %686 = sst [smem:[#allocation8]] [#allocation87]
      %687 = sst [smem:[#allocation9]] [#allocation86]
    $region169: #{tpu_custom_call.1} parent=1 // pred_fallthru
      _
    %689 = shalt.err (0)
    %s691 = sshll.u32 [#allocation2], 4
    %s692 = int_to_ptr.vmem [resolvable:$true] %s691
    %694 = dma.vmem_to_hbm [thread:$0]  %s692, 16, %s683, %s138
    %s695 = sshll.u32 %s150, 4
    %696 = dma.done [#allocation3], %s695
    %s697 = sshll.u32 %s150, 4
    %698 = dma.done %s42, %s697
    %s699 = sshll.u32 %s150, 4
    %700 = dma.done %s58, %s699
    %s701 = sshll.u32 %s150, 4
    %702 = dma.done %s74, %s701
    %s703 = sshll.u32 %s150, 4
    %704 = dma.done %s90, %s703
    %s705 = sshll.u32 %s150, 4
    %706 = dma.done %s106, %s705
    %s707 = sshll.u32 %s150, 4
    %708 = dma.done %s122, %s707
    %s709 = sshll.u32 %s150, 4
    %710 = dma.done %s138, %s709
    %s711 = sadd.s32 %s23, 40
    %s712 = sld [smem:[#allocation4 + %s711]]
    %s713 = smul.addr %s712, 16
    %s714 = scalar_lea.hbm %s2, %s713
    // Predicated region
    $region170: #{tpu_custom_call.1} parent=1 // pred_check
      _
    $region171: #{tpu_custom_call.1} parent=1 // pred_check_branch
      %716 = sbr.rel target = $region173
    $region172: #{tpu_custom_call.1} parent=1 // pred_region
      %717 = sst [smem:[#allocation8]] [#allocation89]
      %718 = sst [smem:[#allocation9]] [#allocation88]
    $region173: #{tpu_custom_call.1} parent=1 // pred_fallthru
      _
    %720 = shalt.err (0)
    %s722 = sshll.u32 [#allocation2], 4
    %s723 = int_to_ptr.vmem [resolvable:$true] %s722
    %725 = dma.vmem_to_hbm [thread:$0]  %s723, 16, %s714, [#allocation3]
    %s726 = sadd.s32 %s23, 41
    %s727 = sld [smem:[#allocation4 + %s726]]
    %s728 = smul.addr %s727, 16
    %s729 = scalar_lea.hbm %s2, %s728
    // Predicated region
    $region174: #{tpu_custom_call.1} parent=1 // pred_check
      _
    $region175: #{tpu_custom_call.1} parent=1 // pred_check_branch
      %731 = sbr.rel target = $region177
    $region176: #{tpu_custom_call.1} parent=1 // pred_region
      %732 = sst [smem:[#allocation8]] [#allocation91]
      %733 = sst [smem:[#allocation9]] [#allocation90]
    $region177: #{tpu_custom_call.1} parent=1 // pred_fallthru
      _
    %735 = shalt.err (0)
    %s737 = sshll.u32 [#allocation2], 4
    %s738 = int_to_ptr.vmem [resolvable:$true] %s737
    %740 = dma.vmem_to_hbm [thread:$0]  %s738, 16, %s729, %s42
    %s741 = sadd.s32 %s23, 42
    %s742 = sld [smem:[#allocation4 + %s741]]
    %s743 = smul.addr %s742, 16
    %s744 = scalar_lea.hbm %s2, %s743
    // Predicated region
    $region178: #{tpu_custom_call.1} parent=1 // pred_check
      _
    $region179: #{tpu_custom_call.1} parent=1 // pred_check_branch
      %746 = sbr.rel target = $region181
    $region180: #{tpu_custom_call.1} parent=1 // pred_region
      %747 = sst [smem:[#allocation8]] [#allocation93]
      %748 = sst [smem:[#allocation9]] [#allocation92]
    $region181: #{tpu_custom_call.1} parent=1 // pred_fallthru
      _
    %750 = shalt.err (0)
    %s752 = sshll.u32 [#allocation2], 4
    %s753 = int_to_ptr.vmem [resolvable:$true] %s752
    %755 = dma.vmem_to_hbm [thread:$0]  %s753, 16, %s744, %s58
    %s756 = sadd.s32 %s23, 43
    %s757 = sld [smem:[#allocation4 + %s756]]
    %s758 = smul.addr %s757, 16
    %s759 = scalar_lea.hbm %s2, %s758
    // Predicated region
    $region182: #{tpu_custom_call.1} parent=1 // pred_check
      _
    $region183: #{tpu_custom_call.1} parent=1 // pred_check_branch
      %761 = sbr.rel target = $region185
    $region184: #{tpu_custom_call.1} parent=1 // pred_region
      %762 = sst [smem:[#allocation8]] [#allocation95]
      %763 = sst [smem:[#allocation9]] [#allocation94]
    $region185: #{tpu_custom_call.1} parent=1 // pred_fallthru
      _
    %765 = shalt.err (0)
    %s767 = sshll.u32 [#allocation2], 4
    %s768 = int_to_ptr.vmem [resolvable:$true] %s767
    %770 = dma.vmem_to_hbm [thread:$0]  %s768, 16, %s759, %s74
    %s771 = sadd.s32 %s23, 44
    %s772 = sld [smem:[#allocation4 + %s771]]
    %s773 = smul.addr %s772, 16
    %s774 = scalar_lea.hbm %s2, %s773
    // Predicated region
    $region186: #{tpu_custom_call.1} parent=1 // pred_check
      _
    $region187: #{tpu_custom_call.1} parent=1 // pred_check_branch
      %776 = sbr.rel target = $region189
    $region188: #{tpu_custom_call.1} parent=1 // pred_region
      %777 = sst [smem:[#allocation8]] [#allocation97]
      %778 = sst [smem:[#allocation9]] [#allocation96]
    $region189: #{tpu_custom_call.1} parent=1 // pred_fallthru
      _
    %780 = shalt.err (0)
    %s782 = sshll.u32 [#allocation2], 4
    %s783 = int_to_ptr.vmem [resolvable:$true] %s782
    %785 = dma.vmem_to_hbm [thread:$0]  %s783, 16, %s774, %s90
    %s786 = sadd.s32 %s23, 45
    %s787 = sld [smem:[#allocation4 + %s786]]
    %s788 = smul.addr %s787, 16
    %s789 = scalar_lea.hbm %s2, %s788
    // Predicated region
    $region190: #{tpu_custom_call.1} parent=1 // pred_check
      _
    $region191: #{tpu_custom_call.1} parent=1 // pred_check_branch
      %791 = sbr.rel target = $region193
    $region192: #{tpu_custom_call.1} parent=1 // pred_region
      %792 = sst [smem:[#allocation8]] [#allocation99]
      %793 = sst [smem:[#allocation9]] [#allocation98]
    $region193: #{tpu_custom_call.1} parent=1 // pred_fallthru
      _
    %795 = shalt.err (0)
    %s797 = sshll.u32 [#allocation2], 4
    %s798 = int_to_ptr.vmem [resolvable:$true] %s797
    %800 = dma.vmem_to_hbm [thread:$0]  %s798, 16, %s789, %s106
    %s801 = sadd.s32 %s23, 46
    %s802 = sld [smem:[#allocation4 + %s801]]
    %s803 = smul.addr %s802, 16
    %s804 = scalar_lea.hbm %s2, %s803
    // Predicated region
    $region194: #{tpu_custom_call.1} parent=1 // pred_check
      _
    $region195: #{tpu_custom_call.1} parent=1 // pred_check_branch
      %806 = sbr.rel target = $region197
    $region196: #{tpu_custom_call.1} parent=1 // pred_region
      %807 = sst [smem:[#allocation8]] [#allocation101]
      %808 = sst [smem:[#allocation9]] [#allocation100]
    $region197: #{tpu_custom_call.1} parent=1 // pred_fallthru
      _
    %810 = shalt.err (0)
    %s812 = sshll.u32 [#allocation2], 4
    %s813 = int_to_ptr.vmem [resolvable:$true] %s812
    %815 = dma.vmem_to_hbm [thread:$0]  %s813, 16, %s804, %s122
    %s816 = sadd.s32 %s23, 47
    %s817 = sld [smem:[#allocation4 + %s816]]
    %s818 = smul.addr %s817, 16
    %s819 = scalar_lea.hbm %s2, %s818
    // Predicated region
    $region198: #{tpu_custom_call.1} parent=1 // pred_check
      _
    $region199: #{tpu_custom_call.1} parent=1 // pred_check_branch
      %821 = sbr.rel target = $region201
    $region200: #{tpu_custom_call.1} parent=1 // pred_region
      %822 = sst [smem:[#allocation8]] [#allocation103]
      %823 = sst [smem:[#allocation9]] [#allocation102]
    $region201: #{tpu_custom_call.1} parent=1 // pred_fallthru
      _
    %825 = shalt.err (0)
    %s827 = sshll.u32 [#allocation2], 4
    %s828 = int_to_ptr.vmem [resolvable:$true] %s827
    %830 = dma.vmem_to_hbm [thread:$0]  %s828, 16, %s819, %s138
    %s831 = sshll.u32 %s150, 4
    %832 = dma.done [#allocation3], %s831
    %s833 = sshll.u32 %s150, 4
    %834 = dma.done %s42, %s833
    %s835 = sshll.u32 %s150, 4
    %836 = dma.done %s58, %s835
    %s837 = sshll.u32 %s150, 4
    %838 = dma.done %s74, %s837
    %s839 = sshll.u32 %s150, 4
    %840 = dma.done %s90, %s839
    %s841 = sshll.u32 %s150, 4
    %842 = dma.done %s106, %s841
    %s843 = sshll.u32 %s150, 4
    %844 = dma.done %s122, %s843
    %s845 = sshll.u32 %s150, 4
    %846 = dma.done %s138, %s845
    %s847 = sadd.s32 %s23, 48
    %s848 = sld [smem:[#allocation4 + %s847]]
    %s849 = smul.addr %s848, 16
    %s850 = scalar_lea.hbm %s2, %s849
    // Predicated region
    $region202: #{tpu_custom_call.1} parent=1 // pred_check
      _
    $region203: #{tpu_custom_call.1} parent=1 // pred_check_branch
      %852 = sbr.rel target = $region205
    $region204: #{tpu_custom_call.1} parent=1 // pred_region
      %853 = sst [smem:[#allocation8]] [#allocation105]
      %854 = sst [smem:[#allocation9]] [#allocation104]
    $region205: #{tpu_custom_call.1} parent=1 // pred_fallthru
      _
    %856 = shalt.err (0)
    %s858 = sshll.u32 [#allocation2], 4
    %s859 = int_to_ptr.vmem [resolvable:$true] %s858
    %861 = dma.vmem_to_hbm [thread:$0]  %s859, 16, %s850, [#allocation3]
    %s862 = sadd.s32 %s23, 49
    %s863 = sld [smem:[#allocation4 + %s862]]
    %s864 = smul.addr %s863, 16
    %s865 = scalar_lea.hbm %s2, %s864
    // Predicated region
    $region206: #{tpu_custom_call.1} parent=1 // pred_check
      _
    $region207: #{tpu_custom_call.1} parent=1 // pred_check_branch
      %867 = sbr.rel target = $region209
    $region208: #{tpu_custom_call.1} parent=1 // pred_region
      %868 = sst [smem:[#allocation8]] [#allocation107]
      %869 = sst [smem:[#allocation9]] [#allocation106]
    $region209: #{tpu_custom_call.1} parent=1 // pred_fallthru
      _
    %871 = shalt.err (0)
    %s873 = sshll.u32 [#allocation2], 4
    %s874 = int_to_ptr.vmem [resolvable:$true] %s873
    %876 = dma.vmem_to_hbm [thread:$0]  %s874, 16, %s865, %s42
    %s877 = sadd.s32 %s23, 50
    %s878 = sld [smem:[#allocation4 + %s877]]
    %s879 = smul.addr %s878, 16
    %s880 = scalar_lea.hbm %s2, %s879
    // Predicated region
    $region210: #{tpu_custom_call.1} parent=1 // pred_check
      _
    $region211: #{tpu_custom_call.1} parent=1 // pred_check_branch
      %882 = sbr.rel target = $region213
    $region212: #{tpu_custom_call.1} parent=1 // pred_region
      %883 = sst [smem:[#allocation8]] [#allocation109]
      %884 = sst [smem:[#allocation9]] [#allocation108]
    $region213: #{tpu_custom_call.1} parent=1 // pred_fallthru
      _
    %886 = shalt.err (0)
    %s888 = sshll.u32 [#allocation2], 4
    %s889 = int_to_ptr.vmem [resolvable:$true] %s888
    %891 = dma.vmem_to_hbm [thread:$0]  %s889, 16, %s880, %s58
    %s892 = sadd.s32 %s23, 51
    %s893 = sld [smem:[#allocation4 + %s892]]
    %s894 = smul.addr %s893, 16
    %s895 = scalar_lea.hbm %s2, %s894
    // Predicated region
    $region214: #{tpu_custom_call.1} parent=1 // pred_check
      _
    $region215: #{tpu_custom_call.1} parent=1 // pred_check_branch
      %897 = sbr.rel target = $region217
    $region216: #{tpu_custom_call.1} parent=1 // pred_region
      %898 = sst [smem:[#allocation8]] [#allocation111]
      %899 = sst [smem:[#allocation9]] [#allocation110]
    $region217: #{tpu_custom_call.1} parent=1 // pred_fallthru
      _
    %901 = shalt.err (0)
    %s903 = sshll.u32 [#allocation2], 4
    %s904 = int_to_ptr.vmem [resolvable:$true] %s903
    %906 = dma.vmem_to_hbm [thread:$0]  %s904, 16, %s895, %s74
    %s907 = sadd.s32 %s23, 52
    %s908 = sld [smem:[#allocation4 + %s907]]
    %s909 = smul.addr %s908, 16
    %s910 = scalar_lea.hbm %s2, %s909
    // Predicated region
    $region218: #{tpu_custom_call.1} parent=1 // pred_check
      _
    $region219: #{tpu_custom_call.1} parent=1 // pred_check_branch
      %912 = sbr.rel target = $region221
    $region220: #{tpu_custom_call.1} parent=1 // pred_region
      %913 = sst [smem:[#allocation8]] [#allocation113]
      %914 = sst [smem:[#allocation9]] [#allocation112]
    $region221: #{tpu_custom_call.1} parent=1 // pred_fallthru
      _
    %916 = shalt.err (0)
    %s918 = sshll.u32 [#allocation2], 4
    %s919 = int_to_ptr.vmem [resolvable:$true] %s918
    %921 = dma.vmem_to_hbm [thread:$0]  %s919, 16, %s910, %s90
    %s922 = sadd.s32 %s23, 53
    %s923 = sld [smem:[#allocation4 + %s922]]
    %s924 = smul.addr %s923, 16
    %s925 = scalar_lea.hbm %s2, %s924
    // Predicated region
    $region222: #{tpu_custom_call.1} parent=1 // pred_check
      _
    $region223: #{tpu_custom_call.1} parent=1 // pred_check_branch
      %927 = sbr.rel target = $region225
    $region224: #{tpu_custom_call.1} parent=1 // pred_region
      %928 = sst [smem:[#allocation8]] [#allocation115]
      %929 = sst [smem:[#allocation9]] [#allocation114]
    $region225: #{tpu_custom_call.1} parent=1 // pred_fallthru
      _
    %931 = shalt.err (0)
    %s933 = sshll.u32 [#allocation2], 4
    %s934 = int_to_ptr.vmem [resolvable:$true] %s933
    %936 = dma.vmem_to_hbm [thread:$0]  %s934, 16, %s925, %s106
    %s937 = sadd.s32 %s23, 54
    %s938 = sld [smem:[#allocation4 + %s937]]
    %s939 = smul.addr %s938, 16
    %s940 = scalar_lea.hbm %s2, %s939
    // Predicated region
    $region226: #{tpu_custom_call.1} parent=1 // pred_check
      _
    $region227: #{tpu_custom_call.1} parent=1 // pred_check_branch
      %942 = sbr.rel target = $region229
    $region228: #{tpu_custom_call.1} parent=1 // pred_region
      %943 = sst [smem:[#allocation8]] [#allocation117]
      %944 = sst [smem:[#allocation9]] [#allocation116]
    $region229: #{tpu_custom_call.1} parent=1 // pred_fallthru
      _
    %946 = shalt.err (0)
    %s948 = sshll.u32 [#allocation2], 4
    %s949 = int_to_ptr.vmem [resolvable:$true] %s948
    %951 = dma.vmem_to_hbm [thread:$0]  %s949, 16, %s940, %s122
    %s952 = sadd.s32 %s23, 55
    %s953 = sld [smem:[#allocation4 + %s952]]
    %s954 = smul.addr %s953, 16
    %s955 = scalar_lea.hbm %s2, %s954
    // Predicated region
    $region230: #{tpu_custom_call.1} parent=1 // pred_check
      _
    $region231: #{tpu_custom_call.1} parent=1 // pred_check_branch
      %957 = sbr.rel target = $region233
    $region232: #{tpu_custom_call.1} parent=1 // pred_region
      %958 = sst [smem:[#allocation8]] [#allocation119]
      %959 = sst [smem:[#allocation9]] [#allocation118]
    $region233: #{tpu_custom_call.1} parent=1 // pred_fallthru
      _
    %961 = shalt.err (0)
    %s963 = sshll.u32 [#allocation2], 4
    %s964 = int_to_ptr.vmem [resolvable:$true] %s963
    %966 = dma.vmem_to_hbm [thread:$0]  %s964, 16, %s955, %s138
    %s967 = sshll.u32 %s150, 4
    %968 = dma.done [#allocation3], %s967
    %s969 = sshll.u32 %s150, 4
    %970 = dma.done %s42, %s969
    %s971 = sshll.u32 %s150, 4
    %972 = dma.done %s58, %s971
    %s973 = sshll.u32 %s150, 4
    %974 = dma.done %s74, %s973
    %s975 = sshll.u32 %s150, 4
    %976 = dma.done %s90, %s975
    %s977 = sshll.u32 %s150, 4
    %978 = dma.done %s106, %s977
    %s979 = sshll.u32 %s150, 4
    %980 = dma.done %s122, %s979
    %s981 = sshll.u32 %s150, 4
    %982 = dma.done %s138, %s981
    %s983 = sadd.s32 %s23, 56
    %s984 = sld [smem:[#allocation4 + %s983]]
    %s985 = smul.addr %s984, 16
    %s986 = scalar_lea.hbm %s2, %s985
    // Predicated region
    $region234: #{tpu_custom_call.1} parent=1 // pred_check
      _
    $region235: #{tpu_custom_call.1} parent=1 // pred_check_branch
      %988 = sbr.rel target = $region237
    $region236: #{tpu_custom_call.1} parent=1 // pred_region
      %989 = sst [smem:[#allocation8]] [#allocation121]
      %990 = sst [smem:[#allocation9]] [#allocation120]
    $region237: #{tpu_custom_call.1} parent=1 // pred_fallthru
      _
    %992 = shalt.err (0)
    %s994 = sshll.u32 [#allocation2], 4
    %s995 = int_to_ptr.vmem [resolvable:$true] %s994
    %997 = dma.vmem_to_hbm [thread:$0]  %s995, 16, %s986, [#allocation3]
    %s998 = sadd.s32 %s23, 57
    %s999 = sld [smem:[#allocation4 + %s998]]
    %s1000 = smul.addr %s999, 16
    %s1001 = scalar_lea.hbm %s2, %s1000
    // Predicated region
    $region238: #{tpu_custom_call.1} parent=1 // pred_check
      _
    $region239: #{tpu_custom_call.1} parent=1 // pred_check_branch
      %1003 = sbr.rel target = $region241
    $region240: #{tpu_custom_call.1} parent=1 // pred_region
      %1004 = sst [smem:[#allocation8]] [#allocation123]
      %1005 = sst [smem:[#allocation9]] [#allocation122]
    $region241: #{tpu_custom_call.1} parent=1 // pred_fallthru
      _
    %1007 = shalt.err (0)
    %s1009 = sshll.u32 [#allocation2], 4
    %s1010 = int_to_ptr.vmem [resolvable:$true] %s1009
    %1012 = dma.vmem_to_hbm [thread:$0]  %s1010, 16, %s1001, %s42
    %s1013 = sadd.s32 %s23, 58
    %s1014 = sld [smem:[#allocation4 + %s1013]]
    %s1015 = smul.addr %s1014, 16
    %s1016 = scalar_lea.hbm %s2, %s1015
    // Predicated region
    $region242: #{tpu_custom_call.1} parent=1 // pred_check
      _
    $region243: #{tpu_custom_call.1} parent=1 // pred_check_branch
      %1018 = sbr.rel target = $region245
    $region244: #{tpu_custom_call.1} parent=1 // pred_region
      %1019 = sst [smem:[#allocation8]] [#allocation125]
      %1020 = sst [smem:[#allocation9]] [#allocation124]
    $region245: #{tpu_custom_call.1} parent=1 // pred_fallthru
      _
    %1022 = shalt.err (0)
    %s1024 = sshll.u32 [#allocation2], 4
    %s1025 = int_to_ptr.vmem [resolvable:$true] %s1024
    %1027 = dma.vmem_to_hbm [thread:$0]  %s1025, 16, %s1016, %s58
    %s1028 = sadd.s32 %s23, 59
    %s1029 = sld [smem:[#allocation4 + %s1028]]
    %s1030 = smul.addr %s1029, 16
    %s1031 = scalar_lea.hbm %s2, %s1030
    // Predicated region
    $region246: #{tpu_custom_call.1} parent=1 // pred_check
      _
    $region247: #{tpu_custom_call.1} parent=1 // pred_check_branch
      %1033 = sbr.rel target = $region249
    $region248: #{tpu_custom_call.1} parent=1 // pred_region
      %1034 = sst [smem:[#allocation8]] [#allocation127]
      %1035 = sst [smem:[#allocation9]] [#allocation126]
    $region249: #{tpu_custom_call.1} parent=1 // pred_fallthru
      _
    %1037 = shalt.err (0)
    %s1039 = sshll.u32 [#allocation2], 4
    %s1040 = int_to_ptr.vmem [resolvable:$true] %s1039
    %1042 = dma.vmem_to_hbm [thread:$0]  %s1040, 16, %s1031, %s74
    %s1043 = sadd.s32 %s23, 60
    %s1044 = sld [smem:[#allocation4 + %s1043]]
    %s1045 = smul.addr %s1044, 16
    %s1046 = scalar_lea.hbm %s2, %s1045
    // Predicated region
    $region250: #{tpu_custom_call.1} parent=1 // pred_check
      _
    $region251: #{tpu_custom_call.1} parent=1 // pred_check_branch
      %1048 = sbr.rel target = $region253
    $region252: #{tpu_custom_call.1} parent=1 // pred_region
      %1049 = sst [smem:[#allocation8]] [#allocation129]
      %1050 = sst [smem:[#allocation9]] [#allocation128]
    $region253: #{tpu_custom_call.1} parent=1 // pred_fallthru
      _
    %1052 = shalt.err (0)
    %s1054 = sshll.u32 [#allocation2], 4
    %s1055 = int_to_ptr.vmem [resolvable:$true] %s1054
    %1057 = dma.vmem_to_hbm [thread:$0]  %s1055, 16, %s1046, %s90
    %s1058 = sadd.s32 %s23, 61
    %s1059 = sld [smem:[#allocation4 + %s1058]]
    %s1060 = smul.addr %s1059, 16
    %s1061 = scalar_lea.hbm %s2, %s1060
    // Predicated region
    $region254: #{tpu_custom_call.1} parent=1 // pred_check
      _
    $region255: #{tpu_custom_call.1} parent=1 // pred_check_branch
      %1063 = sbr.rel target = $region257
    $region256: #{tpu_custom_call.1} parent=1 // pred_region
      %1064 = sst [smem:[#allocation8]] [#allocation131]
      %1065 = sst [smem:[#allocation9]] [#allocation130]
    $region257: #{tpu_custom_call.1} parent=1 // pred_fallthru
      _
    %1067 = shalt.err (0)
    %s1069 = sshll.u32 [#allocation2], 4
    %s1070 = int_to_ptr.vmem [resolvable:$true] %s1069
    %1072 = dma.vmem_to_hbm [thread:$0]  %s1070, 16, %s1061, %s106
    %s1073 = sadd.s32 %s23, 62
    %s1074 = sld [smem:[#allocation4 + %s1073]]
    %s1075 = smul.addr %s1074, 16
    %s1076 = scalar_lea.hbm %s2, %s1075
    // Predicated region
    $region258: #{tpu_custom_call.1} parent=1 // pred_check
      _
    $region259: #{tpu_custom_call.1} parent=1 // pred_check_branch
      %1078 = sbr.rel target = $region261
    $region260: #{tpu_custom_call.1} parent=1 // pred_region
      %1079 = sst [smem:[#allocation8]] [#allocation133]
      %1080 = sst [smem:[#allocation9]] [#allocation132]
    $region261: #{tpu_custom_call.1} parent=1 // pred_fallthru
      _
    %1082 = shalt.err (0)
    %s1084 = sshll.u32 [#allocation2], 4
    %s1085 = int_to_ptr.vmem [resolvable:$true] %s1084
    %1087 = dma.vmem_to_hbm [thread:$0]  %s1085, 16, %s1076, %s122
    %s1088 = sadd.s32 %s23, 63
    %s1089 = sld [smem:[#allocation4 + %s1088]]
    %s1090 = smul.addr %s1089, 16
    %s1091 = scalar_lea.hbm %s2, %s1090
    // Predicated region
    $region262: #{tpu_custom_call.1} parent=1 // pred_check
      _
    $region263: #{tpu_custom_call.1} parent=1 // pred_check_branch
      %1093 = sbr.rel target = $region265
    $region264: #{tpu_custom_call.1} parent=1 // pred_region
      %1094 = sst [smem:[#allocation8]] [#allocation135]
      %1095 = sst [smem:[#allocation9]] [#allocation134]
    $region265: #{tpu_custom_call.1} parent=1 // pred_fallthru
      _
    %1097 = shalt.err (0)
    %s1099 = sshll.u32 [#allocation2], 4
    %s1100 = int_to_ptr.vmem [resolvable:$true] %s1099
    %1102 = dma.vmem_to_hbm [thread:$0]  %s1100, 16, %s1091, %s138
    %s1103 = sshll.u32 %s150, 4
    %1104 = dma.done [#allocation3], %s1103
    %s1105 = sshll.u32 %s150, 4
    %1106 = dma.done %s42, %s1105
    %s1107 = sshll.u32 %s150, 4
    %1108 = dma.done %s58, %s1107
    %s1109 = sshll.u32 %s150, 4
    %1110 = dma.done %s74, %s1109
    %s1111 = sshll.u32 %s150, 4
    %1112 = dma.done %s90, %s1111
    %s1113 = sshll.u32 %s150, 4
    %1114 = dma.done %s106, %s1113
    %s1115 = sshll.u32 %s150, 4
    %1116 = dma.done %s122, %s1115
    %s1117 = sshll.u32 %s150, 4
    %1118 = dma.done %s138, %s1117
    %1119 = vsyncpa [#allocation5], 1
  %1120 = vsyncmov [#allocation3]
  %s1121 = vpop.sfrf %1120
  %p1122 = scmp.eq.s32.totalorder %s1121, 0
  %p1123 = pneg %p1122
  %1125 = shalt.err (%p1123)
  %s1126 = scalar_lea.sflag [#allocation3], 1
  %1127 = vsyncmov %s1126
  %s1128 = vpop.sfrf %1127
  %p1129 = scmp.eq.s32.totalorder %s1128, 0
  %p1130 = pneg %p1129
  %1132 = shalt.err (%p1130)
  %s1133 = scalar_lea.sflag [#allocation3], 2
  %1134 = vsyncmov %s1133
  %s1135 = vpop.sfrf %1134
  %p1136 = scmp.eq.s32.totalorder %s1135, 0
  %p1137 = pneg %p1136
  %1139 = shalt.err (%p1137)
  %s1140 = scalar_lea.sflag [#allocation3], 3
  %1141 = vsyncmov %s1140
  %s1142 = vpop.sfrf %1141
  %p1143 = scmp.eq.s32.totalorder %s1142, 0
  %p1144 = pneg %p1143
  %1146 = shalt.err (%p1144)
  %s1147 = scalar_lea.sflag [#allocation3], 4
  %1148 = vsyncmov %s1147
  %s1149 = vpop.sfrf %1148
  %p1150 = scmp.eq.s32.totalorder %s1149, 0
  %p1151 = pneg %p1150
  %1153 = shalt.err (%p1151)
  %s1154 = scalar_lea.sflag [#allocation3], 5
  %1155 = vsyncmov %s1154
  %s1156 = vpop.sfrf %1155
  %p1157 = scmp.eq.s32.totalorder %s1156, 0
  %p1158 = pneg %p1157
  %1160 = shalt.err (%p1158)
  %s1161 = scalar_lea.sflag [#allocation3], 6
  %1162 = vsyncmov %s1161
  %s1163 = vpop.sfrf %1162
  %p1164 = scmp.eq.s32.totalorder %s1163, 0
  %p1165 = pneg %p1164
  %1167 = shalt.err (%p1165)
  %s1168 = scalar_lea.sflag [#allocation3], 7
  %1169 = vsyncmov %s1168
  %s1170 = vpop.sfrf %1169
  %p1171 = scmp.eq.s32.totalorder %s1170, 0
  %p1172 = pneg %p1171
  %1174 = shalt.err (%p1172)

</llo_original>
